<compile_context>
chip_gen: v6e
topology: v6e:2x2x1
jax: 0.10.0
libtpu: 0.0.40
codegen_flags: <defaults>
</compile_context>

<pallas_src>
import jax
import jax.numpy as jnp
from jax.experimental import pallas as pl
from jax.experimental.pallas import tpu as pltpu

LANE = 128  # TPU lane width; gate blocks are padded to this for aligned slices.


def _round_up(n, m):
    return ((n + m - 1) // m) * m


# -----------------------------------------------------------------------------
# Fused Pallas kernel: all LSTM layers (time recurrence in-kernel) + FC head
# -----------------------------------------------------------------------------
def _make_lstm_fc_kernel(T, B):
    """Builds the kernel closure for static (T, B).

    x_ref    : (T*B, KIN)        time-major flattened input, feature-padded
    w_in_ref : (L, KIN, 4*LANE)  x -> gates weights (gate blocks 128-wide)
    w_hid_ref: (L, HP,  4*LANE)  h -> gates weights (K de-padded to HP=round8(H))
    b_ref    : (L, 1,   4*LANE)  fused bias (b_ih + b_hh), gate-padded
    fcw_ref  : (1, HP)           FC weight row (real values in [:H])
    fcb_ref  : (1, 1)            FC bias
    out_ref  : (B, LANE)         lane-dense output; column 0 is the result
    hseq_ref : (T*B, KIN)        VMEM scratch holding a layer's full h sequence
    """

    def kernel(x_ref, w_in_ref, w_hid_ref, b_ref, fcw_ref, fcb_ref,
               out_ref, hseq_ref):
        L = w_in_ref.shape[0]
        HP = w_hid_ref.shape[1]

        if L > 1:
            hseq_ref[...] = jnp.zeros_like(hseq_ref)

        inp = x_ref[...]                                   # (T*B, KIN)
        h = None
        for l in range(L):                                 # static layer loop
            # Hoisted x-projection + fused bias for ALL T steps: one matmul,
            # completely off the serial recurrence chain.
            xp = (jnp.dot(inp, w_in_ref[l],
                          preferred_element_type=jnp.float32)
                  + b_ref[l])                              # (T*B, 4*LANE)
            w_hid = w_hid_ref[l]                           # (HP, 4*LANE) RHS-stationary
            h = jnp.zeros((B, HP), jnp.float32)
            c = jnp.zeros((B, HP), jnp.float32)
            # TODO(synk): for long sequences use lax.fori_loop with a capped
            # unroll instead of a fully-unrolled static loop (T=8 here).
            for t in range(T):
                gates = xp[t * B:(t + 1) * B, :] + jnp.dot(
                    h, w_hid, preferred_element_type=jnp.float32)  # (B, 4*LANE)
                # gate order is (i, f, o, g): one fused sigmoid over i|f|o,
                # every slice starts at a 128-lane boundary -> offset 0.
                sig = jax.nn.sigmoid(gates[:, :3 * LANE])
                i = sig[:, 0:HP]
                f = sig[:, LANE:LANE + HP]
                o = sig[:, 2 * LANE:2 * LANE + HP]
                g = jnp.tanh(gates[:, 3 * LANE:3 * LANE + HP])
                c = f * c + i * g
                h = o * jnp.tanh(c)
                if l < L - 1:
                    hseq_ref[t * B:(t + 1) * B, 0:HP] = h
            if l < L - 1:
                inp = hseq_ref[...]                        # feed next layer

        # FC head: VPU multiply + cross-lane reduce (idle XLU slot), no MXU
        # weight push on the kernel tail.
        out = jnp.sum(h * fcw_ref[...], axis=-1, keepdims=True) + fcb_ref[...]
        out_ref[...] = jnp.broadcast_to(out, (B, LANE)).astype(out_ref.dtype)

    return kernel


# -----------------------------------------------------------------------------
# Parameter preparation (done ONCE, hoisted out of the forward path)
# -----------------------------------------------------------------------------
def prepare_params(params, input_size):
    """Transpose, gate-permute and minimally pad PyTorch-layout weights."""
    lstm_layers = params["lstm"]
    H = lstm_layers[0]["w_hh"].shape[1]
    assert H <= LANE, "hidden_size must be <= 128 for this gate-block padding"
    HP = _round_up(H, 8)                       # de-padded contraction dim
    KIN = max(_round_up(input_size, 8), HP)    # shared K for stacked W_in
    gate_perm = jnp.array([0, 1, 3, 2])        # torch (i,f,g,o) -> (i,f,o,g)

    def make_w(w, k_pad):
        # w: (4H, k_real) torch layout -> (k_pad, 4*LANE) transposed/permuted
        k_real = w.shape[1]
        wt = jnp.transpose(w.astype(jnp.float32)).reshape(k_real, 4, H)
        wt = wt[:, gate_perm, :]
        wt = jnp.pad(wt, ((0, k_pad - k_real), (0, 0), (0, LANE - H)))
        return wt.reshape(k_pad, 4 * LANE)

    w_in, w_hid, bias = [], [], []
    for layer in lstm_layers:
        w_in.append(make_w(layer["w_ih"], KIN))
        w_hid.append(make_w(layer["w_hh"], HP))
        b = (layer["b_ih"] + layer["b_hh"]).astype(jnp.float32).reshape(4, H)
        b = b[gate_perm, :]
        bias.append(jnp.pad(b, ((0, 0), (0, LANE - H))).reshape(1, 4 * LANE))

    fcw = jnp.zeros((1, HP), jnp.float32).at[0, :H].set(
        params["fc_w"][0].astype(jnp.float32))
    fcb = params["fc_b"].astype(jnp.float32).reshape(1, 1)

    return {
        "w_in": jnp.stack(w_in),    # (L, KIN, 4*LANE)
        "w_hid": jnp.stack(w_hid),  # (L, HP,  4*LANE)
        "b": jnp.stack(bias),       # (L, 1,   4*LANE)
        "fc_w": fcw,                # (1, HP)
        "fc_b": fcb,                # (1, 1)
    }


# -----------------------------------------------------------------------------
# Forward pass (single pallas_call)
# -----------------------------------------------------------------------------
@jax.jit
def lstm_model_forward(x, prepared):
    """x: (B, T, input_size) -> (B, 1). Mirrors the PyTorch module forward."""
    B, T, In = x.shape
    KIN = prepared["w_in"].shape[1]
    x_flat = jnp.transpose(x, (1, 0, 2)).astype(jnp.float32).reshape(T * B, In)
    x_flat = jnp.pad(x_flat, ((0, 0), (0, KIN - In)))      # (T*B, KIN)

    out_pad = pl.pallas_call(
        _make_lstm_fc_kernel(T, B),
        out_shape=jax.ShapeDtypeStruct((B, LANE), jnp.float32),
        in_specs=[pl.BlockSpec(memory_space=pltpu.MemorySpace.VMEM)] * 6,
        out_specs=pl.BlockSpec(memory_space=pltpu.MemorySpace.VMEM),
        scratch_shapes=[pltpu.VMEM((T * B, KIN), jnp.float32)],
    )(x_flat, prepared["w_in"], prepared["w_hid"], prepared["b"],
      prepared["fc_w"], prepared["fc_b"])

    return out_pad[:, :1]  # (B, 1)


# -----------------------------------------------------------------------------
# Deterministic parameter init (PyTorch-style U(-1/sqrt(H), 1/sqrt(H)))
# -----------------------------------------------------------------------------
def init_params(key, input_size, hidden_size, num_layers):
    params = {"lstm": []}
    bound = 1.0 / jnp.sqrt(jnp.float32(hidden_size))
    for l in range(num_layers):
        in_sz = input_size if l == 0 else hidden_size
        key, k1, k2, k3, k4 = jax.random.split(key, 5)
        params["lstm"].append(
            {
                "w_ih": jax.random.uniform(
                    k1, (4 * hidden_size, in_sz), jnp.float32, -bound, bound
                ),
                "w_hh": jax.random.uniform(
                    k2, (4 * hidden_size, hidden_size), jnp.float32, -bound, bound
                ),
                "b_ih": jax.random.uniform(
                    k3, (4 * hidden_size,), jnp.float32, -bound, bound
                ),
                "b_hh": jax.random.uniform(
                    k4, (4 * hidden_size,), jnp.float32, -bound, bound
                ),
            }
        )
    key, k5, k6 = jax.random.split(key, 3)
    params["fc_w"] = jax.random.uniform(
        k5, (1, hidden_size), jnp.float32, -bound, bound
    )
    params["fc_b"] = jax.random.uniform(k6, (1,), jnp.float32, -bound, bound)
    return params


# -----------------------------------------------------------------------------
# Pure-JAX reference (for correctness check)
# -----------------------------------------------------------------------------
def lstm_model_reference(x, params):
    B = x.shape[0]
    h_seq = x.astype(jnp.float32)
    for layer in params["lstm"]:
        H = layer["w_hh"].shape[1]
        h = jnp.zeros((B, H), jnp.float32)
        c = jnp.zeros((B, H), jnp.float32)
        outs = []
        for t in range(h_seq.shape[1]):
            gates = (
                h_seq[:, t, :] @ layer["w_ih"].T
                + h @ layer["w_hh"].T
                + layer["b_ih"]
                + layer["b_hh"]
            )
            i, f, g, o = jnp.split(gates, 4, axis=-1)
            i, f, o = jax.nn.sigmoid(i), jax.nn.sigmoid(f), jax.nn.sigmoid(o)
            g = jnp.tanh(g)
            c = f * c + i * g
            h = o * jnp.tanh(c)
            outs.append(h)
        h_seq = jnp.stack(outs, axis=1)
    return h_seq[:, -1, :] @ params["fc_w"].T + params["fc_b"]


# -----------------------------------------------------------------------------
# Main
# -----------------------------------------------------------------------------
if __name__ == "__main__":
    batch, seq, input_size, hidden_size, num_layers = 2, 8, 4, 32, 2

    key = jax.random.PRNGKey(0)
    key, kx, kp = jax.random.split(key, 3)
    x = jax.random.normal(kx, (batch, seq, input_size), jnp.float32)
    params = init_params(kp, input_size, hidden_size, num_layers)

    prepared = prepare_params(params, input_size)   # hoisted weight prep (once)

    out = lstm_model_forward(x, prepared)
    out = jax.block_until_ready(out)

    ref = lstm_model_reference(x, params)
    assert out.shape == (batch, 1), out.shape
    assert jnp.allclose(out, ref, atol=1e-4, rtol=1e-4), (out, ref)

    print("KERNEL_OK")
</pallas_src>

<mosaic_0001>
module attributes {stable_mosaic.version = 11 : i64} {
  func.func @kernel(%arg0: memref<16x32xf32, #tpu.memory_space<vmem>>, %arg1: memref<2x32x512xf32, #tpu.memory_space<vmem>>, %arg2: memref<2x32x512xf32, #tpu.memory_space<vmem>>, %arg3: memref<2x1x512xf32, #tpu.memory_space<vmem>>, %arg4: memref<1x32xf32, #tpu.memory_space<vmem>>, %arg5: memref<1x1xf32, #tpu.memory_space<vmem>>, %arg6: memref<2x128xf32, #tpu.memory_space<vmem>>, %arg7: memref<16x32xf32, #tpu.memory_space<vmem>>) attributes {dimension_semantics = [], scalar_prefetch = 0 : i64, scratch_operands = 1 : i64, tpu.core_type = #tpu.core_type<tc>} {
    %cst = arith.constant 0.000000e+00 : f32
    %0 = vector.broadcast %cst : f32 to vector<16x32xf32>
    %c0 = arith.constant 0 : index
    %c0_0 = arith.constant 0 : index
    %1 = vector.load %arg7[%c0, %c0_0] : memref<16x32xf32, #tpu.memory_space<vmem>>, vector<16x32xf32>
    tpu.vector_store %arg7[%c0, %c0_0], %0 {strides = array<i32>} : memref<16x32xf32, #tpu.memory_space<vmem>>, vector<16x32xf32>,
    %c0_1 = arith.constant 0 : index
    %c0_2 = arith.constant 0 : index
    %2 = vector.load %arg0[%c0_1, %c0_2] : memref<16x32xf32, #tpu.memory_space<vmem>>, vector<16x32xf32>
    %c0_3 = arith.constant 0 : index
    %c0_4 = arith.constant 0 : index
    %c0_5 = arith.constant 0 : index
    %3 = vector.load %arg1[%c0_3, %c0_4, %c0_5] : memref<2x32x512xf32, #tpu.memory_space<vmem>>, vector<1x32x512xf32>
    %4 = vector.shape_cast %3 : vector<1x32x512xf32> to vector<32x512xf32>
    %cst_6 = arith.constant dense<0.000000e+00> : vector<16x512xf32>
    %5 = tpu.matmul %2, %4, %cst_6 {dimension_numbers = #tpu.dot_dimension_numbers<[1], [0], [0], [1], [0, 0, 1, 1], [], []>} : vector<16x32xf32>, vector<32x512xf32>, vector<16x512xf32> -> vector<16x512xf32>
    %c0_7 = arith.constant 0 : index
    %c0_8 = arith.constant 0 : index
    %c0_9 = arith.constant 0 : index
    %6 = vector.load %arg3[%c0_7, %c0_8, %c0_9] : memref<2x1x512xf32, #tpu.memory_space<vmem>>, vector<1x1x512xf32>
    %7 = vector.shape_cast %6 : vector<1x1x512xf32> to vector<1x512xf32>
    %8 = vector.broadcast %7 : vector<1x512xf32> to vector<16x512xf32>
    %9 = arith.addf %5, %8 : vector<16x512xf32>
    %c0_10 = arith.constant 0 : index
    %c0_11 = arith.constant 0 : index
    %c0_12 = arith.constant 0 : index
    %10 = vector.load %arg2[%c0_10, %c0_11, %c0_12] : memref<2x32x512xf32, #tpu.memory_space<vmem>>, vector<1x32x512xf32>
    %11 = vector.shape_cast %10 : vector<1x32x512xf32> to vector<32x512xf32>
    %cst_13 = arith.constant 0.000000e+00 : f32
    %12 = vector.broadcast %cst_13 : f32 to vector<2x32xf32>
    %cst_14 = arith.constant 0.000000e+00 : f32
    %13 = vector.broadcast %cst_14 : f32 to vector<2x32xf32>
    %14 = vector.extract_strided_slice %9 {offsets = [0, 0], sizes = [2, 512], strides = [1, 1]} : vector<16x512xf32> to vector<2x512xf32>
    %cst_15 = arith.constant dense<0.000000e+00> : vector<2x512xf32>
    %15 = tpu.matmul %12, %11, %cst_15 {dimension_numbers = #tpu.dot_dimension_numbers<[1], [0], [0], [1], [0, 0, 1, 1], [], []>} : vector<2x32xf32>, vector<32x512xf32>, vector<2x512xf32> -> vector<2x512xf32>
    %16 = arith.addf %14, %15 : vector<2x512xf32>
    %17 = vector.extract_strided_slice %16 {offsets = [0, 0], sizes = [2, 384], strides = [1, 1]} : vector<2x512xf32> to vector<2x384xf32>
    %18 = arith.negf %17 : vector<2x384xf32>
    %19 = math.exp %18 : vector<2x384xf32>
    %cst_16 = arith.constant 1.000000e+00 : f32
    %20 = vector.broadcast %cst_16 : f32 to vector<2x384xf32>
    %21 = arith.addf %20, %19 : vector<2x384xf32>
    %22 = arith.divf %20, %21 : vector<2x384xf32>
    %23 = vector.extract_strided_slice %22 {offsets = [0, 0], sizes = [2, 32], strides = [1, 1]} : vector<2x384xf32> to vector<2x32xf32>
    %24 = vector.extract_strided_slice %22 {offsets = [0, 128], sizes = [2, 32], strides = [1, 1]} : vector<2x384xf32> to vector<2x32xf32>
    %25 = vector.extract_strided_slice %22 {offsets = [0, 256], sizes = [2, 32], strides = [1, 1]} : vector<2x384xf32> to vector<2x32xf32>
    %26 = vector.extract_strided_slice %16 {offsets = [0, 384], sizes = [2, 32], strides = [1, 1]} : vector<2x512xf32> to vector<2x32xf32>
    %27 = math.tanh %26 : vector<2x32xf32>
    %28 = arith.mulf %24, %13 : vector<2x32xf32>
    %29 = arith.mulf %23, %27 : vector<2x32xf32>
    %30 = arith.addf %28, %29 : vector<2x32xf32>
    %31 = math.tanh %30 : vector<2x32xf32>
    %32 = arith.mulf %25, %31 : vector<2x32xf32>
    %c0_17 = arith.constant 0 : index
    %c0_18 = arith.constant 0 : index
    %33 = vector.load %arg7[%c0_17, %c0_18] : memref<16x32xf32, #tpu.memory_space<vmem>>, vector<2x32xf32>
    tpu.vector_store %arg7[%c0_17, %c0_18], %32 {strides = array<i32>} : memref<16x32xf32, #tpu.memory_space<vmem>>, vector<2x32xf32>,
    %34 = vector.extract_strided_slice %9 {offsets = [2, 0], sizes = [2, 512], strides = [1, 1]} : vector<16x512xf32> to vector<2x512xf32>
    %cst_19 = arith.constant dense<0.000000e+00> : vector<2x512xf32>
    %35 = tpu.matmul %32, %11, %cst_19 {dimension_numbers = #tpu.dot_dimension_numbers<[1], [0], [0], [1], [0, 0, 1, 1], [], []>} : vector<2x32xf32>, vector<32x512xf32>, vector<2x512xf32> -> vector<2x512xf32>
    %36 = arith.addf %34, %35 : vector<2x512xf32>
    %37 = vector.extract_strided_slice %36 {offsets = [0, 0], sizes = [2, 384], strides = [1, 1]} : vector<2x512xf32> to vector<2x384xf32>
    %38 = arith.negf %37 : vector<2x384xf32>
    %39 = math.exp %38 : vector<2x384xf32>
    %cst_20 = arith.constant 1.000000e+00 : f32
    %40 = vector.broadcast %cst_20 : f32 to vector<2x384xf32>
    %41 = arith.addf %40, %39 : vector<2x384xf32>
    %42 = arith.divf %40, %41 : vector<2x384xf32>
    %43 = vector.extract_strided_slice %42 {offsets = [0, 0], sizes = [2, 32], strides = [1, 1]} : vector<2x384xf32> to vector<2x32xf32>
    %44 = vector.extract_strided_slice %42 {offsets = [0, 128], sizes = [2, 32], strides = [1, 1]} : vector<2x384xf32> to vector<2x32xf32>
    %45 = vector.extract_strided_slice %42 {offsets = [0, 256], sizes = [2, 32], strides = [1, 1]} : vector<2x384xf32> to vector<2x32xf32>
    %46 = vector.extract_strided_slice %36 {offsets = [0, 384], sizes = [2, 32], strides = [1, 1]} : vector<2x512xf32> to vector<2x32xf32>
    %47 = math.tanh %46 : vector<2x32xf32>
    %48 = arith.mulf %44, %30 : vector<2x32xf32>
    %49 = arith.mulf %43, %47 : vector<2x32xf32>
    %50 = arith.addf %48, %49 : vector<2x32xf32>
    %51 = math.tanh %50 : vector<2x32xf32>
    %52 = arith.mulf %45, %51 : vector<2x32xf32>
    %c2 = arith.constant 2 : index
    %c0_21 = arith.constant 0 : index
    %53 = vector.load %arg7[%c2, %c0_21] : memref<16x32xf32, #tpu.memory_space<vmem>>, vector<2x32xf32>
    tpu.vector_store %arg7[%c2, %c0_21], %52 {strides = array<i32>} : memref<16x32xf32, #tpu.memory_space<vmem>>, vector<2x32xf32>,
    %54 = vector.extract_strided_slice %9 {offsets = [4, 0], sizes = [2, 512], strides = [1, 1]} : vector<16x512xf32> to vector<2x512xf32>
    %cst_22 = arith.constant dense<0.000000e+00> : vector<2x512xf32>
    %55 = tpu.matmul %52, %11, %cst_22 {dimension_numbers = #tpu.dot_dimension_numbers<[1], [0], [0], [1], [0, 0, 1, 1], [], []>} : vector<2x32xf32>, vector<32x512xf32>, vector<2x512xf32> -> vector<2x512xf32>
    %56 = arith.addf %54, %55 : vector<2x512xf32>
    %57 = vector.extract_strided_slice %56 {offsets = [0, 0], sizes = [2, 384], strides = [1, 1]} : vector<2x512xf32> to vector<2x384xf32>
    %58 = arith.negf %57 : vector<2x384xf32>
    %59 = math.exp %58 : vector<2x384xf32>
    %cst_23 = arith.constant 1.000000e+00 : f32
    %60 = vector.broadcast %cst_23 : f32 to vector<2x384xf32>
    %61 = arith.addf %60, %59 : vector<2x384xf32>
    %62 = arith.divf %60, %61 : vector<2x384xf32>
    %63 = vector.extract_strided_slice %62 {offsets = [0, 0], sizes = [2, 32], strides = [1, 1]} : vector<2x384xf32> to vector<2x32xf32>
    %64 = vector.extract_strided_slice %62 {offsets = [0, 128], sizes = [2, 32], strides = [1, 1]} : vector<2x384xf32> to vector<2x32xf32>
    %65 = vector.extract_strided_slice %62 {offsets = [0, 256], sizes = [2, 32], strides = [1, 1]} : vector<2x384xf32> to vector<2x32xf32>
    %66 = vector.extract_strided_slice %56 {offsets = [0, 384], sizes = [2, 32], strides = [1, 1]} : vector<2x512xf32> to vector<2x32xf32>
    %67 = math.tanh %66 : vector<2x32xf32>
    %68 = arith.mulf %64, %50 : vector<2x32xf32>
    %69 = arith.mulf %63, %67 : vector<2x32xf32>
    %70 = arith.addf %68, %69 : vector<2x32xf32>
    %71 = math.tanh %70 : vector<2x32xf32>
    %72 = arith.mulf %65, %71 : vector<2x32xf32>
    %c4 = arith.constant 4 : index
    %c0_24 = arith.constant 0 : index
    %73 = vector.load %arg7[%c4, %c0_24] : memref<16x32xf32, #tpu.memory_space<vmem>>, vector<2x32xf32>
    tpu.vector_store %arg7[%c4, %c0_24], %72 {strides = array<i32>} : memref<16x32xf32, #tpu.memory_space<vmem>>, vector<2x32xf32>,
    %74 = vector.extract_strided_slice %9 {offsets = [6, 0], sizes = [2, 512], strides = [1, 1]} : vector<16x512xf32> to vector<2x512xf32>
    %cst_25 = arith.constant dense<0.000000e+00> : vector<2x512xf32>
    %75 = tpu.matmul %72, %11, %cst_25 {dimension_numbers = #tpu.dot_dimension_numbers<[1], [0], [0], [1], [0, 0, 1, 1], [], []>} : vector<2x32xf32>, vector<32x512xf32>, vector<2x512xf32> -> vector<2x512xf32>
    %76 = arith.addf %74, %75 : vector<2x512xf32>
    %77 = vector.extract_strided_slice %76 {offsets = [0, 0], sizes = [2, 384], strides = [1, 1]} : vector<2x512xf32> to vector<2x384xf32>
    %78 = arith.negf %77 : vector<2x384xf32>
    %79 = math.exp %78 : vector<2x384xf32>
    %cst_26 = arith.constant 1.000000e+00 : f32
    %80 = vector.broadcast %cst_26 : f32 to vector<2x384xf32>
    %81 = arith.addf %80, %79 : vector<2x384xf32>
    %82 = arith.divf %80, %81 : vector<2x384xf32>
    %83 = vector.extract_strided_slice %82 {offsets = [0, 0], sizes = [2, 32], strides = [1, 1]} : vector<2x384xf32> to vector<2x32xf32>
    %84 = vector.extract_strided_slice %82 {offsets = [0, 128], sizes = [2, 32], strides = [1, 1]} : vector<2x384xf32> to vector<2x32xf32>
    %85 = vector.extract_strided_slice %82 {offsets = [0, 256], sizes = [2, 32], strides = [1, 1]} : vector<2x384xf32> to vector<2x32xf32>
    %86 = vector.extract_strided_slice %76 {offsets = [0, 384], sizes = [2, 32], strides = [1, 1]} : vector<2x512xf32> to vector<2x32xf32>
    %87 = math.tanh %86 : vector<2x32xf32>
    %88 = arith.mulf %84, %70 : vector<2x32xf32>
    %89 = arith.mulf %83, %87 : vector<2x32xf32>
    %90 = arith.addf %88, %89 : vector<2x32xf32>
    %91 = math.tanh %90 : vector<2x32xf32>
    %92 = arith.mulf %85, %91 : vector<2x32xf32>
    %c6 = arith.constant 6 : index
    %c0_27 = arith.constant 0 : index
    %93 = vector.load %arg7[%c6, %c0_27] : memref<16x32xf32, #tpu.memory_space<vmem>>, vector<2x32xf32>
    tpu.vector_store %arg7[%c6, %c0_27], %92 {strides = array<i32>} : memref<16x32xf32, #tpu.memory_space<vmem>>, vector<2x32xf32>,
    %94 = vector.extract_strided_slice %9 {offsets = [8, 0], sizes = [2, 512], strides = [1, 1]} : vector<16x512xf32> to vector<2x512xf32>
    %cst_28 = arith.constant dense<0.000000e+00> : vector<2x512xf32>
    %95 = tpu.matmul %92, %11, %cst_28 {dimension_numbers = #tpu.dot_dimension_numbers<[1], [0], [0], [1], [0, 0, 1, 1], [], []>} : vector<2x32xf32>, vector<32x512xf32>, vector<2x512xf32> -> vector<2x512xf32>
    %96 = arith.addf %94, %95 : vector<2x512xf32>
    %97 = vector.extract_strided_slice %96 {offsets = [0, 0], sizes = [2, 384], strides = [1, 1]} : vector<2x512xf32> to vector<2x384xf32>
    %98 = arith.negf %97 : vector<2x384xf32>
    %99 = math.exp %98 : vector<2x384xf32>
    %cst_29 = arith.constant 1.000000e+00 : f32
    %100 = vector.broadcast %cst_29 : f32 to vector<2x384xf32>
    %101 = arith.addf %100, %99 : vector<2x384xf32>
    %102 = arith.divf %100, %101 : vector<2x384xf32>
    %103 = vector.extract_strided_slice %102 {offsets = [0, 0], sizes = [2, 32], strides = [1, 1]} : vector<2x384xf32> to vector<2x32xf32>
    %104 = vector.extract_strided_slice %102 {offsets = [0, 128], sizes = [2, 32], strides = [1, 1]} : vector<2x384xf32> to vector<2x32xf32>
    %105 = vector.extract_strided_slice %102 {offsets = [0, 256], sizes = [2, 32], strides = [1, 1]} : vector<2x384xf32> to vector<2x32xf32>
    %106 = vector.extract_strided_slice %96 {offsets = [0, 384], sizes = [2, 32], strides = [1, 1]} : vector<2x512xf32> to vector<2x32xf32>
    %107 = math.tanh %106 : vector<2x32xf32>
    %108 = arith.mulf %104, %90 : vector<2x32xf32>
    %109 = arith.mulf %103, %107 : vector<2x32xf32>
    %110 = arith.addf %108, %109 : vector<2x32xf32>
    %111 = math.tanh %110 : vector<2x32xf32>
    %112 = arith.mulf %105, %111 : vector<2x32xf32>
    %c8 = arith.constant 8 : index
    %c0_30 = arith.constant 0 : index
    %113 = vector.load %arg7[%c8, %c0_30] : memref<16x32xf32, #tpu.memory_space<vmem>>, vector<2x32xf32>
    tpu.vector_store %arg7[%c8, %c0_30], %112 {strides = array<i32>} : memref<16x32xf32, #tpu.memory_space<vmem>>, vector<2x32xf32>,
    %114 = vector.extract_strided_slice %9 {offsets = [10, 0], sizes = [2, 512], strides = [1, 1]} : vector<16x512xf32> to vector<2x512xf32>
    %cst_31 = arith.constant dense<0.000000e+00> : vector<2x512xf32>
    %115 = tpu.matmul %112, %11, %cst_31 {dimension_numbers = #tpu.dot_dimension_numbers<[1], [0], [0], [1], [0, 0, 1, 1], [], []>} : vector<2x32xf32>, vector<32x512xf32>, vector<2x512xf32> -> vector<2x512xf32>
    %116 = arith.addf %114, %115 : vector<2x512xf32>
    %117 = vector.extract_strided_slice %116 {offsets = [0, 0], sizes = [2, 384], strides = [1, 1]} : vector<2x512xf32> to vector<2x384xf32>
    %118 = arith.negf %117 : vector<2x384xf32>
    %119 = math.exp %118 : vector<2x384xf32>
    %cst_32 = arith.constant 1.000000e+00 : f32
    %120 = vector.broadcast %cst_32 : f32 to vector<2x384xf32>
    %121 = arith.addf %120, %119 : vector<2x384xf32>
    %122 = arith.divf %120, %121 : vector<2x384xf32>
    %123 = vector.extract_strided_slice %122 {offsets = [0, 0], sizes = [2, 32], strides = [1, 1]} : vector<2x384xf32> to vector<2x32xf32>
    %124 = vector.extract_strided_slice %122 {offsets = [0, 128], sizes = [2, 32], strides = [1, 1]} : vector<2x384xf32> to vector<2x32xf32>
    %125 = vector.extract_strided_slice %122 {offsets = [0, 256], sizes = [2, 32], strides = [1, 1]} : vector<2x384xf32> to vector<2x32xf32>
    %126 = vector.extract_strided_slice %116 {offsets = [0, 384], sizes = [2, 32], strides = [1, 1]} : vector<2x512xf32> to vector<2x32xf32>
    %127 = math.tanh %126 : vector<2x32xf32>
    %128 = arith.mulf %124, %110 : vector<2x32xf32>
    %129 = arith.mulf %123, %127 : vector<2x32xf32>
    %130 = arith.addf %128, %129 : vector<2x32xf32>
    %131 = math.tanh %130 : vector<2x32xf32>
    %132 = arith.mulf %125, %131 : vector<2x32xf32>
    %c10 = arith.constant 10 : index
    %c0_33 = arith.constant 0 : index
    %133 = vector.load %arg7[%c10, %c0_33] : memref<16x32xf32, #tpu.memory_space<vmem>>, vector<2x32xf32>
    tpu.vector_store %arg7[%c10, %c0_33], %132 {strides = array<i32>} : memref<16x32xf32, #tpu.memory_space<vmem>>, vector<2x32xf32>,
    %134 = vector.extract_strided_slice %9 {offsets = [12, 0], sizes = [2, 512], strides = [1, 1]} : vector<16x512xf32> to vector<2x512xf32>
    %cst_34 = arith.constant dense<0.000000e+00> : vector<2x512xf32>
    %135 = tpu.matmul %132, %11, %cst_34 {dimension_numbers = #tpu.dot_dimension_numbers<[1], [0], [0], [1], [0, 0, 1, 1], [], []>} : vector<2x32xf32>, vector<32x512xf32>, vector<2x512xf32> -> vector<2x512xf32>
    %136 = arith.addf %134, %135 : vector<2x512xf32>
    %137 = vector.extract_strided_slice %136 {offsets = [0, 0], sizes = [2, 384], strides = [1, 1]} : vector<2x512xf32> to vector<2x384xf32>
    %138 = arith.negf %137 : vector<2x384xf32>
    %139 = math.exp %138 : vector<2x384xf32>
    %cst_35 = arith.constant 1.000000e+00 : f32
    %140 = vector.broadcast %cst_35 : f32 to vector<2x384xf32>
    %141 = arith.addf %140, %139 : vector<2x384xf32>
    %142 = arith.divf %140, %141 : vector<2x384xf32>
    %143 = vector.extract_strided_slice %142 {offsets = [0, 0], sizes = [2, 32], strides = [1, 1]} : vector<2x384xf32> to vector<2x32xf32>
    %144 = vector.extract_strided_slice %142 {offsets = [0, 128], sizes = [2, 32], strides = [1, 1]} : vector<2x384xf32> to vector<2x32xf32>
    %145 = vector.extract_strided_slice %142 {offsets = [0, 256], sizes = [2, 32], strides = [1, 1]} : vector<2x384xf32> to vector<2x32xf32>
    %146 = vector.extract_strided_slice %136 {offsets = [0, 384], sizes = [2, 32], strides = [1, 1]} : vector<2x512xf32> to vector<2x32xf32>
    %147 = math.tanh %146 : vector<2x32xf32>
    %148 = arith.mulf %144, %130 : vector<2x32xf32>
    %149 = arith.mulf %143, %147 : vector<2x32xf32>
    %150 = arith.addf %148, %149 : vector<2x32xf32>
    %151 = math.tanh %150 : vector<2x32xf32>
    %152 = arith.mulf %145, %151 : vector<2x32xf32>
    %c12 = arith.constant 12 : index
    %c0_36 = arith.constant 0 : index
    %153 = vector.load %arg7[%c12, %c0_36] : memref<16x32xf32, #tpu.memory_space<vmem>>, vector<2x32xf32>
    tpu.vector_store %arg7[%c12, %c0_36], %152 {strides = array<i32>} : memref<16x32xf32, #tpu.memory_space<vmem>>, vector<2x32xf32>,
    %154 = vector.extract_strided_slice %9 {offsets = [14, 0], sizes = [2, 512], strides = [1, 1]} : vector<16x512xf32> to vector<2x512xf32>
    %cst_37 = arith.constant dense<0.000000e+00> : vector<2x512xf32>
    %155 = tpu.matmul %152, %11, %cst_37 {dimension_numbers = #tpu.dot_dimension_numbers<[1], [0], [0], [1], [0, 0, 1, 1], [], []>} : vector<2x32xf32>, vector<32x512xf32>, vector<2x512xf32> -> vector<2x512xf32>
    %156 = arith.addf %154, %155 : vector<2x512xf32>
    %157 = vector.extract_strided_slice %156 {offsets = [0, 0], sizes = [2, 384], strides = [1, 1]} : vector<2x512xf32> to vector<2x384xf32>
    %158 = arith.negf %157 : vector<2x384xf32>
    %159 = math.exp %158 : vector<2x384xf32>
    %cst_38 = arith.constant 1.000000e+00 : f32
    %160 = vector.broadcast %cst_38 : f32 to vector<2x384xf32>
    %161 = arith.addf %160, %159 : vector<2x384xf32>
    %162 = arith.divf %160, %161 : vector<2x384xf32>
    %163 = vector.extract_strided_slice %162 {offsets = [0, 0], sizes = [2, 32], strides = [1, 1]} : vector<2x384xf32> to vector<2x32xf32>
    %164 = vector.extract_strided_slice %162 {offsets = [0, 128], sizes = [2, 32], strides = [1, 1]} : vector<2x384xf32> to vector<2x32xf32>
    %165 = vector.extract_strided_slice %162 {offsets = [0, 256], sizes = [2, 32], strides = [1, 1]} : vector<2x384xf32> to vector<2x32xf32>
    %166 = vector.extract_strided_slice %156 {offsets = [0, 384], sizes = [2, 32], strides = [1, 1]} : vector<2x512xf32> to vector<2x32xf32>
    %167 = math.tanh %166 : vector<2x32xf32>
    %168 = arith.mulf %164, %150 : vector<2x32xf32>
    %169 = arith.mulf %163, %167 : vector<2x32xf32>
    %170 = arith.addf %168, %169 : vector<2x32xf32>
    %171 = math.tanh %170 : vector<2x32xf32>
    %172 = arith.mulf %165, %171 : vector<2x32xf32>
    %c14 = arith.constant 14 : index
    %c0_39 = arith.constant 0 : index
    %173 = vector.load %arg7[%c14, %c0_39] : memref<16x32xf32, #tpu.memory_space<vmem>>, vector<2x32xf32>
    tpu.vector_store %arg7[%c14, %c0_39], %172 {strides = array<i32>} : memref<16x32xf32, #tpu.memory_space<vmem>>, vector<2x32xf32>,
    %c0_40 = arith.constant 0 : index
    %c0_41 = arith.constant 0 : index
    %174 = vector.load %arg7[%c0_40, %c0_41] : memref<16x32xf32, #tpu.memory_space<vmem>>, vector<16x32xf32>
    %c1 = arith.constant 1 : index
    %c0_42 = arith.constant 0 : index
    %c0_43 = arith.constant 0 : index
    %175 = vector.load %arg1[%c1, %c0_42, %c0_43] : memref<2x32x512xf32, #tpu.memory_space<vmem>>, vector<1x32x512xf32>
    %176 = vector.shape_cast %175 : vector<1x32x512xf32> to vector<32x512xf32>
    %cst_44 = arith.constant dense<0.000000e+00> : vector<16x512xf32>
    %177 = tpu.matmul %174, %176, %cst_44 {dimension_numbers = #tpu.dot_dimension_numbers<[1], [0], [0], [1], [0, 0, 1, 1], [], []>} : vector<16x32xf32>, vector<32x512xf32>, vector<16x512xf32> -> vector<16x512xf32>
    %c1_45 = arith.constant 1 : index
    %c0_46 = arith.constant 0 : index
    %c0_47 = arith.constant 0 : index
    %178 = vector.load %arg3[%c1_45, %c0_46, %c0_47] : memref<2x1x512xf32, #tpu.memory_space<vmem>>, vector<1x1x512xf32>
    %179 = vector.shape_cast %178 : vector<1x1x512xf32> to vector<1x512xf32>
    %180 = vector.broadcast %179 : vector<1x512xf32> to vector<16x512xf32>
    %181 = arith.addf %177, %180 : vector<16x512xf32>
    %c1_48 = arith.constant 1 : index
    %c0_49 = arith.constant 0 : index
    %c0_50 = arith.constant 0 : index
    %182 = vector.load %arg2[%c1_48, %c0_49, %c0_50] : memref<2x32x512xf32, #tpu.memory_space<vmem>>, vector<1x32x512xf32>
    %183 = vector.shape_cast %182 : vector<1x32x512xf32> to vector<32x512xf32>
    %cst_51 = arith.constant 0.000000e+00 : f32
    %184 = vector.broadcast %cst_51 : f32 to vector<2x32xf32>
    %cst_52 = arith.constant 0.000000e+00 : f32
    %185 = vector.broadcast %cst_52 : f32 to vector<2x32xf32>
    %186 = vector.extract_strided_slice %181 {offsets = [0, 0], sizes = [2, 512], strides = [1, 1]} : vector<16x512xf32> to vector<2x512xf32>
    %cst_53 = arith.constant dense<0.000000e+00> : vector<2x512xf32>
    %187 = tpu.matmul %184, %183, %cst_53 {dimension_numbers = #tpu.dot_dimension_numbers<[1], [0], [0], [1], [0, 0, 1, 1], [], []>} : vector<2x32xf32>, vector<32x512xf32>, vector<2x512xf32> -> vector<2x512xf32>
    %188 = arith.addf %186, %187 : vector<2x512xf32>
    %189 = vector.extract_strided_slice %188 {offsets = [0, 0], sizes = [2, 384], strides = [1, 1]} : vector<2x512xf32> to vector<2x384xf32>
    %190 = arith.negf %189 : vector<2x384xf32>
    %191 = math.exp %190 : vector<2x384xf32>
    %cst_54 = arith.constant 1.000000e+00 : f32
    %192 = vector.broadcast %cst_54 : f32 to vector<2x384xf32>
    %193 = arith.addf %192, %191 : vector<2x384xf32>
    %194 = arith.divf %192, %193 : vector<2x384xf32>
    %195 = vector.extract_strided_slice %194 {offsets = [0, 0], sizes = [2, 32], strides = [1, 1]} : vector<2x384xf32> to vector<2x32xf32>
    %196 = vector.extract_strided_slice %194 {offsets = [0, 128], sizes = [2, 32], strides = [1, 1]} : vector<2x384xf32> to vector<2x32xf32>
    %197 = vector.extract_strided_slice %194 {offsets = [0, 256], sizes = [2, 32], strides = [1, 1]} : vector<2x384xf32> to vector<2x32xf32>
    %198 = vector.extract_strided_slice %188 {offsets = [0, 384], sizes = [2, 32], strides = [1, 1]} : vector<2x512xf32> to vector<2x32xf32>
    %199 = math.tanh %198 : vector<2x32xf32>
    %200 = arith.mulf %196, %185 : vector<2x32xf32>
    %201 = arith.mulf %195, %199 : vector<2x32xf32>
    %202 = arith.addf %200, %201 : vector<2x32xf32>
    %203 = math.tanh %202 : vector<2x32xf32>
    %204 = arith.mulf %197, %203 : vector<2x32xf32>
    %205 = vector.extract_strided_slice %181 {offsets = [2, 0], sizes = [2, 512], strides = [1, 1]} : vector<16x512xf32> to vector<2x512xf32>
    %cst_55 = arith.constant dense<0.000000e+00> : vector<2x512xf32>
    %206 = tpu.matmul %204, %183, %cst_55 {dimension_numbers = #tpu.dot_dimension_numbers<[1], [0], [0], [1], [0, 0, 1, 1], [], []>} : vector<2x32xf32>, vector<32x512xf32>, vector<2x512xf32> -> vector<2x512xf32>
    %207 = arith.addf %205, %206 : vector<2x512xf32>
    %208 = vector.extract_strided_slice %207 {offsets = [0, 0], sizes = [2, 384], strides = [1, 1]} : vector<2x512xf32> to vector<2x384xf32>
    %209 = arith.negf %208 : vector<2x384xf32>
    %210 = math.exp %209 : vector<2x384xf32>
    %cst_56 = arith.constant 1.000000e+00 : f32
    %211 = vector.broadcast %cst_56 : f32 to vector<2x384xf32>
    %212 = arith.addf %211, %210 : vector<2x384xf32>
    %213 = arith.divf %211, %212 : vector<2x384xf32>
    %214 = vector.extract_strided_slice %213 {offsets = [0, 0], sizes = [2, 32], strides = [1, 1]} : vector<2x384xf32> to vector<2x32xf32>
    %215 = vector.extract_strided_slice %213 {offsets = [0, 128], sizes = [2, 32], strides = [1, 1]} : vector<2x384xf32> to vector<2x32xf32>
    %216 = vector.extract_strided_slice %213 {offsets = [0, 256], sizes = [2, 32], strides = [1, 1]} : vector<2x384xf32> to vector<2x32xf32>
    %217 = vector.extract_strided_slice %207 {offsets = [0, 384], sizes = [2, 32], strides = [1, 1]} : vector<2x512xf32> to vector<2x32xf32>
    %218 = math.tanh %217 : vector<2x32xf32>
    %219 = arith.mulf %215, %202 : vector<2x32xf32>
    %220 = arith.mulf %214, %218 : vector<2x32xf32>
    %221 = arith.addf %219, %220 : vector<2x32xf32>
    %222 = math.tanh %221 : vector<2x32xf32>
    %223 = arith.mulf %216, %222 : vector<2x32xf32>
    %224 = vector.extract_strided_slice %181 {offsets = [4, 0], sizes = [2, 512], strides = [1, 1]} : vector<16x512xf32> to vector<2x512xf32>
    %cst_57 = arith.constant dense<0.000000e+00> : vector<2x512xf32>
    %225 = tpu.matmul %223, %183, %cst_57 {dimension_numbers = #tpu.dot_dimension_numbers<[1], [0], [0], [1], [0, 0, 1, 1], [], []>} : vector<2x32xf32>, vector<32x512xf32>, vector<2x512xf32> -> vector<2x512xf32>
    %226 = arith.addf %224, %225 : vector<2x512xf32>
    %227 = vector.extract_strided_slice %226 {offsets = [0, 0], sizes = [2, 384], strides = [1, 1]} : vector<2x512xf32> to vector<2x384xf32>
    %228 = arith.negf %227 : vector<2x384xf32>
    %229 = math.exp %228 : vector<2x384xf32>
    %cst_58 = arith.constant 1.000000e+00 : f32
    %230 = vector.broadcast %cst_58 : f32 to vector<2x384xf32>
    %231 = arith.addf %230, %229 : vector<2x384xf32>
    %232 = arith.divf %230, %231 : vector<2x384xf32>
    %233 = vector.extract_strided_slice %232 {offsets = [0, 0], sizes = [2, 32], strides = [1, 1]} : vector<2x384xf32> to vector<2x32xf32>
    %234 = vector.extract_strided_slice %232 {offsets = [0, 128], sizes = [2, 32], strides = [1, 1]} : vector<2x384xf32> to vector<2x32xf32>
    %235 = vector.extract_strided_slice %232 {offsets = [0, 256], sizes = [2, 32], strides = [1, 1]} : vector<2x384xf32> to vector<2x32xf32>
    %236 = vector.extract_strided_slice %226 {offsets = [0, 384], sizes = [2, 32], strides = [1, 1]} : vector<2x512xf32> to vector<2x32xf32>
    %237 = math.tanh %236 : vector<2x32xf32>
    %238 = arith.mulf %234, %221 : vector<2x32xf32>
    %239 = arith.mulf %233, %237 : vector<2x32xf32>
    %240 = arith.addf %238, %239 : vector<2x32xf32>
    %241 = math.tanh %240 : vector<2x32xf32>
    %242 = arith.mulf %235, %241 : vector<2x32xf32>
    %243 = vector.extract_strided_slice %181 {offsets = [6, 0], sizes = [2, 512], strides = [1, 1]} : vector<16x512xf32> to vector<2x512xf32>
    %cst_59 = arith.constant dense<0.000000e+00> : vector<2x512xf32>
    %244 = tpu.matmul %242, %183, %cst_59 {dimension_numbers = #tpu.dot_dimension_numbers<[1], [0], [0], [1], [0, 0, 1, 1], [], []>} : vector<2x32xf32>, vector<32x512xf32>, vector<2x512xf32> -> vector<2x512xf32>
    %245 = arith.addf %243, %244 : vector<2x512xf32>
    %246 = vector.extract_strided_slice %245 {offsets = [0, 0], sizes = [2, 384], strides = [1, 1]} : vector<2x512xf32> to vector<2x384xf32>
    %247 = arith.negf %246 : vector<2x384xf32>
    %248 = math.exp %247 : vector<2x384xf32>
    %cst_60 = arith.constant 1.000000e+00 : f32
    %249 = vector.broadcast %cst_60 : f32 to vector<2x384xf32>
    %250 = arith.addf %249, %248 : vector<2x384xf32>
    %251 = arith.divf %249, %250 : vector<2x384xf32>
    %252 = vector.extract_strided_slice %251 {offsets = [0, 0], sizes = [2, 32], strides = [1, 1]} : vector<2x384xf32> to vector<2x32xf32>
    %253 = vector.extract_strided_slice %251 {offsets = [0, 128], sizes = [2, 32], strides = [1, 1]} : vector<2x384xf32> to vector<2x32xf32>
    %254 = vector.extract_strided_slice %251 {offsets = [0, 256], sizes = [2, 32], strides = [1, 1]} : vector<2x384xf32> to vector<2x32xf32>
    %255 = vector.extract_strided_slice %245 {offsets = [0, 384], sizes = [2, 32], strides = [1, 1]} : vector<2x512xf32> to vector<2x32xf32>
    %256 = math.tanh %255 : vector<2x32xf32>
    %257 = arith.mulf %253, %240 : vector<2x32xf32>
    %258 = arith.mulf %252, %256 : vector<2x32xf32>
    %259 = arith.addf %257, %258 : vector<2x32xf32>
    %260 = math.tanh %259 : vector<2x32xf32>
    %261 = arith.mulf %254, %260 : vector<2x32xf32>
    %262 = vector.extract_strided_slice %181 {offsets = [8, 0], sizes = [2, 512], strides = [1, 1]} : vector<16x512xf32> to vector<2x512xf32>
    %cst_61 = arith.constant dense<0.000000e+00> : vector<2x512xf32>
    %263 = tpu.matmul %261, %183, %cst_61 {dimension_numbers = #tpu.dot_dimension_numbers<[1], [0], [0], [1], [0, 0, 1, 1], [], []>} : vector<2x32xf32>, vector<32x512xf32>, vector<2x512xf32> -> vector<2x512xf32>
    %264 = arith.addf %262, %263 : vector<2x512xf32>
    %265 = vector.extract_strided_slice %264 {offsets = [0, 0], sizes = [2, 384], strides = [1, 1]} : vector<2x512xf32> to vector<2x384xf32>
    %266 = arith.negf %265 : vector<2x384xf32>
    %267 = math.exp %266 : vector<2x384xf32>
    %cst_62 = arith.constant 1.000000e+00 : f32
    %268 = vector.broadcast %cst_62 : f32 to vector<2x384xf32>
    %269 = arith.addf %268, %267 : vector<2x384xf32>
    %270 = arith.divf %268, %269 : vector<2x384xf32>
    %271 = vector.extract_strided_slice %270 {offsets = [0, 0], sizes = [2, 32], strides = [1, 1]} : vector<2x384xf32> to vector<2x32xf32>
    %272 = vector.extract_strided_slice %270 {offsets = [0, 128], sizes = [2, 32], strides = [1, 1]} : vector<2x384xf32> to vector<2x32xf32>
    %273 = vector.extract_strided_slice %270 {offsets = [0, 256], sizes = [2, 32], strides = [1, 1]} : vector<2x384xf32> to vector<2x32xf32>
    %274 = vector.extract_strided_slice %264 {offsets = [0, 384], sizes = [2, 32], strides = [1, 1]} : vector<2x512xf32> to vector<2x32xf32>
    %275 = math.tanh %274 : vector<2x32xf32>
    %276 = arith.mulf %272, %259 : vector<2x32xf32>
    %277 = arith.mulf %271, %275 : vector<2x32xf32>
    %278 = arith.addf %276, %277 : vector<2x32xf32>
    %279 = math.tanh %278 : vector<2x32xf32>
    %280 = arith.mulf %273, %279 : vector<2x32xf32>
    %281 = vector.extract_strided_slice %181 {offsets = [10, 0], sizes = [2, 512], strides = [1, 1]} : vector<16x512xf32> to vector<2x512xf32>
    %cst_63 = arith.constant dense<0.000000e+00> : vector<2x512xf32>
    %282 = tpu.matmul %280, %183, %cst_63 {dimension_numbers = #tpu.dot_dimension_numbers<[1], [0], [0], [1], [0, 0, 1, 1], [], []>} : vector<2x32xf32>, vector<32x512xf32>, vector<2x512xf32> -> vector<2x512xf32>
    %283 = arith.addf %281, %282 : vector<2x512xf32>
    %284 = vector.extract_strided_slice %283 {offsets = [0, 0], sizes = [2, 384], strides = [1, 1]} : vector<2x512xf32> to vector<2x384xf32>
    %285 = arith.negf %284 : vector<2x384xf32>
    %286 = math.exp %285 : vector<2x384xf32>
    %cst_64 = arith.constant 1.000000e+00 : f32
    %287 = vector.broadcast %cst_64 : f32 to vector<2x384xf32>
    %288 = arith.addf %287, %286 : vector<2x384xf32>
    %289 = arith.divf %287, %288 : vector<2x384xf32>
    %290 = vector.extract_strided_slice %289 {offsets = [0, 0], sizes = [2, 32], strides = [1, 1]} : vector<2x384xf32> to vector<2x32xf32>
    %291 = vector.extract_strided_slice %289 {offsets = [0, 128], sizes = [2, 32], strides = [1, 1]} : vector<2x384xf32> to vector<2x32xf32>
    %292 = vector.extract_strided_slice %289 {offsets = [0, 256], sizes = [2, 32], strides = [1, 1]} : vector<2x384xf32> to vector<2x32xf32>
    %293 = vector.extract_strided_slice %283 {offsets = [0, 384], sizes = [2, 32], strides = [1, 1]} : vector<2x512xf32> to vector<2x32xf32>
    %294 = math.tanh %293 : vector<2x32xf32>
    %295 = arith.mulf %291, %278 : vector<2x32xf32>
    %296 = arith.mulf %290, %294 : vector<2x32xf32>
    %297 = arith.addf %295, %296 : vector<2x32xf32>
    %298 = math.tanh %297 : vector<2x32xf32>
    %299 = arith.mulf %292, %298 : vector<2x32xf32>
    %300 = vector.extract_strided_slice %181 {offsets = [12, 0], sizes = [2, 512], strides = [1, 1]} : vector<16x512xf32> to vector<2x512xf32>
    %cst_65 = arith.constant dense<0.000000e+00> : vector<2x512xf32>
    %301 = tpu.matmul %299, %183, %cst_65 {dimension_numbers = #tpu.dot_dimension_numbers<[1], [0], [0], [1], [0, 0, 1, 1], [], []>} : vector<2x32xf32>, vector<32x512xf32>, vector<2x512xf32> -> vector<2x512xf32>
    %302 = arith.addf %300, %301 : vector<2x512xf32>
    %303 = vector.extract_strided_slice %302 {offsets = [0, 0], sizes = [2, 384], strides = [1, 1]} : vector<2x512xf32> to vector<2x384xf32>
    %304 = arith.negf %303 : vector<2x384xf32>
    %305 = math.exp %304 : vector<2x384xf32>
    %cst_66 = arith.constant 1.000000e+00 : f32
    %306 = vector.broadcast %cst_66 : f32 to vector<2x384xf32>
    %307 = arith.addf %306, %305 : vector<2x384xf32>
    %308 = arith.divf %306, %307 : vector<2x384xf32>
    %309 = vector.extract_strided_slice %308 {offsets = [0, 0], sizes = [2, 32], strides = [1, 1]} : vector<2x384xf32> to vector<2x32xf32>
    %310 = vector.extract_strided_slice %308 {offsets = [0, 128], sizes = [2, 32], strides = [1, 1]} : vector<2x384xf32> to vector<2x32xf32>
    %311 = vector.extract_strided_slice %308 {offsets = [0, 256], sizes = [2, 32], strides = [1, 1]} : vector<2x384xf32> to vector<2x32xf32>
    %312 = vector.extract_strided_slice %302 {offsets = [0, 384], sizes = [2, 32], strides = [1, 1]} : vector<2x512xf32> to vector<2x32xf32>
    %313 = math.tanh %312 : vector<2x32xf32>
    %314 = arith.mulf %310, %297 : vector<2x32xf32>
    %315 = arith.mulf %309, %313 : vector<2x32xf32>
    %316 = arith.addf %314, %315 : vector<2x32xf32>
    %317 = math.tanh %316 : vector<2x32xf32>
    %318 = arith.mulf %311, %317 : vector<2x32xf32>
    %319 = vector.extract_strided_slice %181 {offsets = [14, 0], sizes = [2, 512], strides = [1, 1]} : vector<16x512xf32> to vector<2x512xf32>
    %cst_67 = arith.constant dense<0.000000e+00> : vector<2x512xf32>
    %320 = tpu.matmul %318, %183, %cst_67 {dimension_numbers = #tpu.dot_dimension_numbers<[1], [0], [0], [1], [0, 0, 1, 1], [], []>} : vector<2x32xf32>, vector<32x512xf32>, vector<2x512xf32> -> vector<2x512xf32>
    %321 = arith.addf %319, %320 : vector<2x512xf32>
    %322 = vector.extract_strided_slice %321 {offsets = [0, 0], sizes = [2, 384], strides = [1, 1]} : vector<2x512xf32> to vector<2x384xf32>
    %323 = arith.negf %322 : vector<2x384xf32>
    %324 = math.exp %323 : vector<2x384xf32>
    %cst_68 = arith.constant 1.000000e+00 : f32
    %325 = vector.broadcast %cst_68 : f32 to vector<2x384xf32>
    %326 = arith.addf %325, %324 : vector<2x384xf32>
    %327 = arith.divf %325, %326 : vector<2x384xf32>
    %328 = vector.extract_strided_slice %327 {offsets = [0, 0], sizes = [2, 32], strides = [1, 1]} : vector<2x384xf32> to vector<2x32xf32>
    %329 = vector.extract_strided_slice %327 {offsets = [0, 128], sizes = [2, 32], strides = [1, 1]} : vector<2x384xf32> to vector<2x32xf32>
    %330 = vector.extract_strided_slice %327 {offsets = [0, 256], sizes = [2, 32], strides = [1, 1]} : vector<2x384xf32> to vector<2x32xf32>
    %331 = vector.extract_strided_slice %321 {offsets = [0, 384], sizes = [2, 32], strides = [1, 1]} : vector<2x512xf32> to vector<2x32xf32>
    %332 = math.tanh %331 : vector<2x32xf32>
    %333 = arith.mulf %329, %316 : vector<2x32xf32>
    %334 = arith.mulf %328, %332 : vector<2x32xf32>
    %335 = arith.addf %333, %334 : vector<2x32xf32>
    %336 = math.tanh %335 : vector<2x32xf32>
    %337 = arith.mulf %330, %336 : vector<2x32xf32>
    %c0_69 = arith.constant 0 : index
    %c0_70 = arith.constant 0 : index
    %338 = vector.load %arg4[%c0_69, %c0_70] : memref<1x32xf32, #tpu.memory_space<vmem>>, vector<1x32xf32>
    %339 = vector.broadcast %338 : vector<1x32xf32> to vector<2x32xf32>
    %340 = arith.mulf %337, %339 : vector<2x32xf32>
    %cst_71 = arith.constant dense<0.000000e+00> : vector<2xf32>
    %341 = vector.multi_reduction <add>, %340, %cst_71 [1] : vector<2x32xf32> to vector<2xf32>
    %342 = vector.shape_cast %341 : vector<2xf32> to vector<2x1xf32>
    %c0_72 = arith.constant 0 : index
    %c0_73 = arith.constant 0 : index
    %343 = vector.load %arg5[%c0_72, %c0_73] : memref<1x1xf32, #tpu.memory_space<vmem>>, vector<1x1xf32>
    %344 = vector.broadcast %343 : vector<1x1xf32> to vector<2x1xf32>
    %345 = arith.addf %342, %344 : vector<2x1xf32>
    %346 = vector.shape_cast %345 : vector<2x1xf32> to vector<2x1xf32>
    %347 = vector.broadcast %346 : vector<2x1xf32> to vector<2x128xf32>
    %c0_74 = arith.constant 0 : index
    %c0_75 = arith.constant 0 : index
    %348 = vector.load %arg6[%c0_74, %c0_75] : memref<2x128xf32, #tpu.memory_space<vmem>>, vector<2x128xf32>
    tpu.vector_store %arg6[%c0_74, %c0_75], %347 {strides = array<i32>} : memref<2x128xf32, #tpu.memory_space<vmem>>, vector<2x128xf32>,
    return
  }
}

</mosaic_0001>

<llo_original>
// kernel: lstm_model_forward.1
$region0: #{lstm_model_forward.1}
  #allocation0 [shape = 'u32[]', space=smem, size = 0x4, offset = 0x4, fixed_abs, tag = 'smem constant byte address 0x4 - core index']
  #allocation1 [shape = 'u32[144,128]{1,0:T(1,128)}', space=vmem, size = 0x12000, scoped, tag = 'internal scratch']
  #allocation2 [shape = 'f32[16,32]{1,0:T(8,128)}', space=vmem, size = 0x2000, scoped, tag = 'scratch operand']
  #allocation3 [shape = 'f32[1,1]{1,0:T(1,128)S(1)}', space=vmem, size = 0x200, scoped, tag = 'scoped memory for lstm_model_forward.1']
  %s0 = inlined_call_operand.vmem [shape: f32[16,32], index: 0, kind: input, shape index: {}]
  %s1 = inlined_call_operand.hbm [shape: f32[2,32,512], index: 1, kind: input, shape index: {}]
  %s2 = inlined_call_operand.hbm [shape: f32[2,32,512], index: 2, kind: input, shape index: {}]
  %s3 = inlined_call_operand.vmem [shape: f32[2,1,512], index: 3, kind: input, shape index: {}]
  %s4 = inlined_call_operand.vmem [shape: f32[1,32], index: 4, kind: input, shape index: {}]
  %s5 = inlined_call_operand.<no memory space> [shape: f32[1,1], index: 5, kind: input, shape index: {}]
  %s6 = inlined_call_operand.vmem [shape: f32[2,128], index: 6, kind: output, shape index: {}]
  %s7 = sld [smem:[#allocation0]]
  $region42: #{lstm_model_forward.1} parent=0
    _
  %s9 = ssub.s32 1, %s7
  %s10 = scalar_select 0, %s9, %s7
  %v11 = vstv %s5
  %12 = vst [vmem:[#allocation3] sm:$0x1] %v11
  $region1: #{lstm_model_forward.1} parent=0
    #allocation4 [shape = 'u8[131072]{0}', space=vmem, size = 0x20000, scoped, tag = 'input window, operand 1, single buffered']
    #allocation5 [shape = 's32[1]{0}', space=sflag, size = 0x4, scoped, tag = 'scoped memory for lstm_model_forward.1']
    #allocation6 [shape = 'u8[131072]{0}', space=vmem, size = 0x20000, scoped, tag = 'input window, operand 2, single buffered']
    #allocation7 [shape = 's32[1]{0}', space=sflag, size = 0x4, scoped, tag = 'scoped memory for lstm_model_forward.1']
    %13 = vsyncpa [#allocation5], 0
    %14 = vsyncpa [#allocation7], 0
    // Predicated region
    $region2: #{lstm_model_forward.1} parent=1 // pred_check
      _
    $region3: #{lstm_model_forward.1} parent=1 // pred_check_branch
      %16 = sbr.rel (0) target = $region5
    $region4: #{lstm_model_forward.1} parent=1 // pred_region
      _
    $region5: #{lstm_model_forward.1} parent=1 // pred_fallthru
      _
    // Predicated region
    $region6: #{lstm_model_forward.1} parent=1 // pred_check
      _
    $region7: #{lstm_model_forward.1} parent=1 // pred_check_branch
      %18 = sbr.rel (0) target = $region9
    $region8: #{lstm_model_forward.1} parent=1 // pred_region
      %s20 = ssub.s32 4096, 4096
      %21 = vsyncadd [#allocation5], %s20
      %s22 = sshll.u32 [#allocation4], 4
      %s23 = int_to_ptr.vmem [resolvable:$true] %s22
      %28 = dma.hbm_to_vmem [thread:$0]  %s1, 4096, %s23, [#allocation5], 512, 512, 32
    $region9: #{lstm_model_forward.1} parent=1 // pred_fallthru
      _
    // Predicated region
    $region10: #{lstm_model_forward.1} parent=1 // pred_check
      _
    $region11: #{lstm_model_forward.1} parent=1 // pred_check_branch
      %30 = sbr.rel (0) target = $region13
    $region12: #{lstm_model_forward.1} parent=1 // pred_region
      %s32 = ssub.s32 4096, 4096
      %33 = vsyncadd [#allocation7], %s32
      %s34 = sshll.u32 [#allocation6], 4
      %s35 = int_to_ptr.vmem [resolvable:$true] %s34
      %40 = dma.hbm_to_vmem [thread:$0]  %s2, 4096, %s35, [#allocation7], 512, 512, 32
    $region13: #{lstm_model_forward.1} parent=1 // pred_fallthru
      _
    // Predicated region
    $region14: #{lstm_model_forward.1} parent=1 // pred_check
      _
    $region15: #{lstm_model_forward.1} parent=1 // pred_check_branch
      %42 = sbr.rel (0) target = $region17
    $region16: #{lstm_model_forward.1} parent=1 // pred_region
      _
    $region17: #{lstm_model_forward.1} parent=1 // pred_fallthru
      _
    // Predicated region
    $region18: #{lstm_model_forward.1} parent=1 // pred_check
      _
    $region19: #{lstm_model_forward.1} parent=1 // pred_check_branch
      %44 = sbr.rel (0) target = $region21
    $region20: #{lstm_model_forward.1} parent=1 // pred_region
      _
    $region21: #{lstm_model_forward.1} parent=1 // pred_fallthru
      _
    // Predicated region
    $region22: #{lstm_model_forward.1} parent=1 // pred_check
      _
    $region23: #{lstm_model_forward.1} parent=1 // pred_check_branch
      %46 = sbr.rel (0) target = $region25
    $region24: #{lstm_model_forward.1} parent=1 // pred_region
      _
    $region25: #{lstm_model_forward.1} parent=1 // pred_fallthru
      _
    // Predicated region
    $region26: #{lstm_model_forward.1} parent=1 // pred_check
      _
    $region27: #{lstm_model_forward.1} parent=1 // pred_check_branch
      %48 = sbr.rel (0) target = $region29
    $region28: #{lstm_model_forward.1} parent=1 // pred_region
      %49 = dma.done [#allocation5], 4096
    $region29: #{lstm_model_forward.1} parent=1 // pred_fallthru
      _
    // Predicated region
    $region30: #{lstm_model_forward.1} parent=1 // pred_check
      _
    $region31: #{lstm_model_forward.1} parent=1 // pred_check_branch
      %51 = sbr.rel (0) target = $region33
    $region32: #{lstm_model_forward.1} parent=1 // pred_region
      %52 = dma.done [#allocation7], 4096
    $region33: #{lstm_model_forward.1} parent=1 // pred_fallthru
      _
    %vm53 = vcmask 261120
    %54 = vst.msk [vmem:[#allocation2] sm:$0xff] %vm53, 0.0
    %55 = vst.msk [vmem:[#allocation2 + $0x8] sm:$0xff] %vm53, 0.0
    %v56 = vld [vmem:[%s0] sm:$0xff]
    %v57 = vld [vmem:[%s0 + $0x8] sm:$0xff]
    %v58 = vld [vmem:[#allocation4] sm:$0xff]
    %v59 = vld [vmem:[#allocation4 + $0x8] sm:$0xff]
    %v60 = vld [vmem:[#allocation4 + $0x10] sm:$0xff]
    %v61 = vld [vmem:[#allocation4 + $0x18] sm:$0xff]
    %v62 = vld [vmem:[#allocation4 + $0x20] sm:$0xff]
    %v63 = vld [vmem:[#allocation4 + $0x28] sm:$0xff]
    %v64 = vld [vmem:[#allocation4 + $0x30] sm:$0xff]
    %v65 = vld [vmem:[#allocation4 + $0x38] sm:$0xff]
    %v66 = vld [vmem:[#allocation4 + $0x40] sm:$0xff]
    %v67 = vld [vmem:[#allocation4 + $0x48] sm:$0xff]
    %v68 = vld [vmem:[#allocation4 + $0x50] sm:$0xff]
    %v69 = vld [vmem:[#allocation4 + $0x58] sm:$0xff]
    %v70 = vld [vmem:[#allocation4 + $0x60] sm:$0xff]
    %v71 = vld [vmem:[#allocation4 + $0x68] sm:$0xff]
    %v72 = vld [vmem:[#allocation4 + $0x70] sm:$0xff]
    %v73 = vld [vmem:[#allocation4 + $0x78] sm:$0xff]
    %v74 = vld [vmem:[%s3] sm:$0xf]
    %v76 = vlaneseq
    %v77 = vshrl.u32 %v76, 7
    %v78 = vsub.s32 0, %v77
    %v79 = vrot.slane %v74, %v78
    %v80 = vlaneseq
    %v81 = vshrl.u32 %v80, 7
    %v82 = vsub.s32 1, %v81
    %v83 = vrot.slane %v74, %v82
    %v84 = vlaneseq
    %v85 = vshrl.u32 %v84, 7
    %v86 = vsub.s32 2, %v85
    %v87 = vrot.slane %v74, %v86
    %v88 = vlaneseq
    %v89 = vshrl.u32 %v88, 7
    %v90 = vsub.s32 3, %v89
    %v91 = vrot.slane %v74, %v90
    %v97 = vsel %vm53, %v56, 0
    %v100 = vsel %vm53, %v57, 0
    %102 = vmatprep.subr.mxu0 0.0
    %103 = vmatpush1.msra.mxu0 0.0
    %104 = vmatprep.subr.mxu0 0.0
    %105 = vmatpush1.msra.mxu0 0.0
    %106 = vmatprep.subr.mxu0 0.0
    %107 = vmatpush1.msra.mxu0 0.0
    %108 = vmatprep.subr.mxu0 0.0
    %109 = vmatpush1.msra.mxu0 0.0
    %110 = vmatprep.subr.mxu0 0.0
    %111 = vmatpush1.msra.mxu0 0.0
    %112 = vmatprep.subr.mxu0 0.0
    %113 = vmatpush1.msra.mxu0 0.0
    %114 = vmatprep.subr.mxu0 0.0
    %115 = vmatpush1.msra.mxu0 0.0
    %116 = vmatprep.subr.mxu0 0.0
    %117 = vmatpush1.msra.mxu0 0.0
    %118 = vmatprep.subr.mxu0 0.0
    %119 = vmatpush1.msra.mxu0 0.0
    %120 = vmatprep.subr.mxu0 0.0
    %121 = vmatpush1.msra.mxu0 0.0
    %122 = vmatprep.subr.mxu0 0.0
    %123 = vmatpush1.msra.mxu0 0.0
    %124 = vmatprep.subr.mxu0 0.0
    %125 = vmatpush1.msra.mxu0 0.0
    %126 = vmatprep.subr.mxu0 %v71
    %127 = vmatpush1.msra.mxu0 %v70
    %128 = vmatprep.subr.mxu0 %v67
    %129 = vmatpush1.msra.mxu0 %v66
    %130 = vmatprep.subr.mxu0 %v63
    %131 = vmatpush1.msra.mxu0 %v62
    %132 = vmatprep.subr.mxu0 %v59
    %133 = vmatpush1.msra.mxu0 %v58
    %134 = vmatprep.subr.mxu0 0.0
    %135 = vmatpush2.msra.mxu0 0.0
    %136 = vmatprep.subr.mxu0 0.0
    %137 = vmatpush2.msra.mxu0 0.0
    %138 = vmatprep.subr.mxu0 0.0
    %139 = vmatpush2.msra.mxu0 0.0
    %140 = vmatprep.subr.mxu0 0.0
    %141 = vmatpush2.msra.mxu0 0.0
    %142 = vmatprep.subr.mxu0 0.0
    %143 = vmatpush2.msra.mxu0 0.0
    %144 = vmatprep.subr.mxu0 0.0
    %145 = vmatpush2.msra.mxu0 0.0
    %146 = vmatprep.subr.mxu0 0.0
    %147 = vmatpush2.msra.mxu0 0.0
    %148 = vmatprep.subr.mxu0 0.0
    %149 = vmatpush2.msra.mxu0 0.0
    %150 = vmatprep.subr.mxu0 0.0
    %151 = vmatpush2.msra.mxu0 0.0
    %152 = vmatprep.subr.mxu0 0.0
    %153 = vmatpush2.msra.mxu0 0.0
    %154 = vmatprep.subr.mxu0 0.0
    %155 = vmatpush2.msra.mxu0 0.0
    %156 = vmatprep.subr.mxu0 0.0
    %157 = vmatpush2.msra.mxu0 0.0
    %158 = vmatprep.subr.mxu0 0.0
    %159 = vmatpush2.msra.mxu0 0.0
    %160 = vmatprep.subr.mxu0 0.0
    %161 = vmatpush2.msra.mxu0 0.0
    %162 = vmatprep.subr.mxu0 0.0
    %163 = vmatpush2.msra.mxu0 0.0
    %164 = vmatprep.subr.mxu0 0.0
    %165 = vmatpush2.msra.mxu0 0.0
    %166 = vmatprep.mubr.f32.mxu0 0.0
    %167 = vmatmul.mubr.f32.gmra.mxu0 %v97
    %v168 = vpop.f32.mrf.mxu0
    %v169 = vadd.f32 %v79, %v168
    %v170 = vpop.f32.mrf.mxu0
    %v171 = vadd.f32 %v83, %v170
    %172 = vmatprep.mubr.f32.mxu0 0.0
    %173 = vmatmul.mubr.f32.gmra.mxu0 %v100
    %v174 = vpop.f32.mrf.mxu0
    %v175 = vadd.f32 %v79, %v174
    %v176 = vpop.f32.mrf.mxu0
    %v177 = vadd.f32 %v83, %v176
    %178 = vdwg.mxu0
    %179 = vmatprep.subr.mxu0 0.0
    %180 = vmatpush1.msra.mxu0 0.0
    %181 = vmatprep.subr.mxu0 0.0
    %182 = vmatpush1.msra.mxu0 0.0
    %183 = vmatprep.subr.mxu0 0.0
    %184 = vmatpush1.msra.mxu0 0.0
    %185 = vmatprep.subr.mxu0 0.0
    %186 = vmatpush1.msra.mxu0 0.0
    %187 = vmatprep.subr.mxu0 0.0
    %188 = vmatpush1.msra.mxu0 0.0
    %189 = vmatprep.subr.mxu0 0.0
    %190 = vmatpush1.msra.mxu0 0.0
    %191 = vmatprep.subr.mxu0 0.0
    %192 = vmatpush1.msra.mxu0 0.0
    %193 = vmatprep.subr.mxu0 0.0
    %194 = vmatpush1.msra.mxu0 0.0
    %195 = vmatprep.subr.mxu0 0.0
    %196 = vmatpush1.msra.mxu0 0.0
    %197 = vmatprep.subr.mxu0 0.0
    %198 = vmatpush1.msra.mxu0 0.0
    %199 = vmatprep.subr.mxu0 0.0
    %200 = vmatpush1.msra.mxu0 0.0
    %201 = vmatprep.subr.mxu0 0.0
    %202 = vmatpush1.msra.mxu0 0.0
    %203 = vmatprep.subr.mxu0 %v73
    %204 = vmatpush1.msra.mxu0 %v72
    %205 = vmatprep.subr.mxu0 %v69
    %206 = vmatpush1.msra.mxu0 %v68
    %207 = vmatprep.subr.mxu0 %v65
    %208 = vmatpush1.msra.mxu0 %v64
    %209 = vmatprep.subr.mxu0 %v61
    %210 = vmatpush1.msra.mxu0 %v60
    %211 = vmatprep.subr.mxu0 0.0
    %212 = vmatpush2.msra.mxu0 0.0
    %213 = vmatprep.subr.mxu0 0.0
    %214 = vmatpush2.msra.mxu0 0.0
    %215 = vmatprep.subr.mxu0 0.0
    %216 = vmatpush2.msra.mxu0 0.0
    %217 = vmatprep.subr.mxu0 0.0
    %218 = vmatpush2.msra.mxu0 0.0
    %219 = vmatprep.subr.mxu0 0.0
    %220 = vmatpush2.msra.mxu0 0.0
    %221 = vmatprep.subr.mxu0 0.0
    %222 = vmatpush2.msra.mxu0 0.0
    %223 = vmatprep.subr.mxu0 0.0
    %224 = vmatpush2.msra.mxu0 0.0
    %225 = vmatprep.subr.mxu0 0.0
    %226 = vmatpush2.msra.mxu0 0.0
    %227 = vmatprep.subr.mxu0 0.0
    %228 = vmatpush2.msra.mxu0 0.0
    %229 = vmatprep.subr.mxu0 0.0
    %230 = vmatpush2.msra.mxu0 0.0
    %231 = vmatprep.subr.mxu0 0.0
    %232 = vmatpush2.msra.mxu0 0.0
    %233 = vmatprep.subr.mxu0 0.0
    %234 = vmatpush2.msra.mxu0 0.0
    %235 = vmatprep.subr.mxu0 0.0
    %236 = vmatpush2.msra.mxu0 0.0
    %237 = vmatprep.subr.mxu0 0.0
    %238 = vmatpush2.msra.mxu0 0.0
    %239 = vmatprep.subr.mxu0 0.0
    %240 = vmatpush2.msra.mxu0 0.0
    %241 = vmatprep.subr.mxu0 0.0
    %242 = vmatpush2.msra.mxu0 0.0
    %243 = vmatprep.mubr.f32.mxu0 0.0
    %244 = vmatmul.mubr.f32.gmra.mxu0 %v97
    %v245 = vpop.f32.mrf.mxu0
    %v246 = vadd.f32 %v87, %v245
    %v247 = vpop.f32.mrf.mxu0
    %v248 = vadd.f32 %v91, %v247
    %249 = vmatprep.mubr.f32.mxu0 0.0
    %250 = vmatmul.mubr.f32.gmra.mxu0 %v100
    %v251 = vpop.f32.mrf.mxu0
    %v252 = vadd.f32 %v87, %v251
    %v253 = vpop.f32.mrf.mxu0
    %v254 = vadd.f32 %v91, %v253
    %255 = vdwg.mxu0
    %v256 = vld [vmem:[#allocation6] sm:$0xff]
    %v257 = vld [vmem:[#allocation6 + $0x8] sm:$0xff]
    %v258 = vld [vmem:[#allocation6 + $0x10] sm:$0xff]
    %v259 = vld [vmem:[#allocation6 + $0x18] sm:$0xff]
    %v260 = vld [vmem:[#allocation6 + $0x20] sm:$0xff]
    %v261 = vld [vmem:[#allocation6 + $0x28] sm:$0xff]
    %v262 = vld [vmem:[#allocation6 + $0x30] sm:$0xff]
    %v263 = vld [vmem:[#allocation6 + $0x38] sm:$0xff]
    %v264 = vld [vmem:[#allocation6 + $0x40] sm:$0xff]
    %v265 = vld [vmem:[#allocation6 + $0x48] sm:$0xff]
    %v266 = vld [vmem:[#allocation6 + $0x50] sm:$0xff]
    %v267 = vld [vmem:[#allocation6 + $0x58] sm:$0xff]
    %v268 = vld [vmem:[#allocation6 + $0x60] sm:$0xff]
    %v269 = vld [vmem:[#allocation6 + $0x68] sm:$0xff]
    %v270 = vld [vmem:[#allocation6 + $0x70] sm:$0xff]
    %v271 = vld [vmem:[#allocation6 + $0x78] sm:$0xff]
    %v273 = vsel %vm53, 0.0, 0
    %275 = vmatprep.subr.mxu0 0.0
    %276 = vmatpush1.msra.mxu0 0.0
    %277 = vmatprep.subr.mxu0 0.0
    %278 = vmatpush1.msra.mxu0 0.0
    %279 = vmatprep.subr.mxu0 0.0
    %280 = vmatpush1.msra.mxu0 0.0
    %281 = vmatprep.subr.mxu0 0.0
    %282 = vmatpush1.msra.mxu0 0.0
    %283 = vmatprep.subr.mxu0 0.0
    %284 = vmatpush1.msra.mxu0 0.0
    %285 = vmatprep.subr.mxu0 0.0
    %286 = vmatpush1.msra.mxu0 0.0
    %287 = vmatprep.subr.mxu0 0.0
    %288 = vmatpush1.msra.mxu0 0.0
    %289 = vmatprep.subr.mxu0 0.0
    %290 = vmatpush1.msra.mxu0 0.0
    %291 = vmatprep.subr.mxu0 0.0
    %292 = vmatpush1.msra.mxu0 0.0
    %293 = vmatprep.subr.mxu0 0.0
    %294 = vmatpush1.msra.mxu0 0.0
    %295 = vmatprep.subr.mxu0 0.0
    %296 = vmatpush1.msra.mxu0 0.0
    %297 = vmatprep.subr.mxu0 0.0
    %298 = vmatpush1.msra.mxu0 0.0
    %299 = vmatprep.subr.mxu0 %v269
    %300 = vmatpush1.msra.mxu0 %v268
    %301 = vmatprep.subr.mxu0 %v265
    %302 = vmatpush1.msra.mxu0 %v264
    %303 = vmatprep.subr.mxu0 %v261
    %304 = vmatpush1.msra.mxu0 %v260
    %305 = vmatprep.subr.mxu0 %v257
    %306 = vmatpush1.msra.mxu0 %v256
    %307 = vmatprep.subr.mxu0 0.0
    %308 = vmatpush2.msra.mxu0 0.0
    %309 = vmatprep.subr.mxu0 0.0
    %310 = vmatpush2.msra.mxu0 0.0
    %311 = vmatprep.subr.mxu0 0.0
    %312 = vmatpush2.msra.mxu0 0.0
    %313 = vmatprep.subr.mxu0 0.0
    %314 = vmatpush2.msra.mxu0 0.0
    %315 = vmatprep.subr.mxu0 0.0
    %316 = vmatpush2.msra.mxu0 0.0
    %317 = vmatprep.subr.mxu0 0.0
    %318 = vmatpush2.msra.mxu0 0.0
    %319 = vmatprep.subr.mxu0 0.0
    %320 = vmatpush2.msra.mxu0 0.0
    %321 = vmatprep.subr.mxu0 0.0
    %322 = vmatpush2.msra.mxu0 0.0
    %323 = vmatprep.subr.mxu0 0.0
    %324 = vmatpush2.msra.mxu0 0.0
    %325 = vmatprep.subr.mxu0 0.0
    %326 = vmatpush2.msra.mxu0 0.0
    %327 = vmatprep.subr.mxu0 0.0
    %328 = vmatpush2.msra.mxu0 0.0
    %329 = vmatprep.subr.mxu0 0.0
    %330 = vmatpush2.msra.mxu0 0.0
    %331 = vmatprep.subr.mxu0 0.0
    %332 = vmatpush2.msra.mxu0 0.0
    %333 = vmatprep.subr.mxu0 0.0
    %334 = vmatpush2.msra.mxu0 0.0
    %335 = vmatprep.subr.mxu0 0.0
    %336 = vmatpush2.msra.mxu0 0.0
    %337 = vmatprep.subr.mxu0 0.0
    %338 = vmatpush2.msra.mxu0 0.0
    %339 = vmatprep.mubr.f32.mxu0 0.0
    %340 = vmatmul.mubr.f32.gmra.mxu0 %v273
    %v341 = vpop.f32.mrf.mxu0
    %v342 = vadd.f32 0.0, %v341
    %v343 = vpop.f32.mrf.mxu0
    %v344 = vadd.f32 0.0, %v343
    %345 = vdwg.mxu0
    %346 = vmatprep.subr.mxu0 0.0
    %347 = vmatpush1.msra.mxu0 0.0
    %348 = vmatprep.subr.mxu0 0.0
    %349 = vmatpush1.msra.mxu0 0.0
    %350 = vmatprep.subr.mxu0 0.0
    %351 = vmatpush1.msra.mxu0 0.0
    %352 = vmatprep.subr.mxu0 0.0
    %353 = vmatpush1.msra.mxu0 0.0
    %354 = vmatprep.subr.mxu0 0.0
    %355 = vmatpush1.msra.mxu0 0.0
    %356 = vmatprep.subr.mxu0 0.0
    %357 = vmatpush1.msra.mxu0 0.0
    %358 = vmatprep.subr.mxu0 0.0
    %359 = vmatpush1.msra.mxu0 0.0
    %360 = vmatprep.subr.mxu0 0.0
    %361 = vmatpush1.msra.mxu0 0.0
    %362 = vmatprep.subr.mxu0 0.0
    %363 = vmatpush1.msra.mxu0 0.0
    %364 = vmatprep.subr.mxu0 0.0
    %365 = vmatpush1.msra.mxu0 0.0
    %366 = vmatprep.subr.mxu0 0.0
    %367 = vmatpush1.msra.mxu0 0.0
    %368 = vmatprep.subr.mxu0 0.0
    %369 = vmatpush1.msra.mxu0 0.0
    %370 = vmatprep.subr.mxu0 %v271
    %371 = vmatpush1.msra.mxu0 %v270
    %372 = vmatprep.subr.mxu0 %v267
    %373 = vmatpush1.msra.mxu0 %v266
    %374 = vmatprep.subr.mxu0 %v263
    %375 = vmatpush1.msra.mxu0 %v262
    %376 = vmatprep.subr.mxu0 %v259
    %377 = vmatpush1.msra.mxu0 %v258
    %378 = vmatprep.subr.mxu0 0.0
    %379 = vmatpush2.msra.mxu0 0.0
    %380 = vmatprep.subr.mxu0 0.0
    %381 = vmatpush2.msra.mxu0 0.0
    %382 = vmatprep.subr.mxu0 0.0
    %383 = vmatpush2.msra.mxu0 0.0
    %384 = vmatprep.subr.mxu0 0.0
    %385 = vmatpush2.msra.mxu0 0.0
    %386 = vmatprep.subr.mxu0 0.0
    %387 = vmatpush2.msra.mxu0 0.0
    %388 = vmatprep.subr.mxu0 0.0
    %389 = vmatpush2.msra.mxu0 0.0
    %390 = vmatprep.subr.mxu0 0.0
    %391 = vmatpush2.msra.mxu0 0.0
    %392 = vmatprep.subr.mxu0 0.0
    %393 = vmatpush2.msra.mxu0 0.0
    %394 = vmatprep.subr.mxu0 0.0
    %395 = vmatpush2.msra.mxu0 0.0
    %396 = vmatprep.subr.mxu0 0.0
    %397 = vmatpush2.msra.mxu0 0.0
    %398 = vmatprep.subr.mxu0 0.0
    %399 = vmatpush2.msra.mxu0 0.0
    %400 = vmatprep.subr.mxu0 0.0
    %401 = vmatpush2.msra.mxu0 0.0
    %402 = vmatprep.subr.mxu0 0.0
    %403 = vmatpush2.msra.mxu0 0.0
    %404 = vmatprep.subr.mxu0 0.0
    %405 = vmatpush2.msra.mxu0 0.0
    %406 = vmatprep.subr.mxu0 0.0
    %407 = vmatpush2.msra.mxu0 0.0
    %408 = vmatprep.subr.mxu0 0.0
    %409 = vmatpush2.msra.mxu0 0.0
    %410 = vmatprep.mubr.f32.mxu0 0.0
    %411 = vmatmul.mubr.f32.gmra.mxu0 %v273
    %v412 = vpop.f32.mrf.mxu0
    %v413 = vadd.f32 0.0, %v412
    %v414 = vpop.f32.mrf.mxu0
    %v415 = vadd.f32 0.0, %v414
    %416 = vdwg.mxu0
    %v417 = vadd.f32 %v169, %v342
    %v418 = vadd.f32 %v171, %v344
    %v419 = vadd.f32 %v246, %v413
    %v420 = vadd.f32 %v248, %v415
    %v421 = vxor.u32 %v417, 2147483648
    %v422 = vxor.u32 %v418, 2147483648
    %v423 = vxor.u32 %v419, 2147483648
    %v424 = vmul.f32 %v421, 1.442695
    %v425 = vpow.pop %v424
    %v426 = vmul.f32 %v422, 1.442695
    %v427 = vpow.pop %v426
    %v428 = vmul.f32 %v423, 1.442695
    %v429 = vpow.pop %v428
    %v430 = vadd.f32 %v425, 1.0
    %v431 = vadd.f32 %v427, 1.0
    %v432 = vadd.f32 %v429, 1.0
    %v433 = vrcp.pop %v430
    %v434 = vmul.f32 1.0, %v433
    %v435 = vrcp.pop %v431
    %v436 = vmul.f32 1.0, %v435
    %v437 = vrcp.pop %v432
    %v438 = vmul.f32 1.0, %v437
    %v439 = vtanh.pop %v420
    %v440 = vmul.f32 %v436, 0.0
    %v441 = vmul.f32 %v434, %v439
    %v442 = vadd.f32 %v440, %v441
    %v443 = vtanh.pop %v442
    %v444 = vmul.f32 %v438, %v443
    %vm445 = vcmask 254976
    %446 = vst.msk [vmem:[#allocation2] sm:$0x3] %vm445, %v444
    %v448 = vsel %vm53, %v444, 0
    %450 = vmatprep.subr.mxu0 0.0
    %451 = vmatpush1.msra.mxu0 0.0
    %452 = vmatprep.subr.mxu0 0.0
    %453 = vmatpush1.msra.mxu0 0.0
    %454 = vmatprep.subr.mxu0 0.0
    %455 = vmatpush1.msra.mxu0 0.0
    %456 = vmatprep.subr.mxu0 0.0
    %457 = vmatpush1.msra.mxu0 0.0
    %458 = vmatprep.subr.mxu0 0.0
    %459 = vmatpush1.msra.mxu0 0.0
    %460 = vmatprep.subr.mxu0 0.0
    %461 = vmatpush1.msra.mxu0 0.0
    %462 = vmatprep.subr.mxu0 0.0
    %463 = vmatpush1.msra.mxu0 0.0
    %464 = vmatprep.subr.mxu0 0.0
    %465 = vmatpush1.msra.mxu0 0.0
    %466 = vmatprep.subr.mxu0 0.0
    %467 = vmatpush1.msra.mxu0 0.0
    %468 = vmatprep.subr.mxu0 0.0
    %469 = vmatpush1.msra.mxu0 0.0
    %470 = vmatprep.subr.mxu0 0.0
    %471 = vmatpush1.msra.mxu0 0.0
    %472 = vmatprep.subr.mxu0 0.0
    %473 = vmatpush1.msra.mxu0 0.0
    %474 = vmatprep.subr.mxu0 %v269
    %475 = vmatpush1.msra.mxu0 %v268
    %476 = vmatprep.subr.mxu0 %v265
    %477 = vmatpush1.msra.mxu0 %v264
    %478 = vmatprep.subr.mxu0 %v261
    %479 = vmatpush1.msra.mxu0 %v260
    %480 = vmatprep.subr.mxu0 %v257
    %481 = vmatpush1.msra.mxu0 %v256
    %482 = vmatprep.subr.mxu0 0.0
    %483 = vmatpush2.msra.mxu0 0.0
    %484 = vmatprep.subr.mxu0 0.0
    %485 = vmatpush2.msra.mxu0 0.0
    %486 = vmatprep.subr.mxu0 0.0
    %487 = vmatpush2.msra.mxu0 0.0
    %488 = vmatprep.subr.mxu0 0.0
    %489 = vmatpush2.msra.mxu0 0.0
    %490 = vmatprep.subr.mxu0 0.0
    %491 = vmatpush2.msra.mxu0 0.0
    %492 = vmatprep.subr.mxu0 0.0
    %493 = vmatpush2.msra.mxu0 0.0
    %494 = vmatprep.subr.mxu0 0.0
    %495 = vmatpush2.msra.mxu0 0.0
    %496 = vmatprep.subr.mxu0 0.0
    %497 = vmatpush2.msra.mxu0 0.0
    %498 = vmatprep.subr.mxu0 0.0
    %499 = vmatpush2.msra.mxu0 0.0
    %500 = vmatprep.subr.mxu0 0.0
    %501 = vmatpush2.msra.mxu0 0.0
    %502 = vmatprep.subr.mxu0 0.0
    %503 = vmatpush2.msra.mxu0 0.0
    %504 = vmatprep.subr.mxu0 0.0
    %505 = vmatpush2.msra.mxu0 0.0
    %506 = vmatprep.subr.mxu0 0.0
    %507 = vmatpush2.msra.mxu0 0.0
    %508 = vmatprep.subr.mxu0 0.0
    %509 = vmatpush2.msra.mxu0 0.0
    %510 = vmatprep.subr.mxu0 0.0
    %511 = vmatpush2.msra.mxu0 0.0
    %512 = vmatprep.subr.mxu0 0.0
    %513 = vmatpush2.msra.mxu0 0.0
    %514 = vmatprep.mubr.f32.mxu0 0.0
    %515 = vmatmul.mubr.f32.gmra.mxu0 %v448
    %v516 = vpop.f32.mrf.mxu0
    %v517 = vadd.f32 0.0, %v516
    %v518 = vpop.f32.mrf.mxu0
    %v519 = vadd.f32 0.0, %v518
    %520 = vdwg.mxu0
    %521 = vmatprep.subr.mxu0 0.0
    %522 = vmatpush1.msra.mxu0 0.0
    %523 = vmatprep.subr.mxu0 0.0
    %524 = vmatpush1.msra.mxu0 0.0
    %525 = vmatprep.subr.mxu0 0.0
    %526 = vmatpush1.msra.mxu0 0.0
    %527 = vmatprep.subr.mxu0 0.0
    %528 = vmatpush1.msra.mxu0 0.0
    %529 = vmatprep.subr.mxu0 0.0
    %530 = vmatpush1.msra.mxu0 0.0
    %531 = vmatprep.subr.mxu0 0.0
    %532 = vmatpush1.msra.mxu0 0.0
    %533 = vmatprep.subr.mxu0 0.0
    %534 = vmatpush1.msra.mxu0 0.0
    %535 = vmatprep.subr.mxu0 0.0
    %536 = vmatpush1.msra.mxu0 0.0
    %537 = vmatprep.subr.mxu0 0.0
    %538 = vmatpush1.msra.mxu0 0.0
    %539 = vmatprep.subr.mxu0 0.0
    %540 = vmatpush1.msra.mxu0 0.0
    %541 = vmatprep.subr.mxu0 0.0
    %542 = vmatpush1.msra.mxu0 0.0
    %543 = vmatprep.subr.mxu0 0.0
    %544 = vmatpush1.msra.mxu0 0.0
    %545 = vmatprep.subr.mxu0 %v271
    %546 = vmatpush1.msra.mxu0 %v270
    %547 = vmatprep.subr.mxu0 %v267
    %548 = vmatpush1.msra.mxu0 %v266
    %549 = vmatprep.subr.mxu0 %v263
    %550 = vmatpush1.msra.mxu0 %v262
    %551 = vmatprep.subr.mxu0 %v259
    %552 = vmatpush1.msra.mxu0 %v258
    %553 = vmatprep.subr.mxu0 0.0
    %554 = vmatpush2.msra.mxu0 0.0
    %555 = vmatprep.subr.mxu0 0.0
    %556 = vmatpush2.msra.mxu0 0.0
    %557 = vmatprep.subr.mxu0 0.0
    %558 = vmatpush2.msra.mxu0 0.0
    %559 = vmatprep.subr.mxu0 0.0
    %560 = vmatpush2.msra.mxu0 0.0
    %561 = vmatprep.subr.mxu0 0.0
    %562 = vmatpush2.msra.mxu0 0.0
    %563 = vmatprep.subr.mxu0 0.0
    %564 = vmatpush2.msra.mxu0 0.0
    %565 = vmatprep.subr.mxu0 0.0
    %566 = vmatpush2.msra.mxu0 0.0
    %567 = vmatprep.subr.mxu0 0.0
    %568 = vmatpush2.msra.mxu0 0.0
    %569 = vmatprep.subr.mxu0 0.0
    %570 = vmatpush2.msra.mxu0 0.0
    %571 = vmatprep.subr.mxu0 0.0
    %572 = vmatpush2.msra.mxu0 0.0
    %573 = vmatprep.subr.mxu0 0.0
    %574 = vmatpush2.msra.mxu0 0.0
    %575 = vmatprep.subr.mxu0 0.0
    %576 = vmatpush2.msra.mxu0 0.0
    %577 = vmatprep.subr.mxu0 0.0
    %578 = vmatpush2.msra.mxu0 0.0
    %579 = vmatprep.subr.mxu0 0.0
    %580 = vmatpush2.msra.mxu0 0.0
    %581 = vmatprep.subr.mxu0 0.0
    %582 = vmatpush2.msra.mxu0 0.0
    %583 = vmatprep.subr.mxu0 0.0
    %584 = vmatpush2.msra.mxu0 0.0
    %585 = vmatprep.mubr.f32.mxu0 0.0
    %586 = vmatmul.mubr.f32.gmra.mxu0 %v448
    %v587 = vpop.f32.mrf.mxu0
    %v588 = vadd.f32 0.0, %v587
    %v589 = vpop.f32.mrf.mxu0
    %v590 = vadd.f32 0.0, %v589
    %591 = vdwg.mxu0
    %v596 = vrot.slane %v517, 6
    %v597 = vrot.slane %v519, 6
    %v598 = vrot.slane %v588, 6
    %v599 = vrot.slane %v590, 6
    %v604 = vadd.f32 %v169, %v596
    %v605 = vadd.f32 %v171, %v597
    %v606 = vadd.f32 %v246, %v598
    %v607 = vadd.f32 %v248, %v599
    %v608 = vxor.u32 %v604, 2147483648
    %v609 = vxor.u32 %v605, 2147483648
    %v610 = vxor.u32 %v606, 2147483648
    %v611 = vmul.f32 %v608, 1.442695
    %v612 = vpow.pop %v611
    %v613 = vmul.f32 %v609, 1.442695
    %v614 = vpow.pop %v613
    %v615 = vmul.f32 %v610, 1.442695
    %v616 = vpow.pop %v615
    %v617 = vadd.f32 %v612, 1.0
    %v618 = vadd.f32 %v614, 1.0
    %v619 = vadd.f32 %v616, 1.0
    %v620 = vrcp.pop %v617
    %v621 = vmul.f32 1.0, %v620
    %v622 = vrcp.pop %v618
    %v623 = vmul.f32 1.0, %v622
    %v624 = vrcp.pop %v619
    %v625 = vmul.f32 1.0, %v624
    %v626 = vtanh.pop %v607
    %v628 = vrot.slane %v442, 6
    %v630 = vmul.f32 %v623, %v628
    %v631 = vmul.f32 %v621, %v626
    %v632 = vadd.f32 %v630, %v631
    %v633 = vtanh.pop %v632
    %v634 = vmul.f32 %v625, %v633
    %vm635 = vcmask 257026
    %636 = vst.msk [vmem:[#allocation2] sm:$0xc] %vm635, %v634
    %v638 = vrot.slane %v634, 2
    %v639 = vsel %vm53, %v638, 0
    %641 = vmatprep.subr.mxu0 0.0
    %642 = vmatpush1.msra.mxu0 0.0
    %643 = vmatprep.subr.mxu0 0.0
    %644 = vmatpush1.msra.mxu0 0.0
    %645 = vmatprep.subr.mxu0 0.0
    %646 = vmatpush1.msra.mxu0 0.0
    %647 = vmatprep.subr.mxu0 0.0
    %648 = vmatpush1.msra.mxu0 0.0
    %649 = vmatprep.subr.mxu0 0.0
    %650 = vmatpush1.msra.mxu0 0.0
    %651 = vmatprep.subr.mxu0 0.0
    %652 = vmatpush1.msra.mxu0 0.0
    %653 = vmatprep.subr.mxu0 0.0
    %654 = vmatpush1.msra.mxu0 0.0
    %655 = vmatprep.subr.mxu0 0.0
    %656 = vmatpush1.msra.mxu0 0.0
    %657 = vmatprep.subr.mxu0 0.0
    %658 = vmatpush1.msra.mxu0 0.0
    %659 = vmatprep.subr.mxu0 0.0
    %660 = vmatpush1.msra.mxu0 0.0
    %661 = vmatprep.subr.mxu0 0.0
    %662 = vmatpush1.msra.mxu0 0.0
    %663 = vmatprep.subr.mxu0 0.0
    %664 = vmatpush1.msra.mxu0 0.0
    %665 = vmatprep.subr.mxu0 %v269
    %666 = vmatpush1.msra.mxu0 %v268
    %667 = vmatprep.subr.mxu0 %v265
    %668 = vmatpush1.msra.mxu0 %v264
    %669 = vmatprep.subr.mxu0 %v261
    %670 = vmatpush1.msra.mxu0 %v260
    %671 = vmatprep.subr.mxu0 %v257
    %672 = vmatpush1.msra.mxu0 %v256
    %673 = vmatprep.subr.mxu0 0.0
    %674 = vmatpush2.msra.mxu0 0.0
    %675 = vmatprep.subr.mxu0 0.0
    %676 = vmatpush2.msra.mxu0 0.0
    %677 = vmatprep.subr.mxu0 0.0
    %678 = vmatpush2.msra.mxu0 0.0
    %679 = vmatprep.subr.mxu0 0.0
    %680 = vmatpush2.msra.mxu0 0.0
    %681 = vmatprep.subr.mxu0 0.0
    %682 = vmatpush2.msra.mxu0 0.0
    %683 = vmatprep.subr.mxu0 0.0
    %684 = vmatpush2.msra.mxu0 0.0
    %685 = vmatprep.subr.mxu0 0.0
    %686 = vmatpush2.msra.mxu0 0.0
    %687 = vmatprep.subr.mxu0 0.0
    %688 = vmatpush2.msra.mxu0 0.0
    %689 = vmatprep.subr.mxu0 0.0
    %690 = vmatpush2.msra.mxu0 0.0
    %691 = vmatprep.subr.mxu0 0.0
    %692 = vmatpush2.msra.mxu0 0.0
    %693 = vmatprep.subr.mxu0 0.0
    %694 = vmatpush2.msra.mxu0 0.0
    %695 = vmatprep.subr.mxu0 0.0
    %696 = vmatpush2.msra.mxu0 0.0
    %697 = vmatprep.subr.mxu0 0.0
    %698 = vmatpush2.msra.mxu0 0.0
    %699 = vmatprep.subr.mxu0 0.0
    %700 = vmatpush2.msra.mxu0 0.0
    %701 = vmatprep.subr.mxu0 0.0
    %702 = vmatpush2.msra.mxu0 0.0
    %703 = vmatprep.subr.mxu0 0.0
    %704 = vmatpush2.msra.mxu0 0.0
    %705 = vmatprep.mubr.f32.mxu0 0.0
    %706 = vmatmul.mubr.f32.gmra.mxu0 %v639
    %v707 = vpop.f32.mrf.mxu0
    %v708 = vadd.f32 0.0, %v707
    %v709 = vpop.f32.mrf.mxu0
    %v710 = vadd.f32 0.0, %v709
    %711 = vdwg.mxu0
    %712 = vmatprep.subr.mxu0 0.0
    %713 = vmatpush1.msra.mxu0 0.0
    %714 = vmatprep.subr.mxu0 0.0
    %715 = vmatpush1.msra.mxu0 0.0
    %716 = vmatprep.subr.mxu0 0.0
    %717 = vmatpush1.msra.mxu0 0.0
    %718 = vmatprep.subr.mxu0 0.0
    %719 = vmatpush1.msra.mxu0 0.0
    %720 = vmatprep.subr.mxu0 0.0
    %721 = vmatpush1.msra.mxu0 0.0
    %722 = vmatprep.subr.mxu0 0.0
    %723 = vmatpush1.msra.mxu0 0.0
    %724 = vmatprep.subr.mxu0 0.0
    %725 = vmatpush1.msra.mxu0 0.0
    %726 = vmatprep.subr.mxu0 0.0
    %727 = vmatpush1.msra.mxu0 0.0
    %728 = vmatprep.subr.mxu0 0.0
    %729 = vmatpush1.msra.mxu0 0.0
    %730 = vmatprep.subr.mxu0 0.0
    %731 = vmatpush1.msra.mxu0 0.0
    %732 = vmatprep.subr.mxu0 0.0
    %733 = vmatpush1.msra.mxu0 0.0
    %734 = vmatprep.subr.mxu0 0.0
    %735 = vmatpush1.msra.mxu0 0.0
    %736 = vmatprep.subr.mxu0 %v271
    %737 = vmatpush1.msra.mxu0 %v270
    %738 = vmatprep.subr.mxu0 %v267
    %739 = vmatpush1.msra.mxu0 %v266
    %740 = vmatprep.subr.mxu0 %v263
    %741 = vmatpush1.msra.mxu0 %v262
    %742 = vmatprep.subr.mxu0 %v259
    %743 = vmatpush1.msra.mxu0 %v258
    %744 = vmatprep.subr.mxu0 0.0
    %745 = vmatpush2.msra.mxu0 0.0
    %746 = vmatprep.subr.mxu0 0.0
    %747 = vmatpush2.msra.mxu0 0.0
    %748 = vmatprep.subr.mxu0 0.0
    %749 = vmatpush2.msra.mxu0 0.0
    %750 = vmatprep.subr.mxu0 0.0
    %751 = vmatpush2.msra.mxu0 0.0
    %752 = vmatprep.subr.mxu0 0.0
    %753 = vmatpush2.msra.mxu0 0.0
    %754 = vmatprep.subr.mxu0 0.0
    %755 = vmatpush2.msra.mxu0 0.0
    %756 = vmatprep.subr.mxu0 0.0
    %757 = vmatpush2.msra.mxu0 0.0
    %758 = vmatprep.subr.mxu0 0.0
    %759 = vmatpush2.msra.mxu0 0.0
    %760 = vmatprep.subr.mxu0 0.0
    %761 = vmatpush2.msra.mxu0 0.0
    %762 = vmatprep.subr.mxu0 0.0
    %763 = vmatpush2.msra.mxu0 0.0
    %764 = vmatprep.subr.mxu0 0.0
    %765 = vmatpush2.msra.mxu0 0.0
    %766 = vmatprep.subr.mxu0 0.0
    %767 = vmatpush2.msra.mxu0 0.0
    %768 = vmatprep.subr.mxu0 0.0
    %769 = vmatpush2.msra.mxu0 0.0
    %770 = vmatprep.subr.mxu0 0.0
    %771 = vmatpush2.msra.mxu0 0.0
    %772 = vmatprep.subr.mxu0 0.0
    %773 = vmatpush2.msra.mxu0 0.0
    %774 = vmatprep.subr.mxu0 0.0
    %775 = vmatpush2.msra.mxu0 0.0
    %776 = vmatprep.mubr.f32.mxu0 0.0
    %777 = vmatmul.mubr.f32.gmra.mxu0 %v639
    %v778 = vpop.f32.mrf.mxu0
    %v779 = vadd.f32 0.0, %v778
    %v780 = vpop.f32.mrf.mxu0
    %v781 = vadd.f32 0.0, %v780
    %782 = vdwg.mxu0
    %v787 = vrot.slane %v708, 4
    %v788 = vrot.slane %v710, 4
    %v789 = vrot.slane %v779, 4
    %v790 = vrot.slane %v781, 4
    %v795 = vadd.f32 %v169, %v787
    %v796 = vadd.f32 %v171, %v788
    %v797 = vadd.f32 %v246, %v789
    %v798 = vadd.f32 %v248, %v790
    %v799 = vxor.u32 %v795, 2147483648
    %v800 = vxor.u32 %v796, 2147483648
    %v801 = vxor.u32 %v797, 2147483648
    %v802 = vmul.f32 %v799, 1.442695
    %v803 = vpow.pop %v802
    %v804 = vmul.f32 %v800, 1.442695
    %v805 = vpow.pop %v804
    %v806 = vmul.f32 %v801, 1.442695
    %v807 = vpow.pop %v806
    %v808 = vadd.f32 %v803, 1.0
    %v809 = vadd.f32 %v805, 1.0
    %v810 = vadd.f32 %v807, 1.0
    %v811 = vrcp.pop %v808
    %v812 = vmul.f32 1.0, %v811
    %v813 = vrcp.pop %v809
    %v814 = vmul.f32 1.0, %v813
    %v815 = vrcp.pop %v810
    %v816 = vmul.f32 1.0, %v815
    %v817 = vtanh.pop %v798
    %v819 = vrot.slane %v632, 6
    %v821 = vmul.f32 %v814, %v819
    %v822 = vmul.f32 %v812, %v817
    %v823 = vadd.f32 %v821, %v822
    %v824 = vtanh.pop %v823
    %v825 = vmul.f32 %v816, %v824
    %vm826 = vcmask 259076
    %827 = vst.msk [vmem:[#allocation2] sm:$0x30] %vm826, %v825
    %v829 = vrot.slane %v825, 4
    %v830 = vsel %vm53, %v829, 0
    %832 = vmatprep.subr.mxu0 0.0
    %833 = vmatpush1.msra.mxu0 0.0
    %834 = vmatprep.subr.mxu0 0.0
    %835 = vmatpush1.msra.mxu0 0.0
    %836 = vmatprep.subr.mxu0 0.0
    %837 = vmatpush1.msra.mxu0 0.0
    %838 = vmatprep.subr.mxu0 0.0
    %839 = vmatpush1.msra.mxu0 0.0
    %840 = vmatprep.subr.mxu0 0.0
    %841 = vmatpush1.msra.mxu0 0.0
    %842 = vmatprep.subr.mxu0 0.0
    %843 = vmatpush1.msra.mxu0 0.0
    %844 = vmatprep.subr.mxu0 0.0
    %845 = vmatpush1.msra.mxu0 0.0
    %846 = vmatprep.subr.mxu0 0.0
    %847 = vmatpush1.msra.mxu0 0.0
    %848 = vmatprep.subr.mxu0 0.0
    %849 = vmatpush1.msra.mxu0 0.0
    %850 = vmatprep.subr.mxu0 0.0
    %851 = vmatpush1.msra.mxu0 0.0
    %852 = vmatprep.subr.mxu0 0.0
    %853 = vmatpush1.msra.mxu0 0.0
    %854 = vmatprep.subr.mxu0 0.0
    %855 = vmatpush1.msra.mxu0 0.0
    %856 = vmatprep.subr.mxu0 %v269
    %857 = vmatpush1.msra.mxu0 %v268
    %858 = vmatprep.subr.mxu0 %v265
    %859 = vmatpush1.msra.mxu0 %v264
    %860 = vmatprep.subr.mxu0 %v261
    %861 = vmatpush1.msra.mxu0 %v260
    %862 = vmatprep.subr.mxu0 %v257
    %863 = vmatpush1.msra.mxu0 %v256
    %864 = vmatprep.subr.mxu0 0.0
    %865 = vmatpush2.msra.mxu0 0.0
    %866 = vmatprep.subr.mxu0 0.0
    %867 = vmatpush2.msra.mxu0 0.0
    %868 = vmatprep.subr.mxu0 0.0
    %869 = vmatpush2.msra.mxu0 0.0
    %870 = vmatprep.subr.mxu0 0.0
    %871 = vmatpush2.msra.mxu0 0.0
    %872 = vmatprep.subr.mxu0 0.0
    %873 = vmatpush2.msra.mxu0 0.0
    %874 = vmatprep.subr.mxu0 0.0
    %875 = vmatpush2.msra.mxu0 0.0
    %876 = vmatprep.subr.mxu0 0.0
    %877 = vmatpush2.msra.mxu0 0.0
    %878 = vmatprep.subr.mxu0 0.0
    %879 = vmatpush2.msra.mxu0 0.0
    %880 = vmatprep.subr.mxu0 0.0
    %881 = vmatpush2.msra.mxu0 0.0
    %882 = vmatprep.subr.mxu0 0.0
    %883 = vmatpush2.msra.mxu0 0.0
    %884 = vmatprep.subr.mxu0 0.0
    %885 = vmatpush2.msra.mxu0 0.0
    %886 = vmatprep.subr.mxu0 0.0
    %887 = vmatpush2.msra.mxu0 0.0
    %888 = vmatprep.subr.mxu0 0.0
    %889 = vmatpush2.msra.mxu0 0.0
    %890 = vmatprep.subr.mxu0 0.0
    %891 = vmatpush2.msra.mxu0 0.0
    %892 = vmatprep.subr.mxu0 0.0
    %893 = vmatpush2.msra.mxu0 0.0
    %894 = vmatprep.subr.mxu0 0.0
    %895 = vmatpush2.msra.mxu0 0.0
    %896 = vmatprep.mubr.f32.mxu0 0.0
    %897 = vmatmul.mubr.f32.gmra.mxu0 %v830
    %v898 = vpop.f32.mrf.mxu0
    %v899 = vadd.f32 0.0, %v898
    %v900 = vpop.f32.mrf.mxu0
    %v901 = vadd.f32 0.0, %v900
    %902 = vdwg.mxu0
    %903 = vmatprep.subr.mxu0 0.0
    %904 = vmatpush1.msra.mxu0 0.0
    %905 = vmatprep.subr.mxu0 0.0
    %906 = vmatpush1.msra.mxu0 0.0
    %907 = vmatprep.subr.mxu0 0.0
    %908 = vmatpush1.msra.mxu0 0.0
    %909 = vmatprep.subr.mxu0 0.0
    %910 = vmatpush1.msra.mxu0 0.0
    %911 = vmatprep.subr.mxu0 0.0
    %912 = vmatpush1.msra.mxu0 0.0
    %913 = vmatprep.subr.mxu0 0.0
    %914 = vmatpush1.msra.mxu0 0.0
    %915 = vmatprep.subr.mxu0 0.0
    %916 = vmatpush1.msra.mxu0 0.0
    %917 = vmatprep.subr.mxu0 0.0
    %918 = vmatpush1.msra.mxu0 0.0
    %919 = vmatprep.subr.mxu0 0.0
    %920 = vmatpush1.msra.mxu0 0.0
    %921 = vmatprep.subr.mxu0 0.0
    %922 = vmatpush1.msra.mxu0 0.0
    %923 = vmatprep.subr.mxu0 0.0
    %924 = vmatpush1.msra.mxu0 0.0
    %925 = vmatprep.subr.mxu0 0.0
    %926 = vmatpush1.msra.mxu0 0.0
    %927 = vmatprep.subr.mxu0 %v271
    %928 = vmatpush1.msra.mxu0 %v270
    %929 = vmatprep.subr.mxu0 %v267
    %930 = vmatpush1.msra.mxu0 %v266
    %931 = vmatprep.subr.mxu0 %v263
    %932 = vmatpush1.msra.mxu0 %v262
    %933 = vmatprep.subr.mxu0 %v259
    %934 = vmatpush1.msra.mxu0 %v258
    %935 = vmatprep.subr.mxu0 0.0
    %936 = vmatpush2.msra.mxu0 0.0
    %937 = vmatprep.subr.mxu0 0.0
    %938 = vmatpush2.msra.mxu0 0.0
    %939 = vmatprep.subr.mxu0 0.0
    %940 = vmatpush2.msra.mxu0 0.0
    %941 = vmatprep.subr.mxu0 0.0
    %942 = vmatpush2.msra.mxu0 0.0
    %943 = vmatprep.subr.mxu0 0.0
    %944 = vmatpush2.msra.mxu0 0.0
    %945 = vmatprep.subr.mxu0 0.0
    %946 = vmatpush2.msra.mxu0 0.0
    %947 = vmatprep.subr.mxu0 0.0
    %948 = vmatpush2.msra.mxu0 0.0
    %949 = vmatprep.subr.mxu0 0.0
    %950 = vmatpush2.msra.mxu0 0.0
    %951 = vmatprep.subr.mxu0 0.0
    %952 = vmatpush2.msra.mxu0 0.0
    %953 = vmatprep.subr.mxu0 0.0
    %954 = vmatpush2.msra.mxu0 0.0
    %955 = vmatprep.subr.mxu0 0.0
    %956 = vmatpush2.msra.mxu0 0.0
    %957 = vmatprep.subr.mxu0 0.0
    %958 = vmatpush2.msra.mxu0 0.0
    %959 = vmatprep.subr.mxu0 0.0
    %960 = vmatpush2.msra.mxu0 0.0
    %961 = vmatprep.subr.mxu0 0.0
    %962 = vmatpush2.msra.mxu0 0.0
    %963 = vmatprep.subr.mxu0 0.0
    %964 = vmatpush2.msra.mxu0 0.0
    %965 = vmatprep.subr.mxu0 0.0
    %966 = vmatpush2.msra.mxu0 0.0
    %967 = vmatprep.mubr.f32.mxu0 0.0
    %968 = vmatmul.mubr.f32.gmra.mxu0 %v830
    %v969 = vpop.f32.mrf.mxu0
    %v970 = vadd.f32 0.0, %v969
    %v971 = vpop.f32.mrf.mxu0
    %v972 = vadd.f32 0.0, %v971
    %973 = vdwg.mxu0
    %v978 = vrot.slane %v899, 2
    %v979 = vrot.slane %v901, 2
    %v980 = vrot.slane %v970, 2
    %v981 = vrot.slane %v972, 2
    %v986 = vadd.f32 %v169, %v978
    %v987 = vadd.f32 %v171, %v979
    %v988 = vadd.f32 %v246, %v980
    %v989 = vadd.f32 %v248, %v981
    %v990 = vxor.u32 %v986, 2147483648
    %v991 = vxor.u32 %v987, 2147483648
    %v992 = vxor.u32 %v988, 2147483648
    %v993 = vmul.f32 %v990, 1.442695
    %v994 = vpow.pop %v993
    %v995 = vmul.f32 %v991, 1.442695
    %v996 = vpow.pop %v995
    %v997 = vmul.f32 %v992, 1.442695
    %v998 = vpow.pop %v997
    %v999 = vadd.f32 %v994, 1.0
    %v1000 = vadd.f32 %v996, 1.0
    %v1001 = vadd.f32 %v998, 1.0
    %v1002 = vrcp.pop %v999
    %v1003 = vmul.f32 1.0, %v1002
    %v1004 = vrcp.pop %v1000
    %v1005 = vmul.f32 1.0, %v1004
    %v1006 = vrcp.pop %v1001
    %v1007 = vmul.f32 1.0, %v1006
    %v1008 = vtanh.pop %v989
    %v1010 = vrot.slane %v823, 6
    %v1012 = vmul.f32 %v1005, %v1010
    %v1013 = vmul.f32 %v1003, %v1008
    %v1014 = vadd.f32 %v1012, %v1013
    %v1015 = vtanh.pop %v1014
    %v1016 = vmul.f32 %v1007, %v1015
    %vm1017 = vcmask 261126
    %1018 = vst.msk [vmem:[#allocation2] sm:$0xc0] %vm1017, %v1016
    %v1020 = vrot.slane %v1016, 6
    %v1021 = vsel %vm53, %v1020, 0
    %1023 = vmatprep.subr.mxu0 0.0
    %1024 = vmatpush1.msra.mxu0 0.0
    %1025 = vmatprep.subr.mxu0 0.0
    %1026 = vmatpush1.msra.mxu0 0.0
    %1027 = vmatprep.subr.mxu0 0.0
    %1028 = vmatpush1.msra.mxu0 0.0
    %1029 = vmatprep.subr.mxu0 0.0
    %1030 = vmatpush1.msra.mxu0 0.0
    %1031 = vmatprep.subr.mxu0 0.0
    %1032 = vmatpush1.msra.mxu0 0.0
    %1033 = vmatprep.subr.mxu0 0.0
    %1034 = vmatpush1.msra.mxu0 0.0
    %1035 = vmatprep.subr.mxu0 0.0
    %1036 = vmatpush1.msra.mxu0 0.0
    %1037 = vmatprep.subr.mxu0 0.0
    %1038 = vmatpush1.msra.mxu0 0.0
    %1039 = vmatprep.subr.mxu0 0.0
    %1040 = vmatpush1.msra.mxu0 0.0
    %1041 = vmatprep.subr.mxu0 0.0
    %1042 = vmatpush1.msra.mxu0 0.0
    %1043 = vmatprep.subr.mxu0 0.0
    %1044 = vmatpush1.msra.mxu0 0.0
    %1045 = vmatprep.subr.mxu0 0.0
    %1046 = vmatpush1.msra.mxu0 0.0
    %1047 = vmatprep.subr.mxu0 %v269
    %1048 = vmatpush1.msra.mxu0 %v268
    %1049 = vmatprep.subr.mxu0 %v265
    %1050 = vmatpush1.msra.mxu0 %v264
    %1051 = vmatprep.subr.mxu0 %v261
    %1052 = vmatpush1.msra.mxu0 %v260
    %1053 = vmatprep.subr.mxu0 %v257
    %1054 = vmatpush1.msra.mxu0 %v256
    %1055 = vmatprep.subr.mxu0 0.0
    %1056 = vmatpush2.msra.mxu0 0.0
    %1057 = vmatprep.subr.mxu0 0.0
    %1058 = vmatpush2.msra.mxu0 0.0
    %1059 = vmatprep.subr.mxu0 0.0
    %1060 = vmatpush2.msra.mxu0 0.0
    %1061 = vmatprep.subr.mxu0 0.0
    %1062 = vmatpush2.msra.mxu0 0.0
    %1063 = vmatprep.subr.mxu0 0.0
    %1064 = vmatpush2.msra.mxu0 0.0
    %1065 = vmatprep.subr.mxu0 0.0
    %1066 = vmatpush2.msra.mxu0 0.0
    %1067 = vmatprep.subr.mxu0 0.0
    %1068 = vmatpush2.msra.mxu0 0.0
    %1069 = vmatprep.subr.mxu0 0.0
    %1070 = vmatpush2.msra.mxu0 0.0
    %1071 = vmatprep.subr.mxu0 0.0
    %1072 = vmatpush2.msra.mxu0 0.0
    %1073 = vmatprep.subr.mxu0 0.0
    %1074 = vmatpush2.msra.mxu0 0.0
    %1075 = vmatprep.subr.mxu0 0.0
    %1076 = vmatpush2.msra.mxu0 0.0
    %1077 = vmatprep.subr.mxu0 0.0
    %1078 = vmatpush2.msra.mxu0 0.0
    %1079 = vmatprep.subr.mxu0 0.0
    %1080 = vmatpush2.msra.mxu0 0.0
    %1081 = vmatprep.subr.mxu0 0.0
    %1082 = vmatpush2.msra.mxu0 0.0
    %1083 = vmatprep.subr.mxu0 0.0
    %1084 = vmatpush2.msra.mxu0 0.0
    %1085 = vmatprep.subr.mxu0 0.0
    %1086 = vmatpush2.msra.mxu0 0.0
    %1087 = vmatprep.mubr.f32.mxu0 0.0
    %1088 = vmatmul.mubr.f32.gmra.mxu0 %v1021
    %v1089 = vpop.f32.mrf.mxu0
    %v1090 = vadd.f32 0.0, %v1089
    %v1091 = vpop.f32.mrf.mxu0
    %v1092 = vadd.f32 0.0, %v1091
    %1093 = vdwg.mxu0
    %1094 = vmatprep.subr.mxu0 0.0
    %1095 = vmatpush1.msra.mxu0 0.0
    %1096 = vmatprep.subr.mxu0 0.0
    %1097 = vmatpush1.msra.mxu0 0.0
    %1098 = vmatprep.subr.mxu0 0.0
    %1099 = vmatpush1.msra.mxu0 0.0
    %1100 = vmatprep.subr.mxu0 0.0
    %1101 = vmatpush1.msra.mxu0 0.0
    %1102 = vmatprep.subr.mxu0 0.0
    %1103 = vmatpush1.msra.mxu0 0.0
    %1104 = vmatprep.subr.mxu0 0.0
    %1105 = vmatpush1.msra.mxu0 0.0
    %1106 = vmatprep.subr.mxu0 0.0
    %1107 = vmatpush1.msra.mxu0 0.0
    %1108 = vmatprep.subr.mxu0 0.0
    %1109 = vmatpush1.msra.mxu0 0.0
    %1110 = vmatprep.subr.mxu0 0.0
    %1111 = vmatpush1.msra.mxu0 0.0
    %1112 = vmatprep.subr.mxu0 0.0
    %1113 = vmatpush1.msra.mxu0 0.0
    %1114 = vmatprep.subr.mxu0 0.0
    %1115 = vmatpush1.msra.mxu0 0.0
    %1116 = vmatprep.subr.mxu0 0.0
    %1117 = vmatpush1.msra.mxu0 0.0
    %1118 = vmatprep.subr.mxu0 %v271
    %1119 = vmatpush1.msra.mxu0 %v270
    %1120 = vmatprep.subr.mxu0 %v267
    %1121 = vmatpush1.msra.mxu0 %v266
    %1122 = vmatprep.subr.mxu0 %v263
    %1123 = vmatpush1.msra.mxu0 %v262
    %1124 = vmatprep.subr.mxu0 %v259
    %1125 = vmatpush1.msra.mxu0 %v258
    %1126 = vmatprep.subr.mxu0 0.0
    %1127 = vmatpush2.msra.mxu0 0.0
    %1128 = vmatprep.subr.mxu0 0.0
    %1129 = vmatpush2.msra.mxu0 0.0
    %1130 = vmatprep.subr.mxu0 0.0
    %1131 = vmatpush2.msra.mxu0 0.0
    %1132 = vmatprep.subr.mxu0 0.0
    %1133 = vmatpush2.msra.mxu0 0.0
    %1134 = vmatprep.subr.mxu0 0.0
    %1135 = vmatpush2.msra.mxu0 0.0
    %1136 = vmatprep.subr.mxu0 0.0
    %1137 = vmatpush2.msra.mxu0 0.0
    %1138 = vmatprep.subr.mxu0 0.0
    %1139 = vmatpush2.msra.mxu0 0.0
    %1140 = vmatprep.subr.mxu0 0.0
    %1141 = vmatpush2.msra.mxu0 0.0
    %1142 = vmatprep.subr.mxu0 0.0
    %1143 = vmatpush2.msra.mxu0 0.0
    %1144 = vmatprep.subr.mxu0 0.0
    %1145 = vmatpush2.msra.mxu0 0.0
    %1146 = vmatprep.subr.mxu0 0.0
    %1147 = vmatpush2.msra.mxu0 0.0
    %1148 = vmatprep.subr.mxu0 0.0
    %1149 = vmatpush2.msra.mxu0 0.0
    %1150 = vmatprep.subr.mxu0 0.0
    %1151 = vmatpush2.msra.mxu0 0.0
    %1152 = vmatprep.subr.mxu0 0.0
    %1153 = vmatpush2.msra.mxu0 0.0
    %1154 = vmatprep.subr.mxu0 0.0
    %1155 = vmatpush2.msra.mxu0 0.0
    %1156 = vmatprep.subr.mxu0 0.0
    %1157 = vmatpush2.msra.mxu0 0.0
    %1158 = vmatprep.mubr.f32.mxu0 0.0
    %1159 = vmatmul.mubr.f32.gmra.mxu0 %v1021
    %v1160 = vpop.f32.mrf.mxu0
    %v1161 = vadd.f32 0.0, %v1160
    %v1162 = vpop.f32.mrf.mxu0
    %v1163 = vadd.f32 0.0, %v1162
    %1164 = vdwg.mxu0
    %v1165 = vadd.f32 %v175, %v1090
    %v1166 = vadd.f32 %v177, %v1092
    %v1167 = vadd.f32 %v252, %v1161
    %v1168 = vadd.f32 %v254, %v1163
    %v1169 = vxor.u32 %v1165, 2147483648
    %v1170 = vxor.u32 %v1166, 2147483648
    %v1171 = vxor.u32 %v1167, 2147483648
    %v1172 = vmul.f32 %v1169, 1.442695
    %v1173 = vpow.pop %v1172
    %v1174 = vmul.f32 %v1170, 1.442695
    %v1175 = vpow.pop %v1174
    %v1176 = vmul.f32 %v1171, 1.442695
    %v1177 = vpow.pop %v1176
    %v1178 = vadd.f32 %v1173, 1.0
    %v1179 = vadd.f32 %v1175, 1.0
    %v1180 = vadd.f32 %v1177, 1.0
    %v1181 = vrcp.pop %v1178
    %v1182 = vmul.f32 1.0, %v1181
    %v1183 = vrcp.pop %v1179
    %v1184 = vmul.f32 1.0, %v1183
    %v1185 = vrcp.pop %v1180
    %v1186 = vmul.f32 1.0, %v1185
    %v1187 = vtanh.pop %v1168
    %v1189 = vrot.slane %v1014, 6
    %v1191 = vmul.f32 %v1184, %v1189
    %v1192 = vmul.f32 %v1182, %v1187
    %v1193 = vadd.f32 %v1191, %v1192
    %v1194 = vtanh.pop %v1193
    %v1195 = vmul.f32 %v1186, %v1194
    %1196 = vst.msk [vmem:[#allocation2 + $0x8] sm:$0x3] %vm445, %v1195
    %v1198 = vsel %vm53, %v1195, 0
    %1200 = vmatprep.subr.mxu0 0.0
    %1201 = vmatpush1.msra.mxu0 0.0
    %1202 = vmatprep.subr.mxu0 0.0
    %1203 = vmatpush1.msra.mxu0 0.0
    %1204 = vmatprep.subr.mxu0 0.0
    %1205 = vmatpush1.msra.mxu0 0.0
    %1206 = vmatprep.subr.mxu0 0.0
    %1207 = vmatpush1.msra.mxu0 0.0
    %1208 = vmatprep.subr.mxu0 0.0
    %1209 = vmatpush1.msra.mxu0 0.0
    %1210 = vmatprep.subr.mxu0 0.0
    %1211 = vmatpush1.msra.mxu0 0.0
    %1212 = vmatprep.subr.mxu0 0.0
    %1213 = vmatpush1.msra.mxu0 0.0
    %1214 = vmatprep.subr.mxu0 0.0
    %1215 = vmatpush1.msra.mxu0 0.0
    %1216 = vmatprep.subr.mxu0 0.0
    %1217 = vmatpush1.msra.mxu0 0.0
    %1218 = vmatprep.subr.mxu0 0.0
    %1219 = vmatpush1.msra.mxu0 0.0
    %1220 = vmatprep.subr.mxu0 0.0
    %1221 = vmatpush1.msra.mxu0 0.0
    %1222 = vmatprep.subr.mxu0 0.0
    %1223 = vmatpush1.msra.mxu0 0.0
    %1224 = vmatprep.subr.mxu0 %v269
    %1225 = vmatpush1.msra.mxu0 %v268
    %1226 = vmatprep.subr.mxu0 %v265
    %1227 = vmatpush1.msra.mxu0 %v264
    %1228 = vmatprep.subr.mxu0 %v261
    %1229 = vmatpush1.msra.mxu0 %v260
    %1230 = vmatprep.subr.mxu0 %v257
    %1231 = vmatpush1.msra.mxu0 %v256
    %1232 = vmatprep.subr.mxu0 0.0
    %1233 = vmatpush2.msra.mxu0 0.0
    %1234 = vmatprep.subr.mxu0 0.0
    %1235 = vmatpush2.msra.mxu0 0.0
    %1236 = vmatprep.subr.mxu0 0.0
    %1237 = vmatpush2.msra.mxu0 0.0
    %1238 = vmatprep.subr.mxu0 0.0
    %1239 = vmatpush2.msra.mxu0 0.0
    %1240 = vmatprep.subr.mxu0 0.0
    %1241 = vmatpush2.msra.mxu0 0.0
    %1242 = vmatprep.subr.mxu0 0.0
    %1243 = vmatpush2.msra.mxu0 0.0
    %1244 = vmatprep.subr.mxu0 0.0
    %1245 = vmatpush2.msra.mxu0 0.0
    %1246 = vmatprep.subr.mxu0 0.0
    %1247 = vmatpush2.msra.mxu0 0.0
    %1248 = vmatprep.subr.mxu0 0.0
    %1249 = vmatpush2.msra.mxu0 0.0
    %1250 = vmatprep.subr.mxu0 0.0
    %1251 = vmatpush2.msra.mxu0 0.0
    %1252 = vmatprep.subr.mxu0 0.0
    %1253 = vmatpush2.msra.mxu0 0.0
    %1254 = vmatprep.subr.mxu0 0.0
    %1255 = vmatpush2.msra.mxu0 0.0
    %1256 = vmatprep.subr.mxu0 0.0
    %1257 = vmatpush2.msra.mxu0 0.0
    %1258 = vmatprep.subr.mxu0 0.0
    %1259 = vmatpush2.msra.mxu0 0.0
    %1260 = vmatprep.subr.mxu0 0.0
    %1261 = vmatpush2.msra.mxu0 0.0
    %1262 = vmatprep.subr.mxu0 0.0
    %1263 = vmatpush2.msra.mxu0 0.0
    %1264 = vmatprep.mubr.f32.mxu0 0.0
    %1265 = vmatmul.mubr.f32.gmra.mxu0 %v1198
    %v1266 = vpop.f32.mrf.mxu0
    %v1267 = vadd.f32 0.0, %v1266
    %v1268 = vpop.f32.mrf.mxu0
    %v1269 = vadd.f32 0.0, %v1268
    %1270 = vdwg.mxu0
    %1271 = vmatprep.subr.mxu0 0.0
    %1272 = vmatpush1.msra.mxu0 0.0
    %1273 = vmatprep.subr.mxu0 0.0
    %1274 = vmatpush1.msra.mxu0 0.0
    %1275 = vmatprep.subr.mxu0 0.0
    %1276 = vmatpush1.msra.mxu0 0.0
    %1277 = vmatprep.subr.mxu0 0.0
    %1278 = vmatpush1.msra.mxu0 0.0
    %1279 = vmatprep.subr.mxu0 0.0
    %1280 = vmatpush1.msra.mxu0 0.0
    %1281 = vmatprep.subr.mxu0 0.0
    %1282 = vmatpush1.msra.mxu0 0.0
    %1283 = vmatprep.subr.mxu0 0.0
    %1284 = vmatpush1.msra.mxu0 0.0
    %1285 = vmatprep.subr.mxu0 0.0
    %1286 = vmatpush1.msra.mxu0 0.0
    %1287 = vmatprep.subr.mxu0 0.0
    %1288 = vmatpush1.msra.mxu0 0.0
    %1289 = vmatprep.subr.mxu0 0.0
    %1290 = vmatpush1.msra.mxu0 0.0
    %1291 = vmatprep.subr.mxu0 0.0
    %1292 = vmatpush1.msra.mxu0 0.0
    %1293 = vmatprep.subr.mxu0 0.0
    %1294 = vmatpush1.msra.mxu0 0.0
    %1295 = vmatprep.subr.mxu0 %v271
    %1296 = vmatpush1.msra.mxu0 %v270
    %1297 = vmatprep.subr.mxu0 %v267
    %1298 = vmatpush1.msra.mxu0 %v266
    %1299 = vmatprep.subr.mxu0 %v263
    %1300 = vmatpush1.msra.mxu0 %v262
    %1301 = vmatprep.subr.mxu0 %v259
    %1302 = vmatpush1.msra.mxu0 %v258
    %1303 = vmatprep.subr.mxu0 0.0
    %1304 = vmatpush2.msra.mxu0 0.0
    %1305 = vmatprep.subr.mxu0 0.0
    %1306 = vmatpush2.msra.mxu0 0.0
    %1307 = vmatprep.subr.mxu0 0.0
    %1308 = vmatpush2.msra.mxu0 0.0
    %1309 = vmatprep.subr.mxu0 0.0
    %1310 = vmatpush2.msra.mxu0 0.0
    %1311 = vmatprep.subr.mxu0 0.0
    %1312 = vmatpush2.msra.mxu0 0.0
    %1313 = vmatprep.subr.mxu0 0.0
    %1314 = vmatpush2.msra.mxu0 0.0
    %1315 = vmatprep.subr.mxu0 0.0
    %1316 = vmatpush2.msra.mxu0 0.0
    %1317 = vmatprep.subr.mxu0 0.0
    %1318 = vmatpush2.msra.mxu0 0.0
    %1319 = vmatprep.subr.mxu0 0.0
    %1320 = vmatpush2.msra.mxu0 0.0
    %1321 = vmatprep.subr.mxu0 0.0
    %1322 = vmatpush2.msra.mxu0 0.0
    %1323 = vmatprep.subr.mxu0 0.0
    %1324 = vmatpush2.msra.mxu0 0.0
    %1325 = vmatprep.subr.mxu0 0.0
    %1326 = vmatpush2.msra.mxu0 0.0
    %1327 = vmatprep.subr.mxu0 0.0
    %1328 = vmatpush2.msra.mxu0 0.0
    %1329 = vmatprep.subr.mxu0 0.0
    %1330 = vmatpush2.msra.mxu0 0.0
    %1331 = vmatprep.subr.mxu0 0.0
    %1332 = vmatpush2.msra.mxu0 0.0
    %1333 = vmatprep.subr.mxu0 0.0
    %1334 = vmatpush2.msra.mxu0 0.0
    %1335 = vmatprep.mubr.f32.mxu0 0.0
    %1336 = vmatmul.mubr.f32.gmra.mxu0 %v1198
    %v1337 = vpop.f32.mrf.mxu0
    %v1338 = vadd.f32 0.0, %v1337
    %v1339 = vpop.f32.mrf.mxu0
    %v1340 = vadd.f32 0.0, %v1339
    %1341 = vdwg.mxu0
    %v1346 = vrot.slane %v1267, 6
    %v1347 = vrot.slane %v1269, 6
    %v1348 = vrot.slane %v1338, 6
    %v1349 = vrot.slane %v1340, 6
    %v1354 = vadd.f32 %v175, %v1346
    %v1355 = vadd.f32 %v177, %v1347
    %v1356 = vadd.f32 %v252, %v1348
    %v1357 = vadd.f32 %v254, %v1349
    %v1358 = vxor.u32 %v1354, 2147483648
    %v1359 = vxor.u32 %v1355, 2147483648
    %v1360 = vxor.u32 %v1356, 2147483648
    %v1361 = vmul.f32 %v1358, 1.442695
    %v1362 = vpow.pop %v1361
    %v1363 = vmul.f32 %v1359, 1.442695
    %v1364 = vpow.pop %v1363
    %v1365 = vmul.f32 %v1360, 1.442695
    %v1366 = vpow.pop %v1365
    %v1367 = vadd.f32 %v1362, 1.0
    %v1368 = vadd.f32 %v1364, 1.0
    %v1369 = vadd.f32 %v1366, 1.0
    %v1370 = vrcp.pop %v1367
    %v1371 = vmul.f32 1.0, %v1370
    %v1372 = vrcp.pop %v1368
    %v1373 = vmul.f32 1.0, %v1372
    %v1374 = vrcp.pop %v1369
    %v1375 = vmul.f32 1.0, %v1374
    %v1376 = vtanh.pop %v1357
    %v1378 = vrot.slane %v1193, 6
    %v1380 = vmul.f32 %v1373, %v1378
    %v1381 = vmul.f32 %v1371, %v1376
    %v1382 = vadd.f32 %v1380, %v1381
    %v1383 = vtanh.pop %v1382
    %v1384 = vmul.f32 %v1375, %v1383
    %1385 = vst.msk [vmem:[#allocation2 + $0x8] sm:$0xc] %vm635, %v1384
    %v1387 = vrot.slane %v1384, 2
    %v1388 = vsel %vm53, %v1387, 0
    %1390 = vmatprep.subr.mxu0 0.0
    %1391 = vmatpush1.msra.mxu0 0.0
    %1392 = vmatprep.subr.mxu0 0.0
    %1393 = vmatpush1.msra.mxu0 0.0
    %1394 = vmatprep.subr.mxu0 0.0
    %1395 = vmatpush1.msra.mxu0 0.0
    %1396 = vmatprep.subr.mxu0 0.0
    %1397 = vmatpush1.msra.mxu0 0.0
    %1398 = vmatprep.subr.mxu0 0.0
    %1399 = vmatpush1.msra.mxu0 0.0
    %1400 = vmatprep.subr.mxu0 0.0
    %1401 = vmatpush1.msra.mxu0 0.0
    %1402 = vmatprep.subr.mxu0 0.0
    %1403 = vmatpush1.msra.mxu0 0.0
    %1404 = vmatprep.subr.mxu0 0.0
    %1405 = vmatpush1.msra.mxu0 0.0
    %1406 = vmatprep.subr.mxu0 0.0
    %1407 = vmatpush1.msra.mxu0 0.0
    %1408 = vmatprep.subr.mxu0 0.0
    %1409 = vmatpush1.msra.mxu0 0.0
    %1410 = vmatprep.subr.mxu0 0.0
    %1411 = vmatpush1.msra.mxu0 0.0
    %1412 = vmatprep.subr.mxu0 0.0
    %1413 = vmatpush1.msra.mxu0 0.0
    %1414 = vmatprep.subr.mxu0 %v269
    %1415 = vmatpush1.msra.mxu0 %v268
    %1416 = vmatprep.subr.mxu0 %v265
    %1417 = vmatpush1.msra.mxu0 %v264
    %1418 = vmatprep.subr.mxu0 %v261
    %1419 = vmatpush1.msra.mxu0 %v260
    %1420 = vmatprep.subr.mxu0 %v257
    %1421 = vmatpush1.msra.mxu0 %v256
    %1422 = vmatprep.subr.mxu0 0.0
    %1423 = vmatpush2.msra.mxu0 0.0
    %1424 = vmatprep.subr.mxu0 0.0
    %1425 = vmatpush2.msra.mxu0 0.0
    %1426 = vmatprep.subr.mxu0 0.0
    %1427 = vmatpush2.msra.mxu0 0.0
    %1428 = vmatprep.subr.mxu0 0.0
    %1429 = vmatpush2.msra.mxu0 0.0
    %1430 = vmatprep.subr.mxu0 0.0
    %1431 = vmatpush2.msra.mxu0 0.0
    %1432 = vmatprep.subr.mxu0 0.0
    %1433 = vmatpush2.msra.mxu0 0.0
    %1434 = vmatprep.subr.mxu0 0.0
    %1435 = vmatpush2.msra.mxu0 0.0
    %1436 = vmatprep.subr.mxu0 0.0
    %1437 = vmatpush2.msra.mxu0 0.0
    %1438 = vmatprep.subr.mxu0 0.0
    %1439 = vmatpush2.msra.mxu0 0.0
    %1440 = vmatprep.subr.mxu0 0.0
    %1441 = vmatpush2.msra.mxu0 0.0
    %1442 = vmatprep.subr.mxu0 0.0
    %1443 = vmatpush2.msra.mxu0 0.0
    %1444 = vmatprep.subr.mxu0 0.0
    %1445 = vmatpush2.msra.mxu0 0.0
    %1446 = vmatprep.subr.mxu0 0.0
    %1447 = vmatpush2.msra.mxu0 0.0
    %1448 = vmatprep.subr.mxu0 0.0
    %1449 = vmatpush2.msra.mxu0 0.0
    %1450 = vmatprep.subr.mxu0 0.0
    %1451 = vmatpush2.msra.mxu0 0.0
    %1452 = vmatprep.subr.mxu0 0.0
    %1453 = vmatpush2.msra.mxu0 0.0
    %1454 = vmatprep.mubr.f32.mxu0 0.0
    %1455 = vmatmul.mubr.f32.gmra.mxu0 %v1388
    %v1456 = vpop.f32.mrf.mxu0
    %v1457 = vadd.f32 0.0, %v1456
    %v1458 = vpop.f32.mrf.mxu0
    %v1459 = vadd.f32 0.0, %v1458
    %1460 = vdwg.mxu0
    %1461 = vmatprep.subr.mxu0 0.0
    %1462 = vmatpush1.msra.mxu0 0.0
    %1463 = vmatprep.subr.mxu0 0.0
    %1464 = vmatpush1.msra.mxu0 0.0
    %1465 = vmatprep.subr.mxu0 0.0
    %1466 = vmatpush1.msra.mxu0 0.0
    %1467 = vmatprep.subr.mxu0 0.0
    %1468 = vmatpush1.msra.mxu0 0.0
    %1469 = vmatprep.subr.mxu0 0.0
    %1470 = vmatpush1.msra.mxu0 0.0
    %1471 = vmatprep.subr.mxu0 0.0
    %1472 = vmatpush1.msra.mxu0 0.0
    %1473 = vmatprep.subr.mxu0 0.0
    %1474 = vmatpush1.msra.mxu0 0.0
    %1475 = vmatprep.subr.mxu0 0.0
    %1476 = vmatpush1.msra.mxu0 0.0
    %1477 = vmatprep.subr.mxu0 0.0
    %1478 = vmatpush1.msra.mxu0 0.0
    %1479 = vmatprep.subr.mxu0 0.0
    %1480 = vmatpush1.msra.mxu0 0.0
    %1481 = vmatprep.subr.mxu0 0.0
    %1482 = vmatpush1.msra.mxu0 0.0
    %1483 = vmatprep.subr.mxu0 0.0
    %1484 = vmatpush1.msra.mxu0 0.0
    %1485 = vmatprep.subr.mxu0 %v271
    %1486 = vmatpush1.msra.mxu0 %v270
    %1487 = vmatprep.subr.mxu0 %v267
    %1488 = vmatpush1.msra.mxu0 %v266
    %1489 = vmatprep.subr.mxu0 %v263
    %1490 = vmatpush1.msra.mxu0 %v262
    %1491 = vmatprep.subr.mxu0 %v259
    %1492 = vmatpush1.msra.mxu0 %v258
    %1493 = vmatprep.subr.mxu0 0.0
    %1494 = vmatpush2.msra.mxu0 0.0
    %1495 = vmatprep.subr.mxu0 0.0
    %1496 = vmatpush2.msra.mxu0 0.0
    %1497 = vmatprep.subr.mxu0 0.0
    %1498 = vmatpush2.msra.mxu0 0.0
    %1499 = vmatprep.subr.mxu0 0.0
    %1500 = vmatpush2.msra.mxu0 0.0
    %1501 = vmatprep.subr.mxu0 0.0
    %1502 = vmatpush2.msra.mxu0 0.0
    %1503 = vmatprep.subr.mxu0 0.0
    %1504 = vmatpush2.msra.mxu0 0.0
    %1505 = vmatprep.subr.mxu0 0.0
    %1506 = vmatpush2.msra.mxu0 0.0
    %1507 = vmatprep.subr.mxu0 0.0
    %1508 = vmatpush2.msra.mxu0 0.0
    %1509 = vmatprep.subr.mxu0 0.0
    %1510 = vmatpush2.msra.mxu0 0.0
    %1511 = vmatprep.subr.mxu0 0.0
    %1512 = vmatpush2.msra.mxu0 0.0
    %1513 = vmatprep.subr.mxu0 0.0
    %1514 = vmatpush2.msra.mxu0 0.0
    %1515 = vmatprep.subr.mxu0 0.0
    %1516 = vmatpush2.msra.mxu0 0.0
    %1517 = vmatprep.subr.mxu0 0.0
    %1518 = vmatpush2.msra.mxu0 0.0
    %1519 = vmatprep.subr.mxu0 0.0
    %1520 = vmatpush2.msra.mxu0 0.0
    %1521 = vmatprep.subr.mxu0 0.0
    %1522 = vmatpush2.msra.mxu0 0.0
    %1523 = vmatprep.subr.mxu0 0.0
    %1524 = vmatpush2.msra.mxu0 0.0
    %1525 = vmatprep.mubr.f32.mxu0 0.0
    %1526 = vmatmul.mubr.f32.gmra.mxu0 %v1388
    %v1527 = vpop.f32.mrf.mxu0
    %v1528 = vadd.f32 0.0, %v1527
    %v1529 = vpop.f32.mrf.mxu0
    %v1530 = vadd.f32 0.0, %v1529
    %1531 = vdwg.mxu0
    %v1536 = vrot.slane %v1457, 4
    %v1537 = vrot.slane %v1459, 4
    %v1538 = vrot.slane %v1528, 4
    %v1539 = vrot.slane %v1530, 4
    %v1544 = vadd.f32 %v175, %v1536
    %v1545 = vadd.f32 %v177, %v1537
    %v1546 = vadd.f32 %v252, %v1538
    %v1547 = vadd.f32 %v254, %v1539
    %v1548 = vxor.u32 %v1544, 2147483648
    %v1549 = vxor.u32 %v1545, 2147483648
    %v1550 = vxor.u32 %v1546, 2147483648
    %v1551 = vmul.f32 %v1548, 1.442695
    %v1552 = vpow.pop %v1551
    %v1553 = vmul.f32 %v1549, 1.442695
    %v1554 = vpow.pop %v1553
    %v1555 = vmul.f32 %v1550, 1.442695
    %v1556 = vpow.pop %v1555
    %v1557 = vadd.f32 %v1552, 1.0
    %v1558 = vadd.f32 %v1554, 1.0
    %v1559 = vadd.f32 %v1556, 1.0
    %v1560 = vrcp.pop %v1557
    %v1561 = vmul.f32 1.0, %v1560
    %v1562 = vrcp.pop %v1558
    %v1563 = vmul.f32 1.0, %v1562
    %v1564 = vrcp.pop %v1559
    %v1565 = vmul.f32 1.0, %v1564
    %v1566 = vtanh.pop %v1547
    %v1568 = vrot.slane %v1382, 6
    %v1570 = vmul.f32 %v1563, %v1568
    %v1571 = vmul.f32 %v1561, %v1566
    %v1572 = vadd.f32 %v1570, %v1571
    %v1573 = vtanh.pop %v1572
    %v1574 = vmul.f32 %v1565, %v1573
    %1575 = vst.msk [vmem:[#allocation2 + $0x8] sm:$0x30] %vm826, %v1574
    %v1577 = vrot.slane %v1574, 4
    %v1578 = vsel %vm53, %v1577, 0
    %1580 = vmatprep.subr.mxu0 0.0
    %1581 = vmatpush1.msra.mxu0 0.0
    %1582 = vmatprep.subr.mxu0 0.0
    %1583 = vmatpush1.msra.mxu0 0.0
    %1584 = vmatprep.subr.mxu0 0.0
    %1585 = vmatpush1.msra.mxu0 0.0
    %1586 = vmatprep.subr.mxu0 0.0
    %1587 = vmatpush1.msra.mxu0 0.0
    %1588 = vmatprep.subr.mxu0 0.0
    %1589 = vmatpush1.msra.mxu0 0.0
    %1590 = vmatprep.subr.mxu0 0.0
    %1591 = vmatpush1.msra.mxu0 0.0
    %1592 = vmatprep.subr.mxu0 0.0
    %1593 = vmatpush1.msra.mxu0 0.0
    %1594 = vmatprep.subr.mxu0 0.0
    %1595 = vmatpush1.msra.mxu0 0.0
    %1596 = vmatprep.subr.mxu0 0.0
    %1597 = vmatpush1.msra.mxu0 0.0
    %1598 = vmatprep.subr.mxu0 0.0
    %1599 = vmatpush1.msra.mxu0 0.0
    %1600 = vmatprep.subr.mxu0 0.0
    %1601 = vmatpush1.msra.mxu0 0.0
    %1602 = vmatprep.subr.mxu0 0.0
    %1603 = vmatpush1.msra.mxu0 0.0
    %1604 = vmatprep.subr.mxu0 %v269
    %1605 = vmatpush1.msra.mxu0 %v268
    %1606 = vmatprep.subr.mxu0 %v265
    %1607 = vmatpush1.msra.mxu0 %v264
    %1608 = vmatprep.subr.mxu0 %v261
    %1609 = vmatpush1.msra.mxu0 %v260
    %1610 = vmatprep.subr.mxu0 %v257
    %1611 = vmatpush1.msra.mxu0 %v256
    %1612 = vmatprep.subr.mxu0 0.0
    %1613 = vmatpush2.msra.mxu0 0.0
    %1614 = vmatprep.subr.mxu0 0.0
    %1615 = vmatpush2.msra.mxu0 0.0
    %1616 = vmatprep.subr.mxu0 0.0
    %1617 = vmatpush2.msra.mxu0 0.0
    %1618 = vmatprep.subr.mxu0 0.0
    %1619 = vmatpush2.msra.mxu0 0.0
    %1620 = vmatprep.subr.mxu0 0.0
    %1621 = vmatpush2.msra.mxu0 0.0
    %1622 = vmatprep.subr.mxu0 0.0
    %1623 = vmatpush2.msra.mxu0 0.0
    %1624 = vmatprep.subr.mxu0 0.0
    %1625 = vmatpush2.msra.mxu0 0.0
    %1626 = vmatprep.subr.mxu0 0.0
    %1627 = vmatpush2.msra.mxu0 0.0
    %1628 = vmatprep.subr.mxu0 0.0
    %1629 = vmatpush2.msra.mxu0 0.0
    %1630 = vmatprep.subr.mxu0 0.0
    %1631 = vmatpush2.msra.mxu0 0.0
    %1632 = vmatprep.subr.mxu0 0.0
    %1633 = vmatpush2.msra.mxu0 0.0
    %1634 = vmatprep.subr.mxu0 0.0
    %1635 = vmatpush2.msra.mxu0 0.0
    %1636 = vmatprep.subr.mxu0 0.0
    %1637 = vmatpush2.msra.mxu0 0.0
    %1638 = vmatprep.subr.mxu0 0.0
    %1639 = vmatpush2.msra.mxu0 0.0
    %1640 = vmatprep.subr.mxu0 0.0
    %1641 = vmatpush2.msra.mxu0 0.0
    %1642 = vmatprep.subr.mxu0 0.0
    %1643 = vmatpush2.msra.mxu0 0.0
    %1644 = vmatprep.mubr.f32.mxu0 0.0
    %1645 = vmatmul.mubr.f32.gmra.mxu0 %v1578
    %v1646 = vpop.f32.mrf.mxu0
    %v1647 = vadd.f32 0.0, %v1646
    %v1648 = vpop.f32.mrf.mxu0
    %v1649 = vadd.f32 0.0, %v1648
    %1650 = vdwg.mxu0
    %1651 = vmatprep.subr.mxu0 0.0
    %1652 = vmatpush1.msra.mxu0 0.0
    %1653 = vmatprep.subr.mxu0 0.0
    %1654 = vmatpush1.msra.mxu0 0.0
    %1655 = vmatprep.subr.mxu0 0.0
    %1656 = vmatpush1.msra.mxu0 0.0
    %1657 = vmatprep.subr.mxu0 0.0
    %1658 = vmatpush1.msra.mxu0 0.0
    %1659 = vmatprep.subr.mxu0 0.0
    %1660 = vmatpush1.msra.mxu0 0.0
    %1661 = vmatprep.subr.mxu0 0.0
    %1662 = vmatpush1.msra.mxu0 0.0
    %1663 = vmatprep.subr.mxu0 0.0
    %1664 = vmatpush1.msra.mxu0 0.0
    %1665 = vmatprep.subr.mxu0 0.0
    %1666 = vmatpush1.msra.mxu0 0.0
    %1667 = vmatprep.subr.mxu0 0.0
    %1668 = vmatpush1.msra.mxu0 0.0
    %1669 = vmatprep.subr.mxu0 0.0
    %1670 = vmatpush1.msra.mxu0 0.0
    %1671 = vmatprep.subr.mxu0 0.0
    %1672 = vmatpush1.msra.mxu0 0.0
    %1673 = vmatprep.subr.mxu0 0.0
    %1674 = vmatpush1.msra.mxu0 0.0
    %1675 = vmatprep.subr.mxu0 %v271
    %1676 = vmatpush1.msra.mxu0 %v270
    %1677 = vmatprep.subr.mxu0 %v267
    %1678 = vmatpush1.msra.mxu0 %v266
    %1679 = vmatprep.subr.mxu0 %v263
    %1680 = vmatpush1.msra.mxu0 %v262
    %1681 = vmatprep.subr.mxu0 %v259
    %1682 = vmatpush1.msra.mxu0 %v258
    %1683 = vmatprep.subr.mxu0 0.0
    %1684 = vmatpush2.msra.mxu0 0.0
    %1685 = vmatprep.subr.mxu0 0.0
    %1686 = vmatpush2.msra.mxu0 0.0
    %1687 = vmatprep.subr.mxu0 0.0
    %1688 = vmatpush2.msra.mxu0 0.0
    %1689 = vmatprep.subr.mxu0 0.0
    %1690 = vmatpush2.msra.mxu0 0.0
    %1691 = vmatprep.subr.mxu0 0.0
    %1692 = vmatpush2.msra.mxu0 0.0
    %1693 = vmatprep.subr.mxu0 0.0
    %1694 = vmatpush2.msra.mxu0 0.0
    %1695 = vmatprep.subr.mxu0 0.0
    %1696 = vmatpush2.msra.mxu0 0.0
    %1697 = vmatprep.subr.mxu0 0.0
    %1698 = vmatpush2.msra.mxu0 0.0
    %1699 = vmatprep.subr.mxu0 0.0
    %1700 = vmatpush2.msra.mxu0 0.0
    %1701 = vmatprep.subr.mxu0 0.0
    %1702 = vmatpush2.msra.mxu0 0.0
    %1703 = vmatprep.subr.mxu0 0.0
    %1704 = vmatpush2.msra.mxu0 0.0
    %1705 = vmatprep.subr.mxu0 0.0
    %1706 = vmatpush2.msra.mxu0 0.0
    %1707 = vmatprep.subr.mxu0 0.0
    %1708 = vmatpush2.msra.mxu0 0.0
    %1709 = vmatprep.subr.mxu0 0.0
    %1710 = vmatpush2.msra.mxu0 0.0
    %1711 = vmatprep.subr.mxu0 0.0
    %1712 = vmatpush2.msra.mxu0 0.0
    %1713 = vmatprep.subr.mxu0 0.0
    %1714 = vmatpush2.msra.mxu0 0.0
    %1715 = vmatprep.mubr.f32.mxu0 0.0
    %1716 = vmatmul.mubr.f32.gmra.mxu0 %v1578
    %v1717 = vpop.f32.mrf.mxu0
    %v1718 = vadd.f32 0.0, %v1717
    %v1719 = vpop.f32.mrf.mxu0
    %v1720 = vadd.f32 0.0, %v1719
    %1721 = vdwg.mxu0
    %v1726 = vrot.slane %v1647, 2
    %v1727 = vrot.slane %v1649, 2
    %v1728 = vrot.slane %v1718, 2
    %v1729 = vrot.slane %v1720, 2
    %v1734 = vadd.f32 %v175, %v1726
    %v1735 = vadd.f32 %v177, %v1727
    %v1736 = vadd.f32 %v252, %v1728
    %v1737 = vadd.f32 %v254, %v1729
    %v1738 = vxor.u32 %v1734, 2147483648
    %v1739 = vxor.u32 %v1735, 2147483648
    %v1740 = vxor.u32 %v1736, 2147483648
    %v1741 = vmul.f32 %v1738, 1.442695
    %v1742 = vpow.pop %v1741
    %v1743 = vmul.f32 %v1739, 1.442695
    %v1744 = vpow.pop %v1743
    %v1745 = vmul.f32 %v1740, 1.442695
    %v1746 = vpow.pop %v1745
    %v1747 = vadd.f32 %v1742, 1.0
    %v1748 = vadd.f32 %v1744, 1.0
    %v1749 = vadd.f32 %v1746, 1.0
    %v1750 = vrcp.pop %v1747
    %v1751 = vmul.f32 1.0, %v1750
    %v1752 = vrcp.pop %v1748
    %v1753 = vmul.f32 1.0, %v1752
    %v1754 = vrcp.pop %v1749
    %v1755 = vmul.f32 1.0, %v1754
    %v1756 = vtanh.pop %v1737
    %v1758 = vrot.slane %v1572, 6
    %v1760 = vmul.f32 %v1753, %v1758
    %v1761 = vmul.f32 %v1751, %v1756
    %v1762 = vadd.f32 %v1760, %v1761
    %v1763 = vtanh.pop %v1762
    %v1764 = vmul.f32 %v1755, %v1763
    %1765 = vst.msk [vmem:[#allocation2 + $0x8] sm:$0xc0] %vm1017, %v1764
    %v1766 = vld [vmem:[#allocation2] sm:$0xff]
    %v1767 = vld [vmem:[#allocation2 + $0x8] sm:$0xff]
    %s1768 = scalar_lea.vmem [#allocation4], 128
    %v1769 = vld [vmem:[%s1768] sm:$0xff]
    %v1770 = vld [vmem:[%s1768 + $0x8] sm:$0xff]
    %v1771 = vld [vmem:[%s1768 + $0x10] sm:$0xff]
    %v1772 = vld [vmem:[%s1768 + $0x18] sm:$0xff]
    %v1773 = vld [vmem:[%s1768 + $0x20] sm:$0xff]
    %v1774 = vld [vmem:[%s1768 + $0x28] sm:$0xff]
    %v1775 = vld [vmem:[%s1768 + $0x30] sm:$0xff]
    %v1776 = vld [vmem:[%s1768 + $0x38] sm:$0xff]
    %v1777 = vld [vmem:[%s1768 + $0x40] sm:$0xff]
    %v1778 = vld [vmem:[%s1768 + $0x48] sm:$0xff]
    %v1779 = vld [vmem:[%s1768 + $0x50] sm:$0xff]
    %v1780 = vld [vmem:[%s1768 + $0x58] sm:$0xff]
    %v1781 = vld [vmem:[%s1768 + $0x60] sm:$0xff]
    %v1782 = vld [vmem:[%s1768 + $0x68] sm:$0xff]
    %v1783 = vld [vmem:[%s1768 + $0x70] sm:$0xff]
    %v1784 = vld [vmem:[%s1768 + $0x78] sm:$0xff]
    %s1785 = scalar_lea.vmem %s3, 4
    %v1786 = vld [vmem:[%s1785] sm:$0xf]
    %v1788 = vlaneseq
    %v1789 = vshrl.u32 %v1788, 7
    %v1790 = vsub.s32 0, %v1789
    %v1791 = vrot.slane %v1786, %v1790
    %v1792 = vlaneseq
    %v1793 = vshrl.u32 %v1792, 7
    %v1794 = vsub.s32 1, %v1793
    %v1795 = vrot.slane %v1786, %v1794
    %v1796 = vlaneseq
    %v1797 = vshrl.u32 %v1796, 7
    %v1798 = vsub.s32 2, %v1797
    %v1799 = vrot.slane %v1786, %v1798
    %v1800 = vlaneseq
    %v1801 = vshrl.u32 %v1800, 7
    %v1802 = vsub.s32 3, %v1801
    %v1803 = vrot.slane %v1786, %v1802
    %v1809 = vsel %vm53, %v1766, 0
    %v1812 = vsel %vm53, %v1767, 0
    %1814 = vmatprep.subr.mxu0 0.0
    %1815 = vmatpush1.msra.mxu0 0.0
    %1816 = vmatprep.subr.mxu0 0.0
    %1817 = vmatpush1.msra.mxu0 0.0
    %1818 = vmatprep.subr.mxu0 0.0
    %1819 = vmatpush1.msra.mxu0 0.0
    %1820 = vmatprep.subr.mxu0 0.0
    %1821 = vmatpush1.msra.mxu0 0.0
    %1822 = vmatprep.subr.mxu0 0.0
    %1823 = vmatpush1.msra.mxu0 0.0
    %1824 = vmatprep.subr.mxu0 0.0
    %1825 = vmatpush1.msra.mxu0 0.0
    %1826 = vmatprep.subr.mxu0 0.0
    %1827 = vmatpush1.msra.mxu0 0.0
    %1828 = vmatprep.subr.mxu0 0.0
    %1829 = vmatpush1.msra.mxu0 0.0
    %1830 = vmatprep.subr.mxu0 0.0
    %1831 = vmatpush1.msra.mxu0 0.0
    %1832 = vmatprep.subr.mxu0 0.0
    %1833 = vmatpush1.msra.mxu0 0.0
    %1834 = vmatprep.subr.mxu0 0.0
    %1835 = vmatpush1.msra.mxu0 0.0
    %1836 = vmatprep.subr.mxu0 0.0
    %1837 = vmatpush1.msra.mxu0 0.0
    %1838 = vmatprep.subr.mxu0 %v1782
    %1839 = vmatpush1.msra.mxu0 %v1781
    %1840 = vmatprep.subr.mxu0 %v1778
    %1841 = vmatpush1.msra.mxu0 %v1777
    %1842 = vmatprep.subr.mxu0 %v1774
    %1843 = vmatpush1.msra.mxu0 %v1773
    %1844 = vmatprep.subr.mxu0 %v1770
    %1845 = vmatpush1.msra.mxu0 %v1769
    %1846 = vmatprep.subr.mxu0 0.0
    %1847 = vmatpush2.msra.mxu0 0.0
    %1848 = vmatprep.subr.mxu0 0.0
    %1849 = vmatpush2.msra.mxu0 0.0
    %1850 = vmatprep.subr.mxu0 0.0
    %1851 = vmatpush2.msra.mxu0 0.0
    %1852 = vmatprep.subr.mxu0 0.0
    %1853 = vmatpush2.msra.mxu0 0.0
    %1854 = vmatprep.subr.mxu0 0.0
    %1855 = vmatpush2.msra.mxu0 0.0
    %1856 = vmatprep.subr.mxu0 0.0
    %1857 = vmatpush2.msra.mxu0 0.0
    %1858 = vmatprep.subr.mxu0 0.0
    %1859 = vmatpush2.msra.mxu0 0.0
    %1860 = vmatprep.subr.mxu0 0.0
    %1861 = vmatpush2.msra.mxu0 0.0
    %1862 = vmatprep.subr.mxu0 0.0
    %1863 = vmatpush2.msra.mxu0 0.0
    %1864 = vmatprep.subr.mxu0 0.0
    %1865 = vmatpush2.msra.mxu0 0.0
    %1866 = vmatprep.subr.mxu0 0.0
    %1867 = vmatpush2.msra.mxu0 0.0
    %1868 = vmatprep.subr.mxu0 0.0
    %1869 = vmatpush2.msra.mxu0 0.0
    %1870 = vmatprep.subr.mxu0 0.0
    %1871 = vmatpush2.msra.mxu0 0.0
    %1872 = vmatprep.subr.mxu0 0.0
    %1873 = vmatpush2.msra.mxu0 0.0
    %1874 = vmatprep.subr.mxu0 0.0
    %1875 = vmatpush2.msra.mxu0 0.0
    %1876 = vmatprep.subr.mxu0 0.0
    %1877 = vmatpush2.msra.mxu0 0.0
    %1878 = vmatprep.mubr.f32.mxu0 0.0
    %1879 = vmatmul.mubr.f32.gmra.mxu0 %v1809
    %v1880 = vpop.f32.mrf.mxu0
    %v1881 = vadd.f32 %v1791, %v1880
    %v1882 = vpop.f32.mrf.mxu0
    %v1883 = vadd.f32 %v1795, %v1882
    %1884 = vmatprep.mubr.f32.mxu0 0.0
    %1885 = vmatmul.mubr.f32.gmra.mxu0 %v1812
    %v1886 = vpop.f32.mrf.mxu0
    %v1887 = vadd.f32 %v1791, %v1886
    %v1888 = vpop.f32.mrf.mxu0
    %v1889 = vadd.f32 %v1795, %v1888
    %1890 = vdwg.mxu0
    %1891 = vmatprep.subr.mxu0 0.0
    %1892 = vmatpush1.msra.mxu0 0.0
    %1893 = vmatprep.subr.mxu0 0.0
    %1894 = vmatpush1.msra.mxu0 0.0
    %1895 = vmatprep.subr.mxu0 0.0
    %1896 = vmatpush1.msra.mxu0 0.0
    %1897 = vmatprep.subr.mxu0 0.0
    %1898 = vmatpush1.msra.mxu0 0.0
    %1899 = vmatprep.subr.mxu0 0.0
    %1900 = vmatpush1.msra.mxu0 0.0
    %1901 = vmatprep.subr.mxu0 0.0
    %1902 = vmatpush1.msra.mxu0 0.0
    %1903 = vmatprep.subr.mxu0 0.0
    %1904 = vmatpush1.msra.mxu0 0.0
    %1905 = vmatprep.subr.mxu0 0.0
    %1906 = vmatpush1.msra.mxu0 0.0
    %1907 = vmatprep.subr.mxu0 0.0
    %1908 = vmatpush1.msra.mxu0 0.0
    %1909 = vmatprep.subr.mxu0 0.0
    %1910 = vmatpush1.msra.mxu0 0.0
    %1911 = vmatprep.subr.mxu0 0.0
    %1912 = vmatpush1.msra.mxu0 0.0
    %1913 = vmatprep.subr.mxu0 0.0
    %1914 = vmatpush1.msra.mxu0 0.0
    %1915 = vmatprep.subr.mxu0 %v1784
    %1916 = vmatpush1.msra.mxu0 %v1783
    %1917 = vmatprep.subr.mxu0 %v1780
    %1918 = vmatpush1.msra.mxu0 %v1779
    %1919 = vmatprep.subr.mxu0 %v1776
    %1920 = vmatpush1.msra.mxu0 %v1775
    %1921 = vmatprep.subr.mxu0 %v1772
    %1922 = vmatpush1.msra.mxu0 %v1771
    %1923 = vmatprep.subr.mxu0 0.0
    %1924 = vmatpush2.msra.mxu0 0.0
    %1925 = vmatprep.subr.mxu0 0.0
    %1926 = vmatpush2.msra.mxu0 0.0
    %1927 = vmatprep.subr.mxu0 0.0
    %1928 = vmatpush2.msra.mxu0 0.0
    %1929 = vmatprep.subr.mxu0 0.0
    %1930 = vmatpush2.msra.mxu0 0.0
    %1931 = vmatprep.subr.mxu0 0.0
    %1932 = vmatpush2.msra.mxu0 0.0
    %1933 = vmatprep.subr.mxu0 0.0
    %1934 = vmatpush2.msra.mxu0 0.0
    %1935 = vmatprep.subr.mxu0 0.0
    %1936 = vmatpush2.msra.mxu0 0.0
    %1937 = vmatprep.subr.mxu0 0.0
    %1938 = vmatpush2.msra.mxu0 0.0
    %1939 = vmatprep.subr.mxu0 0.0
    %1940 = vmatpush2.msra.mxu0 0.0
    %1941 = vmatprep.subr.mxu0 0.0
    %1942 = vmatpush2.msra.mxu0 0.0
    %1943 = vmatprep.subr.mxu0 0.0
    %1944 = vmatpush2.msra.mxu0 0.0
    %1945 = vmatprep.subr.mxu0 0.0
    %1946 = vmatpush2.msra.mxu0 0.0
    %1947 = vmatprep.subr.mxu0 0.0
    %1948 = vmatpush2.msra.mxu0 0.0
    %1949 = vmatprep.subr.mxu0 0.0
    %1950 = vmatpush2.msra.mxu0 0.0
    %1951 = vmatprep.subr.mxu0 0.0
    %1952 = vmatpush2.msra.mxu0 0.0
    %1953 = vmatprep.subr.mxu0 0.0
    %1954 = vmatpush2.msra.mxu0 0.0
    %1955 = vmatprep.mubr.f32.mxu0 0.0
    %1956 = vmatmul.mubr.f32.gmra.mxu0 %v1809
    %v1957 = vpop.f32.mrf.mxu0
    %v1958 = vadd.f32 %v1799, %v1957
    %v1959 = vpop.f32.mrf.mxu0
    %v1960 = vadd.f32 %v1803, %v1959
    %1961 = vmatprep.mubr.f32.mxu0 0.0
    %1962 = vmatmul.mubr.f32.gmra.mxu0 %v1812
    %v1963 = vpop.f32.mrf.mxu0
    %v1964 = vadd.f32 %v1799, %v1963
    %v1965 = vpop.f32.mrf.mxu0
    %v1966 = vadd.f32 %v1803, %v1965
    %1967 = vdwg.mxu0
    %s1968 = scalar_lea.vmem [#allocation6], 128
    %v1969 = vld [vmem:[%s1968] sm:$0xff]
    %v1970 = vld [vmem:[%s1968 + $0x8] sm:$0xff]
    %v1971 = vld [vmem:[%s1968 + $0x10] sm:$0xff]
    %v1972 = vld [vmem:[%s1968 + $0x18] sm:$0xff]
    %v1973 = vld [vmem:[%s1968 + $0x20] sm:$0xff]
    %v1974 = vld [vmem:[%s1968 + $0x28] sm:$0xff]
    %v1975 = vld [vmem:[%s1968 + $0x30] sm:$0xff]
    %v1976 = vld [vmem:[%s1968 + $0x38] sm:$0xff]
    %v1977 = vld [vmem:[%s1968 + $0x40] sm:$0xff]
    %v1978 = vld [vmem:[%s1968 + $0x48] sm:$0xff]
    %v1979 = vld [vmem:[%s1968 + $0x50] sm:$0xff]
    %v1980 = vld [vmem:[%s1968 + $0x58] sm:$0xff]
    %v1981 = vld [vmem:[%s1968 + $0x60] sm:$0xff]
    %v1982 = vld [vmem:[%s1968 + $0x68] sm:$0xff]
    %v1983 = vld [vmem:[%s1968 + $0x70] sm:$0xff]
    %v1984 = vld [vmem:[%s1968 + $0x78] sm:$0xff]
    %1985 = vmatprep.subr.mxu0 0.0
    %1986 = vmatpush1.msra.mxu0 0.0
    %1987 = vmatprep.subr.mxu0 0.0
    %1988 = vmatpush1.msra.mxu0 0.0
    %1989 = vmatprep.subr.mxu0 0.0
    %1990 = vmatpush1.msra.mxu0 0.0
    %1991 = vmatprep.subr.mxu0 0.0
    %1992 = vmatpush1.msra.mxu0 0.0
    %1993 = vmatprep.subr.mxu0 0.0
    %1994 = vmatpush1.msra.mxu0 0.0
    %1995 = vmatprep.subr.mxu0 0.0
    %1996 = vmatpush1.msra.mxu0 0.0
    %1997 = vmatprep.subr.mxu0 0.0
    %1998 = vmatpush1.msra.mxu0 0.0
    %1999 = vmatprep.subr.mxu0 0.0
    %2000 = vmatpush1.msra.mxu0 0.0
    %2001 = vmatprep.subr.mxu0 0.0
    %2002 = vmatpush1.msra.mxu0 0.0
    %2003 = vmatprep.subr.mxu0 0.0
    %2004 = vmatpush1.msra.mxu0 0.0
    %2005 = vmatprep.subr.mxu0 0.0
    %2006 = vmatpush1.msra.mxu0 0.0
    %2007 = vmatprep.subr.mxu0 0.0
    %2008 = vmatpush1.msra.mxu0 0.0
    %2009 = vmatprep.subr.mxu0 %v1982
    %2010 = vmatpush1.msra.mxu0 %v1981
    %2011 = vmatprep.subr.mxu0 %v1978
    %2012 = vmatpush1.msra.mxu0 %v1977
    %2013 = vmatprep.subr.mxu0 %v1974
    %2014 = vmatpush1.msra.mxu0 %v1973
    %2015 = vmatprep.subr.mxu0 %v1970
    %2016 = vmatpush1.msra.mxu0 %v1969
    %2017 = vmatprep.subr.mxu0 0.0
    %2018 = vmatpush2.msra.mxu0 0.0
    %2019 = vmatprep.subr.mxu0 0.0
    %2020 = vmatpush2.msra.mxu0 0.0
    %2021 = vmatprep.subr.mxu0 0.0
    %2022 = vmatpush2.msra.mxu0 0.0
    %2023 = vmatprep.subr.mxu0 0.0
    %2024 = vmatpush2.msra.mxu0 0.0
    %2025 = vmatprep.subr.mxu0 0.0
    %2026 = vmatpush2.msra.mxu0 0.0
    %2027 = vmatprep.subr.mxu0 0.0
    %2028 = vmatpush2.msra.mxu0 0.0
    %2029 = vmatprep.subr.mxu0 0.0
    %2030 = vmatpush2.msra.mxu0 0.0
    %2031 = vmatprep.subr.mxu0 0.0
    %2032 = vmatpush2.msra.mxu0 0.0
    %2033 = vmatprep.subr.mxu0 0.0
    %2034 = vmatpush2.msra.mxu0 0.0
    %2035 = vmatprep.subr.mxu0 0.0
    %2036 = vmatpush2.msra.mxu0 0.0
    %2037 = vmatprep.subr.mxu0 0.0
    %2038 = vmatpush2.msra.mxu0 0.0
    %2039 = vmatprep.subr.mxu0 0.0
    %2040 = vmatpush2.msra.mxu0 0.0
    %2041 = vmatprep.subr.mxu0 0.0
    %2042 = vmatpush2.msra.mxu0 0.0
    %2043 = vmatprep.subr.mxu0 0.0
    %2044 = vmatpush2.msra.mxu0 0.0
    %2045 = vmatprep.subr.mxu0 0.0
    %2046 = vmatpush2.msra.mxu0 0.0
    %2047 = vmatprep.subr.mxu0 0.0
    %2048 = vmatpush2.msra.mxu0 0.0
    %2049 = vmatprep.mubr.f32.mxu0 0.0
    %2050 = vmatmul.mubr.f32.gmra.mxu0 %v273
    %v2051 = vpop.f32.mrf.mxu0
    %v2052 = vadd.f32 0.0, %v2051
    %v2053 = vpop.f32.mrf.mxu0
    %v2054 = vadd.f32 0.0, %v2053
    %2055 = vdwg.mxu0
    %2056 = vmatprep.subr.mxu0 0.0
    %2057 = vmatpush1.msra.mxu0 0.0
    %2058 = vmatprep.subr.mxu0 0.0
    %2059 = vmatpush1.msra.mxu0 0.0
    %2060 = vmatprep.subr.mxu0 0.0
    %2061 = vmatpush1.msra.mxu0 0.0
    %2062 = vmatprep.subr.mxu0 0.0
    %2063 = vmatpush1.msra.mxu0 0.0
    %2064 = vmatprep.subr.mxu0 0.0
    %2065 = vmatpush1.msra.mxu0 0.0
    %2066 = vmatprep.subr.mxu0 0.0
    %2067 = vmatpush1.msra.mxu0 0.0
    %2068 = vmatprep.subr.mxu0 0.0
    %2069 = vmatpush1.msra.mxu0 0.0
    %2070 = vmatprep.subr.mxu0 0.0
    %2071 = vmatpush1.msra.mxu0 0.0
    %2072 = vmatprep.subr.mxu0 0.0
    %2073 = vmatpush1.msra.mxu0 0.0
    %2074 = vmatprep.subr.mxu0 0.0
    %2075 = vmatpush1.msra.mxu0 0.0
    %2076 = vmatprep.subr.mxu0 0.0
    %2077 = vmatpush1.msra.mxu0 0.0
    %2078 = vmatprep.subr.mxu0 0.0
    %2079 = vmatpush1.msra.mxu0 0.0
    %2080 = vmatprep.subr.mxu0 %v1984
    %2081 = vmatpush1.msra.mxu0 %v1983
    %2082 = vmatprep.subr.mxu0 %v1980
    %2083 = vmatpush1.msra.mxu0 %v1979
    %2084 = vmatprep.subr.mxu0 %v1976
    %2085 = vmatpush1.msra.mxu0 %v1975
    %2086 = vmatprep.subr.mxu0 %v1972
    %2087 = vmatpush1.msra.mxu0 %v1971
    %2088 = vmatprep.subr.mxu0 0.0
    %2089 = vmatpush2.msra.mxu0 0.0
    %2090 = vmatprep.subr.mxu0 0.0
    %2091 = vmatpush2.msra.mxu0 0.0
    %2092 = vmatprep.subr.mxu0 0.0
    %2093 = vmatpush2.msra.mxu0 0.0
    %2094 = vmatprep.subr.mxu0 0.0
    %2095 = vmatpush2.msra.mxu0 0.0
    %2096 = vmatprep.subr.mxu0 0.0
    %2097 = vmatpush2.msra.mxu0 0.0
    %2098 = vmatprep.subr.mxu0 0.0
    %2099 = vmatpush2.msra.mxu0 0.0
    %2100 = vmatprep.subr.mxu0 0.0
    %2101 = vmatpush2.msra.mxu0 0.0
    %2102 = vmatprep.subr.mxu0 0.0
    %2103 = vmatpush2.msra.mxu0 0.0
    %2104 = vmatprep.subr.mxu0 0.0
    %2105 = vmatpush2.msra.mxu0 0.0
    %2106 = vmatprep.subr.mxu0 0.0
    %2107 = vmatpush2.msra.mxu0 0.0
    %2108 = vmatprep.subr.mxu0 0.0
    %2109 = vmatpush2.msra.mxu0 0.0
    %2110 = vmatprep.subr.mxu0 0.0
    %2111 = vmatpush2.msra.mxu0 0.0
    %2112 = vmatprep.subr.mxu0 0.0
    %2113 = vmatpush2.msra.mxu0 0.0
    %2114 = vmatprep.subr.mxu0 0.0
    %2115 = vmatpush2.msra.mxu0 0.0
    %2116 = vmatprep.subr.mxu0 0.0
    %2117 = vmatpush2.msra.mxu0 0.0
    %2118 = vmatprep.subr.mxu0 0.0
    %2119 = vmatpush2.msra.mxu0 0.0
    %2120 = vmatprep.mubr.f32.mxu0 0.0
    %2121 = vmatmul.mubr.f32.gmra.mxu0 %v273
    %v2122 = vpop.f32.mrf.mxu0
    %v2123 = vadd.f32 0.0, %v2122
    %v2124 = vpop.f32.mrf.mxu0
    %v2125 = vadd.f32 0.0, %v2124
    %2126 = vdwg.mxu0
    %v2127 = vadd.f32 %v1881, %v2052
    %v2128 = vadd.f32 %v1883, %v2054
    %v2129 = vadd.f32 %v1958, %v2123
    %v2130 = vadd.f32 %v1960, %v2125
    %v2131 = vxor.u32 %v2127, 2147483648
    %v2132 = vxor.u32 %v2128, 2147483648
    %v2133 = vxor.u32 %v2129, 2147483648
    %v2134 = vmul.f32 %v2131, 1.442695
    %v2135 = vpow.pop %v2134
    %v2136 = vmul.f32 %v2132, 1.442695
    %v2137 = vpow.pop %v2136
    %v2138 = vmul.f32 %v2133, 1.442695
    %v2139 = vpow.pop %v2138
    %v2140 = vadd.f32 %v2135, 1.0
    %v2141 = vadd.f32 %v2137, 1.0
    %v2142 = vadd.f32 %v2139, 1.0
    %v2143 = vrcp.pop %v2140
    %v2144 = vmul.f32 1.0, %v2143
    %v2145 = vrcp.pop %v2141
    %v2146 = vmul.f32 1.0, %v2145
    %v2147 = vrcp.pop %v2142
    %v2148 = vmul.f32 1.0, %v2147
    %v2149 = vtanh.pop %v2130
    %v2150 = vmul.f32 %v2146, 0.0
    %v2151 = vmul.f32 %v2144, %v2149
    %v2152 = vadd.f32 %v2150, %v2151
    %v2153 = vtanh.pop %v2152
    %v2154 = vmul.f32 %v2148, %v2153
    %v2156 = vsel %vm53, %v2154, 0
    %2158 = vmatprep.subr.mxu0 0.0
    %2159 = vmatpush1.msra.mxu0 0.0
    %2160 = vmatprep.subr.mxu0 0.0
    %2161 = vmatpush1.msra.mxu0 0.0
    %2162 = vmatprep.subr.mxu0 0.0
    %2163 = vmatpush1.msra.mxu0 0.0
    %2164 = vmatprep.subr.mxu0 0.0
    %2165 = vmatpush1.msra.mxu0 0.0
    %2166 = vmatprep.subr.mxu0 0.0
    %2167 = vmatpush1.msra.mxu0 0.0
    %2168 = vmatprep.subr.mxu0 0.0
    %2169 = vmatpush1.msra.mxu0 0.0
    %2170 = vmatprep.subr.mxu0 0.0
    %2171 = vmatpush1.msra.mxu0 0.0
    %2172 = vmatprep.subr.mxu0 0.0
    %2173 = vmatpush1.msra.mxu0 0.0
    %2174 = vmatprep.subr.mxu0 0.0
    %2175 = vmatpush1.msra.mxu0 0.0
    %2176 = vmatprep.subr.mxu0 0.0
    %2177 = vmatpush1.msra.mxu0 0.0
    %2178 = vmatprep.subr.mxu0 0.0
    %2179 = vmatpush1.msra.mxu0 0.0
    %2180 = vmatprep.subr.mxu0 0.0
    %2181 = vmatpush1.msra.mxu0 0.0
    %2182 = vmatprep.subr.mxu0 %v1982
    %2183 = vmatpush1.msra.mxu0 %v1981
    %2184 = vmatprep.subr.mxu0 %v1978
    %2185 = vmatpush1.msra.mxu0 %v1977
    %2186 = vmatprep.subr.mxu0 %v1974
    %2187 = vmatpush1.msra.mxu0 %v1973
    %2188 = vmatprep.subr.mxu0 %v1970
    %2189 = vmatpush1.msra.mxu0 %v1969
    %2190 = vmatprep.subr.mxu0 0.0
    %2191 = vmatpush2.msra.mxu0 0.0
    %2192 = vmatprep.subr.mxu0 0.0
    %2193 = vmatpush2.msra.mxu0 0.0
    %2194 = vmatprep.subr.mxu0 0.0
    %2195 = vmatpush2.msra.mxu0 0.0
    %2196 = vmatprep.subr.mxu0 0.0
    %2197 = vmatpush2.msra.mxu0 0.0
    %2198 = vmatprep.subr.mxu0 0.0
    %2199 = vmatpush2.msra.mxu0 0.0
    %2200 = vmatprep.subr.mxu0 0.0
    %2201 = vmatpush2.msra.mxu0 0.0
    %2202 = vmatprep.subr.mxu0 0.0
    %2203 = vmatpush2.msra.mxu0 0.0
    %2204 = vmatprep.subr.mxu0 0.0
    %2205 = vmatpush2.msra.mxu0 0.0
    %2206 = vmatprep.subr.mxu0 0.0
    %2207 = vmatpush2.msra.mxu0 0.0
    %2208 = vmatprep.subr.mxu0 0.0
    %2209 = vmatpush2.msra.mxu0 0.0
    %2210 = vmatprep.subr.mxu0 0.0
    %2211 = vmatpush2.msra.mxu0 0.0
    %2212 = vmatprep.subr.mxu0 0.0
    %2213 = vmatpush2.msra.mxu0 0.0
    %2214 = vmatprep.subr.mxu0 0.0
    %2215 = vmatpush2.msra.mxu0 0.0
    %2216 = vmatprep.subr.mxu0 0.0
    %2217 = vmatpush2.msra.mxu0 0.0
    %2218 = vmatprep.subr.mxu0 0.0
    %2219 = vmatpush2.msra.mxu0 0.0
    %2220 = vmatprep.subr.mxu0 0.0
    %2221 = vmatpush2.msra.mxu0 0.0
    %2222 = vmatprep.mubr.f32.mxu0 0.0
    %2223 = vmatmul.mubr.f32.gmra.mxu0 %v2156
    %v2224 = vpop.f32.mrf.mxu0
    %v2225 = vadd.f32 0.0, %v2224
    %v2226 = vpop.f32.mrf.mxu0
    %v2227 = vadd.f32 0.0, %v2226
    %2228 = vdwg.mxu0
    %2229 = vmatprep.subr.mxu0 0.0
    %2230 = vmatpush1.msra.mxu0 0.0
    %2231 = vmatprep.subr.mxu0 0.0
    %2232 = vmatpush1.msra.mxu0 0.0
    %2233 = vmatprep.subr.mxu0 0.0
    %2234 = vmatpush1.msra.mxu0 0.0
    %2235 = vmatprep.subr.mxu0 0.0
    %2236 = vmatpush1.msra.mxu0 0.0
    %2237 = vmatprep.subr.mxu0 0.0
    %2238 = vmatpush1.msra.mxu0 0.0
    %2239 = vmatprep.subr.mxu0 0.0
    %2240 = vmatpush1.msra.mxu0 0.0
    %2241 = vmatprep.subr.mxu0 0.0
    %2242 = vmatpush1.msra.mxu0 0.0
    %2243 = vmatprep.subr.mxu0 0.0
    %2244 = vmatpush1.msra.mxu0 0.0
    %2245 = vmatprep.subr.mxu0 0.0
    %2246 = vmatpush1.msra.mxu0 0.0
    %2247 = vmatprep.subr.mxu0 0.0
    %2248 = vmatpush1.msra.mxu0 0.0
    %2249 = vmatprep.subr.mxu0 0.0
    %2250 = vmatpush1.msra.mxu0 0.0
    %2251 = vmatprep.subr.mxu0 0.0
    %2252 = vmatpush1.msra.mxu0 0.0
    %2253 = vmatprep.subr.mxu0 %v1984
    %2254 = vmatpush1.msra.mxu0 %v1983
    %2255 = vmatprep.subr.mxu0 %v1980
    %2256 = vmatpush1.msra.mxu0 %v1979
    %2257 = vmatprep.subr.mxu0 %v1976
    %2258 = vmatpush1.msra.mxu0 %v1975
    %2259 = vmatprep.subr.mxu0 %v1972
    %2260 = vmatpush1.msra.mxu0 %v1971
    %2261 = vmatprep.subr.mxu0 0.0
    %2262 = vmatpush2.msra.mxu0 0.0
    %2263 = vmatprep.subr.mxu0 0.0
    %2264 = vmatpush2.msra.mxu0 0.0
    %2265 = vmatprep.subr.mxu0 0.0
    %2266 = vmatpush2.msra.mxu0 0.0
    %2267 = vmatprep.subr.mxu0 0.0
    %2268 = vmatpush2.msra.mxu0 0.0
    %2269 = vmatprep.subr.mxu0 0.0
    %2270 = vmatpush2.msra.mxu0 0.0
    %2271 = vmatprep.subr.mxu0 0.0
    %2272 = vmatpush2.msra.mxu0 0.0
    %2273 = vmatprep.subr.mxu0 0.0
    %2274 = vmatpush2.msra.mxu0 0.0
    %2275 = vmatprep.subr.mxu0 0.0
    %2276 = vmatpush2.msra.mxu0 0.0
    %2277 = vmatprep.subr.mxu0 0.0
    %2278 = vmatpush2.msra.mxu0 0.0
    %2279 = vmatprep.subr.mxu0 0.0
    %2280 = vmatpush2.msra.mxu0 0.0
    %2281 = vmatprep.subr.mxu0 0.0
    %2282 = vmatpush2.msra.mxu0 0.0
    %2283 = vmatprep.subr.mxu0 0.0
    %2284 = vmatpush2.msra.mxu0 0.0
    %2285 = vmatprep.subr.mxu0 0.0
    %2286 = vmatpush2.msra.mxu0 0.0
    %2287 = vmatprep.subr.mxu0 0.0
    %2288 = vmatpush2.msra.mxu0 0.0
    %2289 = vmatprep.subr.mxu0 0.0
    %2290 = vmatpush2.msra.mxu0 0.0
    %2291 = vmatprep.subr.mxu0 0.0
    %2292 = vmatpush2.msra.mxu0 0.0
    %2293 = vmatprep.mubr.f32.mxu0 0.0
    %2294 = vmatmul.mubr.f32.gmra.mxu0 %v2156
    %v2295 = vpop.f32.mrf.mxu0
    %v2296 = vadd.f32 0.0, %v2295
    %v2297 = vpop.f32.mrf.mxu0
    %v2298 = vadd.f32 0.0, %v2297
    %2299 = vdwg.mxu0
    %v2304 = vrot.slane %v2225, 6
    %v2305 = vrot.slane %v2227, 6
    %v2306 = vrot.slane %v2296, 6
    %v2307 = vrot.slane %v2298, 6
    %v2312 = vadd.f32 %v1881, %v2304
    %v2313 = vadd.f32 %v1883, %v2305
    %v2314 = vadd.f32 %v1958, %v2306
    %v2315 = vadd.f32 %v1960, %v2307
    %v2316 = vxor.u32 %v2312, 2147483648
    %v2317 = vxor.u32 %v2313, 2147483648
    %v2318 = vxor.u32 %v2314, 2147483648
    %v2319 = vmul.f32 %v2316, 1.442695
    %v2320 = vpow.pop %v2319
    %v2321 = vmul.f32 %v2317, 1.442695
    %v2322 = vpow.pop %v2321
    %v2323 = vmul.f32 %v2318, 1.442695
    %v2324 = vpow.pop %v2323
    %v2325 = vadd.f32 %v2320, 1.0
    %v2326 = vadd.f32 %v2322, 1.0
    %v2327 = vadd.f32 %v2324, 1.0
    %v2328 = vrcp.pop %v2325
    %v2329 = vmul.f32 1.0, %v2328
    %v2330 = vrcp.pop %v2326
    %v2331 = vmul.f32 1.0, %v2330
    %v2332 = vrcp.pop %v2327
    %v2333 = vmul.f32 1.0, %v2332
    %v2334 = vtanh.pop %v2315
    %v2336 = vrot.slane %v2152, 6
    %v2338 = vmul.f32 %v2331, %v2336
    %v2339 = vmul.f32 %v2329, %v2334
    %v2340 = vadd.f32 %v2338, %v2339
    %v2341 = vtanh.pop %v2340
    %v2342 = vmul.f32 %v2333, %v2341
    %v2344 = vrot.slane %v2342, 2
    %v2345 = vsel %vm53, %v2344, 0
    %2347 = vmatprep.subr.mxu0 0.0
    %2348 = vmatpush1.msra.mxu0 0.0
    %2349 = vmatprep.subr.mxu0 0.0
    %2350 = vmatpush1.msra.mxu0 0.0
    %2351 = vmatprep.subr.mxu0 0.0
    %2352 = vmatpush1.msra.mxu0 0.0
    %2353 = vmatprep.subr.mxu0 0.0
    %2354 = vmatpush1.msra.mxu0 0.0
    %2355 = vmatprep.subr.mxu0 0.0
    %2356 = vmatpush1.msra.mxu0 0.0
    %2357 = vmatprep.subr.mxu0 0.0
    %2358 = vmatpush1.msra.mxu0 0.0
    %2359 = vmatprep.subr.mxu0 0.0
    %2360 = vmatpush1.msra.mxu0 0.0
    %2361 = vmatprep.subr.mxu0 0.0
    %2362 = vmatpush1.msra.mxu0 0.0
    %2363 = vmatprep.subr.mxu0 0.0
    %2364 = vmatpush1.msra.mxu0 0.0
    %2365 = vmatprep.subr.mxu0 0.0
    %2366 = vmatpush1.msra.mxu0 0.0
    %2367 = vmatprep.subr.mxu0 0.0
    %2368 = vmatpush1.msra.mxu0 0.0
    %2369 = vmatprep.subr.mxu0 0.0
    %2370 = vmatpush1.msra.mxu0 0.0
    %2371 = vmatprep.subr.mxu0 %v1982
    %2372 = vmatpush1.msra.mxu0 %v1981
    %2373 = vmatprep.subr.mxu0 %v1978
    %2374 = vmatpush1.msra.mxu0 %v1977
    %2375 = vmatprep.subr.mxu0 %v1974
    %2376 = vmatpush1.msra.mxu0 %v1973
    %2377 = vmatprep.subr.mxu0 %v1970
    %2378 = vmatpush1.msra.mxu0 %v1969
    %2379 = vmatprep.subr.mxu0 0.0
    %2380 = vmatpush2.msra.mxu0 0.0
    %2381 = vmatprep.subr.mxu0 0.0
    %2382 = vmatpush2.msra.mxu0 0.0
    %2383 = vmatprep.subr.mxu0 0.0
    %2384 = vmatpush2.msra.mxu0 0.0
    %2385 = vmatprep.subr.mxu0 0.0
    %2386 = vmatpush2.msra.mxu0 0.0
    %2387 = vmatprep.subr.mxu0 0.0
    %2388 = vmatpush2.msra.mxu0 0.0
    %2389 = vmatprep.subr.mxu0 0.0
    %2390 = vmatpush2.msra.mxu0 0.0
    %2391 = vmatprep.subr.mxu0 0.0
    %2392 = vmatpush2.msra.mxu0 0.0
    %2393 = vmatprep.subr.mxu0 0.0
    %2394 = vmatpush2.msra.mxu0 0.0
    %2395 = vmatprep.subr.mxu0 0.0
    %2396 = vmatpush2.msra.mxu0 0.0
    %2397 = vmatprep.subr.mxu0 0.0
    %2398 = vmatpush2.msra.mxu0 0.0
    %2399 = vmatprep.subr.mxu0 0.0
    %2400 = vmatpush2.msra.mxu0 0.0
    %2401 = vmatprep.subr.mxu0 0.0
    %2402 = vmatpush2.msra.mxu0 0.0
    %2403 = vmatprep.subr.mxu0 0.0
    %2404 = vmatpush2.msra.mxu0 0.0
    %2405 = vmatprep.subr.mxu0 0.0
    %2406 = vmatpush2.msra.mxu0 0.0
    %2407 = vmatprep.subr.mxu0 0.0
    %2408 = vmatpush2.msra.mxu0 0.0
    %2409 = vmatprep.subr.mxu0 0.0
    %2410 = vmatpush2.msra.mxu0 0.0
    %2411 = vmatprep.mubr.f32.mxu0 0.0
    %2412 = vmatmul.mubr.f32.gmra.mxu0 %v2345
    %v2413 = vpop.f32.mrf.mxu0
    %v2414 = vadd.f32 0.0, %v2413
    %v2415 = vpop.f32.mrf.mxu0
    %v2416 = vadd.f32 0.0, %v2415
    %2417 = vdwg.mxu0
    %2418 = vmatprep.subr.mxu0 0.0
    %2419 = vmatpush1.msra.mxu0 0.0
    %2420 = vmatprep.subr.mxu0 0.0
    %2421 = vmatpush1.msra.mxu0 0.0
    %2422 = vmatprep.subr.mxu0 0.0
    %2423 = vmatpush1.msra.mxu0 0.0
    %2424 = vmatprep.subr.mxu0 0.0
    %2425 = vmatpush1.msra.mxu0 0.0
    %2426 = vmatprep.subr.mxu0 0.0
    %2427 = vmatpush1.msra.mxu0 0.0
    %2428 = vmatprep.subr.mxu0 0.0
    %2429 = vmatpush1.msra.mxu0 0.0
    %2430 = vmatprep.subr.mxu0 0.0
    %2431 = vmatpush1.msra.mxu0 0.0
    %2432 = vmatprep.subr.mxu0 0.0
    %2433 = vmatpush1.msra.mxu0 0.0
    %2434 = vmatprep.subr.mxu0 0.0
    %2435 = vmatpush1.msra.mxu0 0.0
    %2436 = vmatprep.subr.mxu0 0.0
    %2437 = vmatpush1.msra.mxu0 0.0
    %2438 = vmatprep.subr.mxu0 0.0
    %2439 = vmatpush1.msra.mxu0 0.0
    %2440 = vmatprep.subr.mxu0 0.0
    %2441 = vmatpush1.msra.mxu0 0.0
    %2442 = vmatprep.subr.mxu0 %v1984
    %2443 = vmatpush1.msra.mxu0 %v1983
    %2444 = vmatprep.subr.mxu0 %v1980
    %2445 = vmatpush1.msra.mxu0 %v1979
    %2446 = vmatprep.subr.mxu0 %v1976
    %2447 = vmatpush1.msra.mxu0 %v1975
    %2448 = vmatprep.subr.mxu0 %v1972
    %2449 = vmatpush1.msra.mxu0 %v1971
    %2450 = vmatprep.subr.mxu0 0.0
    %2451 = vmatpush2.msra.mxu0 0.0
    %2452 = vmatprep.subr.mxu0 0.0
    %2453 = vmatpush2.msra.mxu0 0.0
    %2454 = vmatprep.subr.mxu0 0.0
    %2455 = vmatpush2.msra.mxu0 0.0
    %2456 = vmatprep.subr.mxu0 0.0
    %2457 = vmatpush2.msra.mxu0 0.0
    %2458 = vmatprep.subr.mxu0 0.0
    %2459 = vmatpush2.msra.mxu0 0.0
    %2460 = vmatprep.subr.mxu0 0.0
    %2461 = vmatpush2.msra.mxu0 0.0
    %2462 = vmatprep.subr.mxu0 0.0
    %2463 = vmatpush2.msra.mxu0 0.0
    %2464 = vmatprep.subr.mxu0 0.0
    %2465 = vmatpush2.msra.mxu0 0.0
    %2466 = vmatprep.subr.mxu0 0.0
    %2467 = vmatpush2.msra.mxu0 0.0
    %2468 = vmatprep.subr.mxu0 0.0
    %2469 = vmatpush2.msra.mxu0 0.0
    %2470 = vmatprep.subr.mxu0 0.0
    %2471 = vmatpush2.msra.mxu0 0.0
    %2472 = vmatprep.subr.mxu0 0.0
    %2473 = vmatpush2.msra.mxu0 0.0
    %2474 = vmatprep.subr.mxu0 0.0
    %2475 = vmatpush2.msra.mxu0 0.0
    %2476 = vmatprep.subr.mxu0 0.0
    %2477 = vmatpush2.msra.mxu0 0.0
    %2478 = vmatprep.subr.mxu0 0.0
    %2479 = vmatpush2.msra.mxu0 0.0
    %2480 = vmatprep.subr.mxu0 0.0
    %2481 = vmatpush2.msra.mxu0 0.0
    %2482 = vmatprep.mubr.f32.mxu0 0.0
    %2483 = vmatmul.mubr.f32.gmra.mxu0 %v2345
    %v2484 = vpop.f32.mrf.mxu0
    %v2485 = vadd.f32 0.0, %v2484
    %v2486 = vpop.f32.mrf.mxu0
    %v2487 = vadd.f32 0.0, %v2486
    %2488 = vdwg.mxu0
    %v2493 = vrot.slane %v2414, 4
    %v2494 = vrot.slane %v2416, 4
    %v2495 = vrot.slane %v2485, 4
    %v2496 = vrot.slane %v2487, 4
    %v2501 = vadd.f32 %v1881, %v2493
    %v2502 = vadd.f32 %v1883, %v2494
    %v2503 = vadd.f32 %v1958, %v2495
    %v2504 = vadd.f32 %v1960, %v2496
    %v2505 = vxor.u32 %v2501, 2147483648
    %v2506 = vxor.u32 %v2502, 2147483648
    %v2507 = vxor.u32 %v2503, 2147483648
    %v2508 = vmul.f32 %v2505, 1.442695
    %v2509 = vpow.pop %v2508
    %v2510 = vmul.f32 %v2506, 1.442695
    %v2511 = vpow.pop %v2510
    %v2512 = vmul.f32 %v2507, 1.442695
    %v2513 = vpow.pop %v2512
    %v2514 = vadd.f32 %v2509, 1.0
    %v2515 = vadd.f32 %v2511, 1.0
    %v2516 = vadd.f32 %v2513, 1.0
    %v2517 = vrcp.pop %v2514
    %v2518 = vmul.f32 1.0, %v2517
    %v2519 = vrcp.pop %v2515
    %v2520 = vmul.f32 1.0, %v2519
    %v2521 = vrcp.pop %v2516
    %v2522 = vmul.f32 1.0, %v2521
    %v2523 = vtanh.pop %v2504
    %v2525 = vrot.slane %v2340, 6
    %v2527 = vmul.f32 %v2520, %v2525
    %v2528 = vmul.f32 %v2518, %v2523
    %v2529 = vadd.f32 %v2527, %v2528
    %v2530 = vtanh.pop %v2529
    %v2531 = vmul.f32 %v2522, %v2530
    %v2533 = vrot.slane %v2531, 4
    %v2534 = vsel %vm53, %v2533, 0
    %2536 = vmatprep.subr.mxu0 0.0
    %2537 = vmatpush1.msra.mxu0 0.0
    %2538 = vmatprep.subr.mxu0 0.0
    %2539 = vmatpush1.msra.mxu0 0.0
    %2540 = vmatprep.subr.mxu0 0.0
    %2541 = vmatpush1.msra.mxu0 0.0
    %2542 = vmatprep.subr.mxu0 0.0
    %2543 = vmatpush1.msra.mxu0 0.0
    %2544 = vmatprep.subr.mxu0 0.0
    %2545 = vmatpush1.msra.mxu0 0.0
    %2546 = vmatprep.subr.mxu0 0.0
    %2547 = vmatpush1.msra.mxu0 0.0
    %2548 = vmatprep.subr.mxu0 0.0
    %2549 = vmatpush1.msra.mxu0 0.0
    %2550 = vmatprep.subr.mxu0 0.0
    %2551 = vmatpush1.msra.mxu0 0.0
    %2552 = vmatprep.subr.mxu0 0.0
    %2553 = vmatpush1.msra.mxu0 0.0
    %2554 = vmatprep.subr.mxu0 0.0
    %2555 = vmatpush1.msra.mxu0 0.0
    %2556 = vmatprep.subr.mxu0 0.0
    %2557 = vmatpush1.msra.mxu0 0.0
    %2558 = vmatprep.subr.mxu0 0.0
    %2559 = vmatpush1.msra.mxu0 0.0
    %2560 = vmatprep.subr.mxu0 %v1982
    %2561 = vmatpush1.msra.mxu0 %v1981
    %2562 = vmatprep.subr.mxu0 %v1978
    %2563 = vmatpush1.msra.mxu0 %v1977
    %2564 = vmatprep.subr.mxu0 %v1974
    %2565 = vmatpush1.msra.mxu0 %v1973
    %2566 = vmatprep.subr.mxu0 %v1970
    %2567 = vmatpush1.msra.mxu0 %v1969
    %2568 = vmatprep.subr.mxu0 0.0
    %2569 = vmatpush2.msra.mxu0 0.0
    %2570 = vmatprep.subr.mxu0 0.0
    %2571 = vmatpush2.msra.mxu0 0.0
    %2572 = vmatprep.subr.mxu0 0.0
    %2573 = vmatpush2.msra.mxu0 0.0
    %2574 = vmatprep.subr.mxu0 0.0
    %2575 = vmatpush2.msra.mxu0 0.0
    %2576 = vmatprep.subr.mxu0 0.0
    %2577 = vmatpush2.msra.mxu0 0.0
    %2578 = vmatprep.subr.mxu0 0.0
    %2579 = vmatpush2.msra.mxu0 0.0
    %2580 = vmatprep.subr.mxu0 0.0
    %2581 = vmatpush2.msra.mxu0 0.0
    %2582 = vmatprep.subr.mxu0 0.0
    %2583 = vmatpush2.msra.mxu0 0.0
    %2584 = vmatprep.subr.mxu0 0.0
    %2585 = vmatpush2.msra.mxu0 0.0
    %2586 = vmatprep.subr.mxu0 0.0
    %2587 = vmatpush2.msra.mxu0 0.0
    %2588 = vmatprep.subr.mxu0 0.0
    %2589 = vmatpush2.msra.mxu0 0.0
    %2590 = vmatprep.subr.mxu0 0.0
    %2591 = vmatpush2.msra.mxu0 0.0
    %2592 = vmatprep.subr.mxu0 0.0
    %2593 = vmatpush2.msra.mxu0 0.0
    %2594 = vmatprep.subr.mxu0 0.0
    %2595 = vmatpush2.msra.mxu0 0.0
    %2596 = vmatprep.subr.mxu0 0.0
    %2597 = vmatpush2.msra.mxu0 0.0
    %2598 = vmatprep.subr.mxu0 0.0
    %2599 = vmatpush2.msra.mxu0 0.0
    %2600 = vmatprep.mubr.f32.mxu0 0.0
    %2601 = vmatmul.mubr.f32.gmra.mxu0 %v2534
    %v2602 = vpop.f32.mrf.mxu0
    %v2603 = vadd.f32 0.0, %v2602
    %v2604 = vpop.f32.mrf.mxu0
    %v2605 = vadd.f32 0.0, %v2604
    %2606 = vdwg.mxu0
    %2607 = vmatprep.subr.mxu0 0.0
    %2608 = vmatpush1.msra.mxu0 0.0
    %2609 = vmatprep.subr.mxu0 0.0
    %2610 = vmatpush1.msra.mxu0 0.0
    %2611 = vmatprep.subr.mxu0 0.0
    %2612 = vmatpush1.msra.mxu0 0.0
    %2613 = vmatprep.subr.mxu0 0.0
    %2614 = vmatpush1.msra.mxu0 0.0
    %2615 = vmatprep.subr.mxu0 0.0
    %2616 = vmatpush1.msra.mxu0 0.0
    %2617 = vmatprep.subr.mxu0 0.0
    %2618 = vmatpush1.msra.mxu0 0.0
    %2619 = vmatprep.subr.mxu0 0.0
    %2620 = vmatpush1.msra.mxu0 0.0
    %2621 = vmatprep.subr.mxu0 0.0
    %2622 = vmatpush1.msra.mxu0 0.0
    %2623 = vmatprep.subr.mxu0 0.0
    %2624 = vmatpush1.msra.mxu0 0.0
    %2625 = vmatprep.subr.mxu0 0.0
    %2626 = vmatpush1.msra.mxu0 0.0
    %2627 = vmatprep.subr.mxu0 0.0
    %2628 = vmatpush1.msra.mxu0 0.0
    %2629 = vmatprep.subr.mxu0 0.0
    %2630 = vmatpush1.msra.mxu0 0.0
    %2631 = vmatprep.subr.mxu0 %v1984
    %2632 = vmatpush1.msra.mxu0 %v1983
    %2633 = vmatprep.subr.mxu0 %v1980
    %2634 = vmatpush1.msra.mxu0 %v1979
    %2635 = vmatprep.subr.mxu0 %v1976
    %2636 = vmatpush1.msra.mxu0 %v1975
    %2637 = vmatprep.subr.mxu0 %v1972
    %2638 = vmatpush1.msra.mxu0 %v1971
    %2639 = vmatprep.subr.mxu0 0.0
    %2640 = vmatpush2.msra.mxu0 0.0
    %2641 = vmatprep.subr.mxu0 0.0
    %2642 = vmatpush2.msra.mxu0 0.0
    %2643 = vmatprep.subr.mxu0 0.0
    %2644 = vmatpush2.msra.mxu0 0.0
    %2645 = vmatprep.subr.mxu0 0.0
    %2646 = vmatpush2.msra.mxu0 0.0
    %2647 = vmatprep.subr.mxu0 0.0
    %2648 = vmatpush2.msra.mxu0 0.0
    %2649 = vmatprep.subr.mxu0 0.0
    %2650 = vmatpush2.msra.mxu0 0.0
    %2651 = vmatprep.subr.mxu0 0.0
    %2652 = vmatpush2.msra.mxu0 0.0
    %2653 = vmatprep.subr.mxu0 0.0
    %2654 = vmatpush2.msra.mxu0 0.0
    %2655 = vmatprep.subr.mxu0 0.0
    %2656 = vmatpush2.msra.mxu0 0.0
    %2657 = vmatprep.subr.mxu0 0.0
    %2658 = vmatpush2.msra.mxu0 0.0
    %2659 = vmatprep.subr.mxu0 0.0
    %2660 = vmatpush2.msra.mxu0 0.0
    %2661 = vmatprep.subr.mxu0 0.0
    %2662 = vmatpush2.msra.mxu0 0.0
    %2663 = vmatprep.subr.mxu0 0.0
    %2664 = vmatpush2.msra.mxu0 0.0
    %2665 = vmatprep.subr.mxu0 0.0
    %2666 = vmatpush2.msra.mxu0 0.0
    %2667 = vmatprep.subr.mxu0 0.0
    %2668 = vmatpush2.msra.mxu0 0.0
    %2669 = vmatprep.subr.mxu0 0.0
    %2670 = vmatpush2.msra.mxu0 0.0
    %2671 = vmatprep.mubr.f32.mxu0 0.0
    %2672 = vmatmul.mubr.f32.gmra.mxu0 %v2534
    %v2673 = vpop.f32.mrf.mxu0
    %v2674 = vadd.f32 0.0, %v2673
    %v2675 = vpop.f32.mrf.mxu0
    %v2676 = vadd.f32 0.0, %v2675
    %2677 = vdwg.mxu0
    %v2682 = vrot.slane %v2603, 2
    %v2683 = vrot.slane %v2605, 2
    %v2684 = vrot.slane %v2674, 2
    %v2685 = vrot.slane %v2676, 2
    %v2690 = vadd.f32 %v1881, %v2682
    %v2691 = vadd.f32 %v1883, %v2683
    %v2692 = vadd.f32 %v1958, %v2684
    %v2693 = vadd.f32 %v1960, %v2685
    %v2694 = vxor.u32 %v2690, 2147483648
    %v2695 = vxor.u32 %v2691, 2147483648
    %v2696 = vxor.u32 %v2692, 2147483648
    %v2697 = vmul.f32 %v2694, 1.442695
    %v2698 = vpow.pop %v2697
    %v2699 = vmul.f32 %v2695, 1.442695
    %v2700 = vpow.pop %v2699
    %v2701 = vmul.f32 %v2696, 1.442695
    %v2702 = vpow.pop %v2701
    %v2703 = vadd.f32 %v2698, 1.0
    %v2704 = vadd.f32 %v2700, 1.0
    %v2705 = vadd.f32 %v2702, 1.0
    %v2706 = vrcp.pop %v2703
    %v2707 = vmul.f32 1.0, %v2706
    %v2708 = vrcp.pop %v2704
    %v2709 = vmul.f32 1.0, %v2708
    %v2710 = vrcp.pop %v2705
    %v2711 = vmul.f32 1.0, %v2710
    %v2712 = vtanh.pop %v2693
    %v2714 = vrot.slane %v2529, 6
    %v2716 = vmul.f32 %v2709, %v2714
    %v2717 = vmul.f32 %v2707, %v2712
    %v2718 = vadd.f32 %v2716, %v2717
    %v2719 = vtanh.pop %v2718
    %v2720 = vmul.f32 %v2711, %v2719
    %v2722 = vrot.slane %v2720, 6
    %v2723 = vsel %vm53, %v2722, 0
    %2725 = vmatprep.subr.mxu0 0.0
    %2726 = vmatpush1.msra.mxu0 0.0
    %2727 = vmatprep.subr.mxu0 0.0
    %2728 = vmatpush1.msra.mxu0 0.0
    %2729 = vmatprep.subr.mxu0 0.0
    %2730 = vmatpush1.msra.mxu0 0.0
    %2731 = vmatprep.subr.mxu0 0.0
    %2732 = vmatpush1.msra.mxu0 0.0
    %2733 = vmatprep.subr.mxu0 0.0
    %2734 = vmatpush1.msra.mxu0 0.0
    %2735 = vmatprep.subr.mxu0 0.0
    %2736 = vmatpush1.msra.mxu0 0.0
    %2737 = vmatprep.subr.mxu0 0.0
    %2738 = vmatpush1.msra.mxu0 0.0
    %2739 = vmatprep.subr.mxu0 0.0
    %2740 = vmatpush1.msra.mxu0 0.0
    %2741 = vmatprep.subr.mxu0 0.0
    %2742 = vmatpush1.msra.mxu0 0.0
    %2743 = vmatprep.subr.mxu0 0.0
    %2744 = vmatpush1.msra.mxu0 0.0
    %2745 = vmatprep.subr.mxu0 0.0
    %2746 = vmatpush1.msra.mxu0 0.0
    %2747 = vmatprep.subr.mxu0 0.0
    %2748 = vmatpush1.msra.mxu0 0.0
    %2749 = vmatprep.subr.mxu0 %v1982
    %2750 = vmatpush1.msra.mxu0 %v1981
    %2751 = vmatprep.subr.mxu0 %v1978
    %2752 = vmatpush1.msra.mxu0 %v1977
    %2753 = vmatprep.subr.mxu0 %v1974
    %2754 = vmatpush1.msra.mxu0 %v1973
    %2755 = vmatprep.subr.mxu0 %v1970
    %2756 = vmatpush1.msra.mxu0 %v1969
    %2757 = vmatprep.subr.mxu0 0.0
    %2758 = vmatpush2.msra.mxu0 0.0
    %2759 = vmatprep.subr.mxu0 0.0
    %2760 = vmatpush2.msra.mxu0 0.0
    %2761 = vmatprep.subr.mxu0 0.0
    %2762 = vmatpush2.msra.mxu0 0.0
    %2763 = vmatprep.subr.mxu0 0.0
    %2764 = vmatpush2.msra.mxu0 0.0
    %2765 = vmatprep.subr.mxu0 0.0
    %2766 = vmatpush2.msra.mxu0 0.0
    %2767 = vmatprep.subr.mxu0 0.0
    %2768 = vmatpush2.msra.mxu0 0.0
    %2769 = vmatprep.subr.mxu0 0.0
    %2770 = vmatpush2.msra.mxu0 0.0
    %2771 = vmatprep.subr.mxu0 0.0
    %2772 = vmatpush2.msra.mxu0 0.0
    %2773 = vmatprep.subr.mxu0 0.0
    %2774 = vmatpush2.msra.mxu0 0.0
    %2775 = vmatprep.subr.mxu0 0.0
    %2776 = vmatpush2.msra.mxu0 0.0
    %2777 = vmatprep.subr.mxu0 0.0
    %2778 = vmatpush2.msra.mxu0 0.0
    %2779 = vmatprep.subr.mxu0 0.0
    %2780 = vmatpush2.msra.mxu0 0.0
    %2781 = vmatprep.subr.mxu0 0.0
    %2782 = vmatpush2.msra.mxu0 0.0
    %2783 = vmatprep.subr.mxu0 0.0
    %2784 = vmatpush2.msra.mxu0 0.0
    %2785 = vmatprep.subr.mxu0 0.0
    %2786 = vmatpush2.msra.mxu0 0.0
    %2787 = vmatprep.subr.mxu0 0.0
    %2788 = vmatpush2.msra.mxu0 0.0
    %2789 = vmatprep.mubr.f32.mxu0 0.0
    %2790 = vmatmul.mubr.f32.gmra.mxu0 %v2723
    %v2791 = vpop.f32.mrf.mxu0
    %v2792 = vadd.f32 0.0, %v2791
    %v2793 = vpop.f32.mrf.mxu0
    %v2794 = vadd.f32 0.0, %v2793
    %2795 = vdwg.mxu0
    %2796 = vmatprep.subr.mxu0 0.0
    %2797 = vmatpush1.msra.mxu0 0.0
    %2798 = vmatprep.subr.mxu0 0.0
    %2799 = vmatpush1.msra.mxu0 0.0
    %2800 = vmatprep.subr.mxu0 0.0
    %2801 = vmatpush1.msra.mxu0 0.0
    %2802 = vmatprep.subr.mxu0 0.0
    %2803 = vmatpush1.msra.mxu0 0.0
    %2804 = vmatprep.subr.mxu0 0.0
    %2805 = vmatpush1.msra.mxu0 0.0
    %2806 = vmatprep.subr.mxu0 0.0
    %2807 = vmatpush1.msra.mxu0 0.0
    %2808 = vmatprep.subr.mxu0 0.0
    %2809 = vmatpush1.msra.mxu0 0.0
    %2810 = vmatprep.subr.mxu0 0.0
    %2811 = vmatpush1.msra.mxu0 0.0
    %2812 = vmatprep.subr.mxu0 0.0
    %2813 = vmatpush1.msra.mxu0 0.0
    %2814 = vmatprep.subr.mxu0 0.0
    %2815 = vmatpush1.msra.mxu0 0.0
    %2816 = vmatprep.subr.mxu0 0.0
    %2817 = vmatpush1.msra.mxu0 0.0
    %2818 = vmatprep.subr.mxu0 0.0
    %2819 = vmatpush1.msra.mxu0 0.0
    %2820 = vmatprep.subr.mxu0 %v1984
    %2821 = vmatpush1.msra.mxu0 %v1983
    %2822 = vmatprep.subr.mxu0 %v1980
    %2823 = vmatpush1.msra.mxu0 %v1979
    %2824 = vmatprep.subr.mxu0 %v1976
    %2825 = vmatpush1.msra.mxu0 %v1975
    %2826 = vmatprep.subr.mxu0 %v1972
    %2827 = vmatpush1.msra.mxu0 %v1971
    %2828 = vmatprep.subr.mxu0 0.0
    %2829 = vmatpush2.msra.mxu0 0.0
    %2830 = vmatprep.subr.mxu0 0.0
    %2831 = vmatpush2.msra.mxu0 0.0
    %2832 = vmatprep.subr.mxu0 0.0
    %2833 = vmatpush2.msra.mxu0 0.0
    %2834 = vmatprep.subr.mxu0 0.0
    %2835 = vmatpush2.msra.mxu0 0.0
    %2836 = vmatprep.subr.mxu0 0.0
    %2837 = vmatpush2.msra.mxu0 0.0
    %2838 = vmatprep.subr.mxu0 0.0
    %2839 = vmatpush2.msra.mxu0 0.0
    %2840 = vmatprep.subr.mxu0 0.0
    %2841 = vmatpush2.msra.mxu0 0.0
    %2842 = vmatprep.subr.mxu0 0.0
    %2843 = vmatpush2.msra.mxu0 0.0
    %2844 = vmatprep.subr.mxu0 0.0
    %2845 = vmatpush2.msra.mxu0 0.0
    %2846 = vmatprep.subr.mxu0 0.0
    %2847 = vmatpush2.msra.mxu0 0.0
    %2848 = vmatprep.subr.mxu0 0.0
    %2849 = vmatpush2.msra.mxu0 0.0
    %2850 = vmatprep.subr.mxu0 0.0
    %2851 = vmatpush2.msra.mxu0 0.0
    %2852 = vmatprep.subr.mxu0 0.0
    %2853 = vmatpush2.msra.mxu0 0.0
    %2854 = vmatprep.subr.mxu0 0.0
    %2855 = vmatpush2.msra.mxu0 0.0
    %2856 = vmatprep.subr.mxu0 0.0
    %2857 = vmatpush2.msra.mxu0 0.0
    %2858 = vmatprep.subr.mxu0 0.0
    %2859 = vmatpush2.msra.mxu0 0.0
    %2860 = vmatprep.mubr.f32.mxu0 0.0
    %2861 = vmatmul.mubr.f32.gmra.mxu0 %v2723
    %v2862 = vpop.f32.mrf.mxu0
    %v2863 = vadd.f32 0.0, %v2862
    %v2864 = vpop.f32.mrf.mxu0
    %v2865 = vadd.f32 0.0, %v2864
    %2866 = vdwg.mxu0
    %v2867 = vadd.f32 %v1887, %v2792
    %v2868 = vadd.f32 %v1889, %v2794
    %v2869 = vadd.f32 %v1964, %v2863
    %v2870 = vadd.f32 %v1966, %v2865
    %v2871 = vxor.u32 %v2867, 2147483648
    %v2872 = vxor.u32 %v2868, 2147483648
    %v2873 = vxor.u32 %v2869, 2147483648
    %v2874 = vmul.f32 %v2871, 1.442695
    %v2875 = vpow.pop %v2874
    %v2876 = vmul.f32 %v2872, 1.442695
    %v2877 = vpow.pop %v2876
    %v2878 = vmul.f32 %v2873, 1.442695
    %v2879 = vpow.pop %v2878
    %v2880 = vadd.f32 %v2875, 1.0
    %v2881 = vadd.f32 %v2877, 1.0
    %v2882 = vadd.f32 %v2879, 1.0
    %v2883 = vrcp.pop %v2880
    %v2884 = vmul.f32 1.0, %v2883
    %v2885 = vrcp.pop %v2881
    %v2886 = vmul.f32 1.0, %v2885
    %v2887 = vrcp.pop %v2882
    %v2888 = vmul.f32 1.0, %v2887
    %v2889 = vtanh.pop %v2870
    %v2891 = vrot.slane %v2718, 6
    %v2893 = vmul.f32 %v2886, %v2891
    %v2894 = vmul.f32 %v2884, %v2889
    %v2895 = vadd.f32 %v2893, %v2894
    %v2896 = vtanh.pop %v2895
    %v2897 = vmul.f32 %v2888, %v2896
    %v2899 = vsel %vm53, %v2897, 0
    %2901 = vmatprep.subr.mxu0 0.0
    %2902 = vmatpush1.msra.mxu0 0.0
    %2903 = vmatprep.subr.mxu0 0.0
    %2904 = vmatpush1.msra.mxu0 0.0
    %2905 = vmatprep.subr.mxu0 0.0
    %2906 = vmatpush1.msra.mxu0 0.0
    %2907 = vmatprep.subr.mxu0 0.0
    %2908 = vmatpush1.msra.mxu0 0.0
    %2909 = vmatprep.subr.mxu0 0.0
    %2910 = vmatpush1.msra.mxu0 0.0
    %2911 = vmatprep.subr.mxu0 0.0
    %2912 = vmatpush1.msra.mxu0 0.0
    %2913 = vmatprep.subr.mxu0 0.0
    %2914 = vmatpush1.msra.mxu0 0.0
    %2915 = vmatprep.subr.mxu0 0.0
    %2916 = vmatpush1.msra.mxu0 0.0
    %2917 = vmatprep.subr.mxu0 0.0
    %2918 = vmatpush1.msra.mxu0 0.0
    %2919 = vmatprep.subr.mxu0 0.0
    %2920 = vmatpush1.msra.mxu0 0.0
    %2921 = vmatprep.subr.mxu0 0.0
    %2922 = vmatpush1.msra.mxu0 0.0
    %2923 = vmatprep.subr.mxu0 0.0
    %2924 = vmatpush1.msra.mxu0 0.0
    %2925 = vmatprep.subr.mxu0 %v1982
    %2926 = vmatpush1.msra.mxu0 %v1981
    %2927 = vmatprep.subr.mxu0 %v1978
    %2928 = vmatpush1.msra.mxu0 %v1977
    %2929 = vmatprep.subr.mxu0 %v1974
    %2930 = vmatpush1.msra.mxu0 %v1973
    %2931 = vmatprep.subr.mxu0 %v1970
    %2932 = vmatpush1.msra.mxu0 %v1969
    %2933 = vmatprep.subr.mxu0 0.0
    %2934 = vmatpush2.msra.mxu0 0.0
    %2935 = vmatprep.subr.mxu0 0.0
    %2936 = vmatpush2.msra.mxu0 0.0
    %2937 = vmatprep.subr.mxu0 0.0
    %2938 = vmatpush2.msra.mxu0 0.0
    %2939 = vmatprep.subr.mxu0 0.0
    %2940 = vmatpush2.msra.mxu0 0.0
    %2941 = vmatprep.subr.mxu0 0.0
    %2942 = vmatpush2.msra.mxu0 0.0
    %2943 = vmatprep.subr.mxu0 0.0
    %2944 = vmatpush2.msra.mxu0 0.0
    %2945 = vmatprep.subr.mxu0 0.0
    %2946 = vmatpush2.msra.mxu0 0.0
    %2947 = vmatprep.subr.mxu0 0.0
    %2948 = vmatpush2.msra.mxu0 0.0
    %2949 = vmatprep.subr.mxu0 0.0
    %2950 = vmatpush2.msra.mxu0 0.0
    %2951 = vmatprep.subr.mxu0 0.0
    %2952 = vmatpush2.msra.mxu0 0.0
    %2953 = vmatprep.subr.mxu0 0.0
    %2954 = vmatpush2.msra.mxu0 0.0
    %2955 = vmatprep.subr.mxu0 0.0
    %2956 = vmatpush2.msra.mxu0 0.0
    %2957 = vmatprep.subr.mxu0 0.0
    %2958 = vmatpush2.msra.mxu0 0.0
    %2959 = vmatprep.subr.mxu0 0.0
    %2960 = vmatpush2.msra.mxu0 0.0
    %2961 = vmatprep.subr.mxu0 0.0
    %2962 = vmatpush2.msra.mxu0 0.0
    %2963 = vmatprep.subr.mxu0 0.0
    %2964 = vmatpush2.msra.mxu0 0.0
    %2965 = vmatprep.mubr.f32.mxu0 0.0
    %2966 = vmatmul.mubr.f32.gmra.mxu0 %v2899
    %v2967 = vpop.f32.mrf.mxu0
    %v2968 = vadd.f32 0.0, %v2967
    %v2969 = vpop.f32.mrf.mxu0
    %v2970 = vadd.f32 0.0, %v2969
    %2971 = vdwg.mxu0
    %2972 = vmatprep.subr.mxu0 0.0
    %2973 = vmatpush1.msra.mxu0 0.0
    %2974 = vmatprep.subr.mxu0 0.0
    %2975 = vmatpush1.msra.mxu0 0.0
    %2976 = vmatprep.subr.mxu0 0.0
    %2977 = vmatpush1.msra.mxu0 0.0
    %2978 = vmatprep.subr.mxu0 0.0
    %2979 = vmatpush1.msra.mxu0 0.0
    %2980 = vmatprep.subr.mxu0 0.0
    %2981 = vmatpush1.msra.mxu0 0.0
    %2982 = vmatprep.subr.mxu0 0.0
    %2983 = vmatpush1.msra.mxu0 0.0
    %2984 = vmatprep.subr.mxu0 0.0
    %2985 = vmatpush1.msra.mxu0 0.0
    %2986 = vmatprep.subr.mxu0 0.0
    %2987 = vmatpush1.msra.mxu0 0.0
    %2988 = vmatprep.subr.mxu0 0.0
    %2989 = vmatpush1.msra.mxu0 0.0
    %2990 = vmatprep.subr.mxu0 0.0
    %2991 = vmatpush1.msra.mxu0 0.0
    %2992 = vmatprep.subr.mxu0 0.0
    %2993 = vmatpush1.msra.mxu0 0.0
    %2994 = vmatprep.subr.mxu0 0.0
    %2995 = vmatpush1.msra.mxu0 0.0
    %2996 = vmatprep.subr.mxu0 %v1984
    %2997 = vmatpush1.msra.mxu0 %v1983
    %2998 = vmatprep.subr.mxu0 %v1980
    %2999 = vmatpush1.msra.mxu0 %v1979
    %3000 = vmatprep.subr.mxu0 %v1976
    %3001 = vmatpush1.msra.mxu0 %v1975
    %3002 = vmatprep.subr.mxu0 %v1972
    %3003 = vmatpush1.msra.mxu0 %v1971
    %3004 = vmatprep.subr.mxu0 0.0
    %3005 = vmatpush2.msra.mxu0 0.0
    %3006 = vmatprep.subr.mxu0 0.0
    %3007 = vmatpush2.msra.mxu0 0.0
    %3008 = vmatprep.subr.mxu0 0.0
    %3009 = vmatpush2.msra.mxu0 0.0
    %3010 = vmatprep.subr.mxu0 0.0
    %3011 = vmatpush2.msra.mxu0 0.0
    %3012 = vmatprep.subr.mxu0 0.0
    %3013 = vmatpush2.msra.mxu0 0.0
    %3014 = vmatprep.subr.mxu0 0.0
    %3015 = vmatpush2.msra.mxu0 0.0
    %3016 = vmatprep.subr.mxu0 0.0
    %3017 = vmatpush2.msra.mxu0 0.0
    %3018 = vmatprep.subr.mxu0 0.0
    %3019 = vmatpush2.msra.mxu0 0.0
    %3020 = vmatprep.subr.mxu0 0.0
    %3021 = vmatpush2.msra.mxu0 0.0
    %3022 = vmatprep.subr.mxu0 0.0
    %3023 = vmatpush2.msra.mxu0 0.0
    %3024 = vmatprep.subr.mxu0 0.0
    %3025 = vmatpush2.msra.mxu0 0.0
    %3026 = vmatprep.subr.mxu0 0.0
    %3027 = vmatpush2.msra.mxu0 0.0
    %3028 = vmatprep.subr.mxu0 0.0
    %3029 = vmatpush2.msra.mxu0 0.0
    %3030 = vmatprep.subr.mxu0 0.0
    %3031 = vmatpush2.msra.mxu0 0.0
    %3032 = vmatprep.subr.mxu0 0.0
    %3033 = vmatpush2.msra.mxu0 0.0
    %3034 = vmatprep.subr.mxu0 0.0
    %3035 = vmatpush2.msra.mxu0 0.0
    %3036 = vmatprep.mubr.f32.mxu0 0.0
    %3037 = vmatmul.mubr.f32.gmra.mxu0 %v2899
    %v3038 = vpop.f32.mrf.mxu0
    %v3039 = vadd.f32 0.0, %v3038
    %v3040 = vpop.f32.mrf.mxu0
    %v3041 = vadd.f32 0.0, %v3040
    %3042 = vdwg.mxu0
    %v3047 = vrot.slane %v2968, 6
    %v3048 = vrot.slane %v2970, 6
    %v3049 = vrot.slane %v3039, 6
    %v3050 = vrot.slane %v3041, 6
    %v3055 = vadd.f32 %v1887, %v3047
    %v3056 = vadd.f32 %v1889, %v3048
    %v3057 = vadd.f32 %v1964, %v3049
    %v3058 = vadd.f32 %v1966, %v3050
    %v3059 = vxor.u32 %v3055, 2147483648
    %v3060 = vxor.u32 %v3056, 2147483648
    %v3061 = vxor.u32 %v3057, 2147483648
    %v3062 = vmul.f32 %v3059, 1.442695
    %v3063 = vpow.pop %v3062
    %v3064 = vmul.f32 %v3060, 1.442695
    %v3065 = vpow.pop %v3064
    %v3066 = vmul.f32 %v3061, 1.442695
    %v3067 = vpow.pop %v3066
    %v3068 = vadd.f32 %v3063, 1.0
    %v3069 = vadd.f32 %v3065, 1.0
    %v3070 = vadd.f32 %v3067, 1.0
    %v3071 = vrcp.pop %v3068
    %v3072 = vmul.f32 1.0, %v3071
    %v3073 = vrcp.pop %v3069
    %v3074 = vmul.f32 1.0, %v3073
    %v3075 = vrcp.pop %v3070
    %v3076 = vmul.f32 1.0, %v3075
    %v3077 = vtanh.pop %v3058
    %v3079 = vrot.slane %v2895, 6
    %v3081 = vmul.f32 %v3074, %v3079
    %v3082 = vmul.f32 %v3072, %v3077
    %v3083 = vadd.f32 %v3081, %v3082
    %v3084 = vtanh.pop %v3083
    %v3085 = vmul.f32 %v3076, %v3084
    %v3087 = vrot.slane %v3085, 2
    %v3088 = vsel %vm53, %v3087, 0
    %3090 = vmatprep.subr.mxu0 0.0
    %3091 = vmatpush1.msra.mxu0 0.0
    %3092 = vmatprep.subr.mxu0 0.0
    %3093 = vmatpush1.msra.mxu0 0.0
    %3094 = vmatprep.subr.mxu0 0.0
    %3095 = vmatpush1.msra.mxu0 0.0
    %3096 = vmatprep.subr.mxu0 0.0
    %3097 = vmatpush1.msra.mxu0 0.0
    %3098 = vmatprep.subr.mxu0 0.0
    %3099 = vmatpush1.msra.mxu0 0.0
    %3100 = vmatprep.subr.mxu0 0.0
    %3101 = vmatpush1.msra.mxu0 0.0
    %3102 = vmatprep.subr.mxu0 0.0
    %3103 = vmatpush1.msra.mxu0 0.0
    %3104 = vmatprep.subr.mxu0 0.0
    %3105 = vmatpush1.msra.mxu0 0.0
    %3106 = vmatprep.subr.mxu0 0.0
    %3107 = vmatpush1.msra.mxu0 0.0
    %3108 = vmatprep.subr.mxu0 0.0
    %3109 = vmatpush1.msra.mxu0 0.0
    %3110 = vmatprep.subr.mxu0 0.0
    %3111 = vmatpush1.msra.mxu0 0.0
    %3112 = vmatprep.subr.mxu0 0.0
    %3113 = vmatpush1.msra.mxu0 0.0
    %3114 = vmatprep.subr.mxu0 %v1982
    %3115 = vmatpush1.msra.mxu0 %v1981
    %3116 = vmatprep.subr.mxu0 %v1978
    %3117 = vmatpush1.msra.mxu0 %v1977
    %3118 = vmatprep.subr.mxu0 %v1974
    %3119 = vmatpush1.msra.mxu0 %v1973
    %3120 = vmatprep.subr.mxu0 %v1970
    %3121 = vmatpush1.msra.mxu0 %v1969
    %3122 = vmatprep.subr.mxu0 0.0
    %3123 = vmatpush2.msra.mxu0 0.0
    %3124 = vmatprep.subr.mxu0 0.0
    %3125 = vmatpush2.msra.mxu0 0.0
    %3126 = vmatprep.subr.mxu0 0.0
    %3127 = vmatpush2.msra.mxu0 0.0
    %3128 = vmatprep.subr.mxu0 0.0
    %3129 = vmatpush2.msra.mxu0 0.0
    %3130 = vmatprep.subr.mxu0 0.0
    %3131 = vmatpush2.msra.mxu0 0.0
    %3132 = vmatprep.subr.mxu0 0.0
    %3133 = vmatpush2.msra.mxu0 0.0
    %3134 = vmatprep.subr.mxu0 0.0
    %3135 = vmatpush2.msra.mxu0 0.0
    %3136 = vmatprep.subr.mxu0 0.0
    %3137 = vmatpush2.msra.mxu0 0.0
    %3138 = vmatprep.subr.mxu0 0.0
    %3139 = vmatpush2.msra.mxu0 0.0
    %3140 = vmatprep.subr.mxu0 0.0
    %3141 = vmatpush2.msra.mxu0 0.0
    %3142 = vmatprep.subr.mxu0 0.0
    %3143 = vmatpush2.msra.mxu0 0.0
    %3144 = vmatprep.subr.mxu0 0.0
    %3145 = vmatpush2.msra.mxu0 0.0
    %3146 = vmatprep.subr.mxu0 0.0
    %3147 = vmatpush2.msra.mxu0 0.0
    %3148 = vmatprep.subr.mxu0 0.0
    %3149 = vmatpush2.msra.mxu0 0.0
    %3150 = vmatprep.subr.mxu0 0.0
    %3151 = vmatpush2.msra.mxu0 0.0
    %3152 = vmatprep.subr.mxu0 0.0
    %3153 = vmatpush2.msra.mxu0 0.0
    %3154 = vmatprep.mubr.f32.mxu0 0.0
    %3155 = vmatmul.mubr.f32.gmra.mxu0 %v3088
    %v3156 = vpop.f32.mrf.mxu0
    %v3157 = vadd.f32 0.0, %v3156
    %v3158 = vpop.f32.mrf.mxu0
    %v3159 = vadd.f32 0.0, %v3158
    %3160 = vdwg.mxu0
    %3161 = vmatprep.subr.mxu0 0.0
    %3162 = vmatpush1.msra.mxu0 0.0
    %3163 = vmatprep.subr.mxu0 0.0
    %3164 = vmatpush1.msra.mxu0 0.0
    %3165 = vmatprep.subr.mxu0 0.0
    %3166 = vmatpush1.msra.mxu0 0.0
    %3167 = vmatprep.subr.mxu0 0.0
    %3168 = vmatpush1.msra.mxu0 0.0
    %3169 = vmatprep.subr.mxu0 0.0
    %3170 = vmatpush1.msra.mxu0 0.0
    %3171 = vmatprep.subr.mxu0 0.0
    %3172 = vmatpush1.msra.mxu0 0.0
    %3173 = vmatprep.subr.mxu0 0.0
    %3174 = vmatpush1.msra.mxu0 0.0
    %3175 = vmatprep.subr.mxu0 0.0
    %3176 = vmatpush1.msra.mxu0 0.0
    %3177 = vmatprep.subr.mxu0 0.0
    %3178 = vmatpush1.msra.mxu0 0.0
    %3179 = vmatprep.subr.mxu0 0.0
    %3180 = vmatpush1.msra.mxu0 0.0
    %3181 = vmatprep.subr.mxu0 0.0
    %3182 = vmatpush1.msra.mxu0 0.0
    %3183 = vmatprep.subr.mxu0 0.0
    %3184 = vmatpush1.msra.mxu0 0.0
    %3185 = vmatprep.subr.mxu0 %v1984
    %3186 = vmatpush1.msra.mxu0 %v1983
    %3187 = vmatprep.subr.mxu0 %v1980
    %3188 = vmatpush1.msra.mxu0 %v1979
    %3189 = vmatprep.subr.mxu0 %v1976
    %3190 = vmatpush1.msra.mxu0 %v1975
    %3191 = vmatprep.subr.mxu0 %v1972
    %3192 = vmatpush1.msra.mxu0 %v1971
    %3193 = vmatprep.subr.mxu0 0.0
    %3194 = vmatpush2.msra.mxu0 0.0
    %3195 = vmatprep.subr.mxu0 0.0
    %3196 = vmatpush2.msra.mxu0 0.0
    %3197 = vmatprep.subr.mxu0 0.0
    %3198 = vmatpush2.msra.mxu0 0.0
    %3199 = vmatprep.subr.mxu0 0.0
    %3200 = vmatpush2.msra.mxu0 0.0
    %3201 = vmatprep.subr.mxu0 0.0
    %3202 = vmatpush2.msra.mxu0 0.0
    %3203 = vmatprep.subr.mxu0 0.0
    %3204 = vmatpush2.msra.mxu0 0.0
    %3205 = vmatprep.subr.mxu0 0.0
    %3206 = vmatpush2.msra.mxu0 0.0
    %3207 = vmatprep.subr.mxu0 0.0
    %3208 = vmatpush2.msra.mxu0 0.0
    %3209 = vmatprep.subr.mxu0 0.0
    %3210 = vmatpush2.msra.mxu0 0.0
    %3211 = vmatprep.subr.mxu0 0.0
    %3212 = vmatpush2.msra.mxu0 0.0
    %3213 = vmatprep.subr.mxu0 0.0
    %3214 = vmatpush2.msra.mxu0 0.0
    %3215 = vmatprep.subr.mxu0 0.0
    %3216 = vmatpush2.msra.mxu0 0.0
    %3217 = vmatprep.subr.mxu0 0.0
    %3218 = vmatpush2.msra.mxu0 0.0
    %3219 = vmatprep.subr.mxu0 0.0
    %3220 = vmatpush2.msra.mxu0 0.0
    %3221 = vmatprep.subr.mxu0 0.0
    %3222 = vmatpush2.msra.mxu0 0.0
    %3223 = vmatprep.subr.mxu0 0.0
    %3224 = vmatpush2.msra.mxu0 0.0
    %3225 = vmatprep.mubr.f32.mxu0 0.0
    %3226 = vmatmul.mubr.f32.gmra.mxu0 %v3088
    %v3227 = vpop.f32.mrf.mxu0
    %v3228 = vadd.f32 0.0, %v3227
    %v3229 = vpop.f32.mrf.mxu0
    %v3230 = vadd.f32 0.0, %v3229
    %3231 = vdwg.mxu0
    %v3236 = vrot.slane %v3157, 4
    %v3237 = vrot.slane %v3159, 4
    %v3238 = vrot.slane %v3228, 4
    %v3239 = vrot.slane %v3230, 4
    %v3244 = vadd.f32 %v1887, %v3236
    %v3245 = vadd.f32 %v1889, %v3237
    %v3246 = vadd.f32 %v1964, %v3238
    %v3247 = vadd.f32 %v1966, %v3239
    %v3248 = vxor.u32 %v3244, 2147483648
    %v3249 = vxor.u32 %v3245, 2147483648
    %v3250 = vxor.u32 %v3246, 2147483648
    %v3251 = vmul.f32 %v3248, 1.442695
    %v3252 = vpow.pop %v3251
    %v3253 = vmul.f32 %v3249, 1.442695
    %v3254 = vpow.pop %v3253
    %v3255 = vmul.f32 %v3250, 1.442695
    %v3256 = vpow.pop %v3255
    %v3257 = vadd.f32 %v3252, 1.0
    %v3258 = vadd.f32 %v3254, 1.0
    %v3259 = vadd.f32 %v3256, 1.0
    %v3260 = vrcp.pop %v3257
    %v3261 = vmul.f32 1.0, %v3260
    %v3262 = vrcp.pop %v3258
    %v3263 = vmul.f32 1.0, %v3262
    %v3264 = vrcp.pop %v3259
    %v3265 = vmul.f32 1.0, %v3264
    %v3266 = vtanh.pop %v3247
    %v3268 = vrot.slane %v3083, 6
    %v3270 = vmul.f32 %v3263, %v3268
    %v3271 = vmul.f32 %v3261, %v3266
    %v3272 = vadd.f32 %v3270, %v3271
    %v3273 = vtanh.pop %v3272
    %v3274 = vmul.f32 %v3265, %v3273
    %v3276 = vrot.slane %v3274, 4
    %v3277 = vsel %vm53, %v3276, 0
    %3279 = vmatprep.subr.mxu0 0.0
    %3280 = vmatpush1.msra.mxu0 0.0
    %3281 = vmatprep.subr.mxu0 0.0
    %3282 = vmatpush1.msra.mxu0 0.0
    %3283 = vmatprep.subr.mxu0 0.0
    %3284 = vmatpush1.msra.mxu0 0.0
    %3285 = vmatprep.subr.mxu0 0.0
    %3286 = vmatpush1.msra.mxu0 0.0
    %3287 = vmatprep.subr.mxu0 0.0
    %3288 = vmatpush1.msra.mxu0 0.0
    %3289 = vmatprep.subr.mxu0 0.0
    %3290 = vmatpush1.msra.mxu0 0.0
    %3291 = vmatprep.subr.mxu0 0.0
    %3292 = vmatpush1.msra.mxu0 0.0
    %3293 = vmatprep.subr.mxu0 0.0
    %3294 = vmatpush1.msra.mxu0 0.0
    %3295 = vmatprep.subr.mxu0 0.0
    %3296 = vmatpush1.msra.mxu0 0.0
    %3297 = vmatprep.subr.mxu0 0.0
    %3298 = vmatpush1.msra.mxu0 0.0
    %3299 = vmatprep.subr.mxu0 0.0
    %3300 = vmatpush1.msra.mxu0 0.0
    %3301 = vmatprep.subr.mxu0 0.0
    %3302 = vmatpush1.msra.mxu0 0.0
    %3303 = vmatprep.subr.mxu0 %v1982
    %3304 = vmatpush1.msra.mxu0 %v1981
    %3305 = vmatprep.subr.mxu0 %v1978
    %3306 = vmatpush1.msra.mxu0 %v1977
    %3307 = vmatprep.subr.mxu0 %v1974
    %3308 = vmatpush1.msra.mxu0 %v1973
    %3309 = vmatprep.subr.mxu0 %v1970
    %3310 = vmatpush1.msra.mxu0 %v1969
    %3311 = vmatprep.subr.mxu0 0.0
    %3312 = vmatpush2.msra.mxu0 0.0
    %3313 = vmatprep.subr.mxu0 0.0
    %3314 = vmatpush2.msra.mxu0 0.0
    %3315 = vmatprep.subr.mxu0 0.0
    %3316 = vmatpush2.msra.mxu0 0.0
    %3317 = vmatprep.subr.mxu0 0.0
    %3318 = vmatpush2.msra.mxu0 0.0
    %3319 = vmatprep.subr.mxu0 0.0
    %3320 = vmatpush2.msra.mxu0 0.0
    %3321 = vmatprep.subr.mxu0 0.0
    %3322 = vmatpush2.msra.mxu0 0.0
    %3323 = vmatprep.subr.mxu0 0.0
    %3324 = vmatpush2.msra.mxu0 0.0
    %3325 = vmatprep.subr.mxu0 0.0
    %3326 = vmatpush2.msra.mxu0 0.0
    %3327 = vmatprep.subr.mxu0 0.0
    %3328 = vmatpush2.msra.mxu0 0.0
    %3329 = vmatprep.subr.mxu0 0.0
    %3330 = vmatpush2.msra.mxu0 0.0
    %3331 = vmatprep.subr.mxu0 0.0
    %3332 = vmatpush2.msra.mxu0 0.0
    %3333 = vmatprep.subr.mxu0 0.0
    %3334 = vmatpush2.msra.mxu0 0.0
    %3335 = vmatprep.subr.mxu0 0.0
    %3336 = vmatpush2.msra.mxu0 0.0
    %3337 = vmatprep.subr.mxu0 0.0
    %3338 = vmatpush2.msra.mxu0 0.0
    %3339 = vmatprep.subr.mxu0 0.0
    %3340 = vmatpush2.msra.mxu0 0.0
    %3341 = vmatprep.subr.mxu0 0.0
    %3342 = vmatpush2.msra.mxu0 0.0
    %3343 = vmatprep.mubr.f32.mxu0 0.0
    %3344 = vmatmul.mubr.f32.gmra.mxu0 %v3277
    %v3345 = vpop.f32.mrf.mxu0
    %v3346 = vadd.f32 0.0, %v3345
    %v3347 = vpop.f32.mrf.mxu0
    %v3348 = vadd.f32 0.0, %v3347
    %3349 = vdwg.mxu0
    %3350 = vmatprep.subr.mxu0 0.0
    %3351 = vmatpush1.msra.mxu0 0.0
    %3352 = vmatprep.subr.mxu0 0.0
    %3353 = vmatpush1.msra.mxu0 0.0
    %3354 = vmatprep.subr.mxu0 0.0
    %3355 = vmatpush1.msra.mxu0 0.0
    %3356 = vmatprep.subr.mxu0 0.0
    %3357 = vmatpush1.msra.mxu0 0.0
    %3358 = vmatprep.subr.mxu0 0.0
    %3359 = vmatpush1.msra.mxu0 0.0
    %3360 = vmatprep.subr.mxu0 0.0
    %3361 = vmatpush1.msra.mxu0 0.0
    %3362 = vmatprep.subr.mxu0 0.0
    %3363 = vmatpush1.msra.mxu0 0.0
    %3364 = vmatprep.subr.mxu0 0.0
    %3365 = vmatpush1.msra.mxu0 0.0
    %3366 = vmatprep.subr.mxu0 0.0
    %3367 = vmatpush1.msra.mxu0 0.0
    %3368 = vmatprep.subr.mxu0 0.0
    %3369 = vmatpush1.msra.mxu0 0.0
    %3370 = vmatprep.subr.mxu0 0.0
    %3371 = vmatpush1.msra.mxu0 0.0
    %3372 = vmatprep.subr.mxu0 0.0
    %3373 = vmatpush1.msra.mxu0 0.0
    %3374 = vmatprep.subr.mxu0 %v1984
    %3375 = vmatpush1.msra.mxu0 %v1983
    %3376 = vmatprep.subr.mxu0 %v1980
    %3377 = vmatpush1.msra.mxu0 %v1979
    %3378 = vmatprep.subr.mxu0 %v1976
    %3379 = vmatpush1.msra.mxu0 %v1975
    %3380 = vmatprep.subr.mxu0 %v1972
    %3381 = vmatpush1.msra.mxu0 %v1971
    %3382 = vmatprep.subr.mxu0 0.0
    %3383 = vmatpush2.msra.mxu0 0.0
    %3384 = vmatprep.subr.mxu0 0.0
    %3385 = vmatpush2.msra.mxu0 0.0
    %3386 = vmatprep.subr.mxu0 0.0
    %3387 = vmatpush2.msra.mxu0 0.0
    %3388 = vmatprep.subr.mxu0 0.0
    %3389 = vmatpush2.msra.mxu0 0.0
    %3390 = vmatprep.subr.mxu0 0.0
    %3391 = vmatpush2.msra.mxu0 0.0
    %3392 = vmatprep.subr.mxu0 0.0
    %3393 = vmatpush2.msra.mxu0 0.0
    %3394 = vmatprep.subr.mxu0 0.0
    %3395 = vmatpush2.msra.mxu0 0.0
    %3396 = vmatprep.subr.mxu0 0.0
    %3397 = vmatpush2.msra.mxu0 0.0
    %3398 = vmatprep.subr.mxu0 0.0
    %3399 = vmatpush2.msra.mxu0 0.0
    %3400 = vmatprep.subr.mxu0 0.0
    %3401 = vmatpush2.msra.mxu0 0.0
    %3402 = vmatprep.subr.mxu0 0.0
    %3403 = vmatpush2.msra.mxu0 0.0
    %3404 = vmatprep.subr.mxu0 0.0
    %3405 = vmatpush2.msra.mxu0 0.0
    %3406 = vmatprep.subr.mxu0 0.0
    %3407 = vmatpush2.msra.mxu0 0.0
    %3408 = vmatprep.subr.mxu0 0.0
    %3409 = vmatpush2.msra.mxu0 0.0
    %3410 = vmatprep.subr.mxu0 0.0
    %3411 = vmatpush2.msra.mxu0 0.0
    %3412 = vmatprep.subr.mxu0 0.0
    %3413 = vmatpush2.msra.mxu0 0.0
    %3414 = vmatprep.mubr.f32.mxu0 0.0
    %3415 = vmatmul.mubr.f32.gmra.mxu0 %v3277
    %v3416 = vpop.f32.mrf.mxu0
    %v3417 = vadd.f32 0.0, %v3416
    %v3418 = vpop.f32.mrf.mxu0
    %v3419 = vadd.f32 0.0, %v3418
    %3420 = vdwg.mxu0
    %v3425 = vrot.slane %v3346, 2
    %v3426 = vrot.slane %v3348, 2
    %v3427 = vrot.slane %v3417, 2
    %v3428 = vrot.slane %v3419, 2
    %v3433 = vadd.f32 %v1887, %v3425
    %v3434 = vadd.f32 %v1889, %v3426
    %v3435 = vadd.f32 %v1964, %v3427
    %v3436 = vadd.f32 %v1966, %v3428
    %v3437 = vxor.u32 %v3433, 2147483648
    %v3438 = vxor.u32 %v3434, 2147483648
    %v3439 = vxor.u32 %v3435, 2147483648
    %v3440 = vmul.f32 %v3437, 1.442695
    %v3441 = vpow.pop %v3440
    %v3442 = vmul.f32 %v3438, 1.442695
    %v3443 = vpow.pop %v3442
    %v3444 = vmul.f32 %v3439, 1.442695
    %v3445 = vpow.pop %v3444
    %v3446 = vadd.f32 %v3441, 1.0
    %v3447 = vadd.f32 %v3443, 1.0
    %v3448 = vadd.f32 %v3445, 1.0
    %v3449 = vrcp.pop %v3446
    %v3450 = vmul.f32 1.0, %v3449
    %v3451 = vrcp.pop %v3447
    %v3452 = vmul.f32 1.0, %v3451
    %v3453 = vrcp.pop %v3448
    %v3454 = vmul.f32 1.0, %v3453
    %v3455 = vtanh.pop %v3436
    %v3457 = vrot.slane %v3272, 6
    %v3459 = vmul.f32 %v3452, %v3457
    %v3460 = vmul.f32 %v3450, %v3455
    %v3461 = vadd.f32 %v3459, %v3460
    %v3462 = vtanh.pop %v3461
    %v3463 = vmul.f32 %v3454, %v3462
    %v3464 = vld [vmem:[%s4] sm:$0x1]
    %v3466 = vlaneseq
    %v3467 = vshrl.u32 %v3466, 7
    %v3468 = vsub.s32 0, %v3467
    %v3469 = vrot.slane %v3464, %v3468
    %v3471 = vmul.f32 %v3463, %v3469
    %v3472 = vsel %vm1017, %v3471, 0.0
    %3473 = vadd.xlane.f32.xlu0 %v3472
    %v3474 = vpop.xlane.xlu0 %3473
    %v3475 = vld [vmem:[#allocation3] sm:$0x1]
    %v3477 = vlaneseq
    %v3478 = vshrl.u32 %v3477, 7
    %v3479 = vsub.s32 0, %v3478
    %v3480 = vrot.slane %v3475, %v3479
    %v3482 = vadd.f32 %v3474, %v3480
    %3484 = vset.pattern.permute.xlu0 0
    %3485 = vperm.xlu0 %3484, %v3482
    %v3486 = vpop.permute.xlu0 %3485
    %3488 = vst [vmem:[%s6 - $0x6] sm:$0xc0] %v3486
    // Predicated region
    $region34: #{lstm_model_forward.1} parent=1 // pred_check
      _
    $region35: #{lstm_model_forward.1} parent=1 // pred_check_branch
      %3490 = sbr.rel (0) target = $region37
    $region36: #{lstm_model_forward.1} parent=1 // pred_region
      _
    $region37: #{lstm_model_forward.1} parent=1 // pred_fallthru
      _
    // Predicated region
    $region38: #{lstm_model_forward.1} parent=1 // pred_check
      _
    $region39: #{lstm_model_forward.1} parent=1 // pred_check_branch
      %3492 = sbr.rel (0) target = $region41
    $region40: #{lstm_model_forward.1} parent=1 // pred_region
      _
    $region41: #{lstm_model_forward.1} parent=1 // pred_fallthru
      _
    %3493 = vsyncpa [#allocation5], 1
    %3494 = vsyncpa [#allocation7], 1

</llo_original>
